<compile_context>
chip_gen: v6e
topology: v6e:2x2x1
jax: 0.10.0
libtpu: 0.0.40
codegen_flags: <defaults>
</compile_context>

<pallas_src>
import math
import functools

import jax
import jax.numpy as jnp
from jax.experimental import pallas as pl

# Make the f32 correctness check meaningful on TPU: without this, the pure-JAX reference (and
# the kernel when executed under the Pallas interpreter) use the TPU default bf16 matmul
# precision, and the two different decompositions diverge at the ~1e-3 level.
jax.config.update("jax_default_matmul_precision", "highest")

LN_EPS = 1e-5  # PyTorch nn.LayerNorm default


def _layer_norm(v, g, b):
    mu = jnp.mean(v, axis=-1, keepdims=True)
    var = jnp.mean((v - mu) ** 2, axis=-1, keepdims=True)
    return (v - mu) * jax.lax.rsqrt(var + LN_EPS) * g + b


def _slot_attention_kernel(x_ref, fill_ref, w_in_ref, w2_ref, vec_ref, out_ref, *,
                           num_heads, batch, seq, d_ff):
    H, B, S = num_heads, batch, seq
    BS = B * S
    D = x_ref.shape[-1]
    dk = D // H
    scale = 1.0 / math.sqrt(dk)

    # ---- unpack the lane-dense parameter slabs (static slices only) ----
    w_qkv = w_in_ref[:, 0:3 * D]                 # (D, 3D)   [W_q | W_k | W_v]
    w_o = w_in_ref[:, 3 * D:4 * D]               # (D, D)
    w_1 = w_in_ref[:, 4 * D:4 * D + d_ff]        # (D, DFF)
    w_2 = w2_ref[...]                            # (DFF, D)
    b_qkv = vec_ref[0:1, 0:3 * D]
    b_o = vec_ref[1:2, 0:D]
    b_1 = vec_ref[2:3, 0:d_ff]
    b_2 = vec_ref[3:4, 0:D]
    g1 = vec_ref[4:5, 0:D]
    be1 = vec_ref[5:6, 0:D]
    g2 = vec_ref[6:7, 0:D]
    be2 = vec_ref[7:8, 0:D]

    x = x_ref[...]                               # (B*S, D)

    # ---- sublayer 0: pre-norm, self-attention, residual added to the *normed* input ----
    xn = _layer_norm(x, g1, be1)

    # Fused Q/K/V projection: one MXU push with a 3D-lane output.
    qkv = jnp.dot(xn, w_qkv, preferred_element_type=jnp.float32) + b_qkv     # (BS, 3D)

    # Stack (q|k|v, head) blocks onto sublanes: (BS, 3*H*dk) -> (3*H, BS, dk).
    qkv_s = qkv.reshape(BS, 3 * H, dk).transpose(1, 0, 2)
    q_s = qkv_s[0 * H:1 * H].reshape(H * BS, dk)     # rows ordered (head, batch, seq)
    k_s = qkv_s[1 * H:2 * H].reshape(H * BS, dk)
    v_s = qkv_s[2 * H:3 * H].reshape(H * BS, dk)

    # One (H*B*S, H*B*S) score matmul covering all heads and batches.
    s = jax.lax.dot_general(q_s, k_s, (((1,), (1,)), ((), ())),
                            preferred_element_type=jnp.float32) * scale      # (64, 64)

    # Host-precomputed block-diagonal fill: 0 keep, -1e9 in-block masked key (masked_fill),
    # -2e9 cross-(batch,head) block.  Preserves uniform-softmax semantics for fully-masked rows.
    fill = fill_ref[...]
    s = jnp.where(fill == 0.0, s, fill)
    s = s - jnp.max(s, axis=-1, keepdims=True)
    p = jnp.exp(s)
    p = p / jnp.sum(p, axis=-1, keepdims=True)        # exact f32 normalization

    ctx_s = jnp.dot(p, v_s, preferred_element_type=jnp.float32)              # (H*BS, dk)
    # Heads back onto lanes: (H*BS, dk) -> (BS, H*dk) = (BS, D).
    ctx = ctx_s.reshape(H, BS, dk).transpose(1, 0, 2).reshape(BS, D)

    # Single output projection against the original W_O.
    attn = jnp.dot(ctx, w_o, preferred_element_type=jnp.float32) + b_o
    y1 = xn + attn

    # ---- sublayer 1: pre-norm, FFN, residual added to the *normed* input ----
    y1n = _layer_norm(y1, g2, be2)
    hid = jnp.maximum(jnp.dot(y1n, w_1, preferred_element_type=jnp.float32) + b_1, 0.0)
    ffn = jnp.dot(hid, w_2, preferred_element_type=jnp.float32) + b_2
    out_ref[...] = y1n + ffn


def slot_attention_layer(x, mask, params, num_heads):
    """x: (B, S, D) f32, mask: (B, 1, S) f32 (1=attend, 0=masked). Returns (B, S, D) f32."""
    B, S, D = x.shape
    H = num_heads
    BS = B * S
    DFF = params["w1"].shape[1]
    N = H * BS                       # stacked (head, batch, seq) rows

    # ---- host-side packing into a few lane-dense slabs (fewer, denser DMAs) ----
    # All 32-row weights in one slab: [W_q | W_k | W_v | W_o | W_1] -> (D, 4D + DFF).
    w_in = jnp.concatenate([params["wq"], params["wk"], params["wv"],
                            params["wo"], params["w1"]], axis=1).astype(jnp.float32)
    w2 = params["w2"].astype(jnp.float32)

    # All bias / LayerNorm vectors in one (8, 128)-padded slab, one row each, left-aligned.
    vec_width = max(128, 3 * D, DFF)
    vec_width = -(-vec_width // 128) * 128       # round up to a lane-dense multiple of 128

    def row(v):
        v = v.reshape(1, -1).astype(jnp.float32)
        return jnp.pad(v, ((0, 0), (0, vec_width - v.shape[1])))

    vecs = jnp.concatenate([
        row(jnp.concatenate([params["bq"], params["bk"], params["bv"]], axis=1)),
        row(params["bo"]), row(params["b1"]), row(params["b2"]),
        row(params["ln1_g"]), row(params["ln1_b"]),
        row(params["ln2_g"]), row(params["ln2_b"]),
    ], axis=0)                                                    # (8, vec_width)

    # Block-diagonal masked_fill matrix for the stacked (head, batch, seq) score layout.
    pos = jnp.arange(N)
    blk = pos // S                                # block id = head * B + batch
    b_idx = blk % B
    s_idx = pos % S
    key_ok = mask[b_idx, 0, s_idx] != 0.0                         # (N,) attendable keys
    same_blk = blk[:, None] == blk[None, :]
    fill = jnp.where(same_blk,
                     jnp.where(key_ok[None, :], 0.0, -1e9),
                     -2e9).astype(jnp.float32)                    # (N, N)

    x2d = x.reshape(BS, D).astype(jnp.float32)

    def full_spec(a):
        nd = a.ndim
        return pl.BlockSpec(a.shape, lambda i, _nd=nd: (0,) * _nd)

    kernel = functools.partial(_slot_attention_kernel,
                               num_heads=H, batch=B, seq=S, d_ff=DFF)
    out2d = pl.pallas_call(
        kernel,
        out_shape=jax.ShapeDtypeStruct((BS, D), jnp.float32),
        grid=(1,),
        in_specs=[full_spec(x2d), full_spec(fill), full_spec(w_in),
                  full_spec(w2), full_spec(vecs)],
        out_specs=pl.BlockSpec((BS, D), lambda i: (0, 0)),
    )(x2d, fill, w_in, w2, vecs)
    return out2d.reshape(B, S, D)


def slot_attention_layer_ref(x, mask, params, num_heads):
    """Pure-JAX reference mirroring the PyTorch forward (eval mode)."""
    B, S, D = x.shape
    dk = D // num_heads

    def ln(v, g, b):
        mu = jnp.mean(v, axis=-1, keepdims=True)
        var = jnp.mean((v - mu) ** 2, axis=-1, keepdims=True)
        return (v - mu) / jnp.sqrt(var + LN_EPS) * g + b

    xn = ln(x, params["ln1_g"][0], params["ln1_b"][0])
    q = xn @ params["wq"] + params["bq"][0]
    k = xn @ params["wk"] + params["bk"][0]
    v = xn @ params["wv"] + params["bv"][0]
    qh = q.reshape(B, S, num_heads, dk).transpose(0, 2, 1, 3)
    kh = k.reshape(B, S, num_heads, dk).transpose(0, 2, 1, 3)
    vh = v.reshape(B, S, num_heads, dk).transpose(0, 2, 1, 3)
    s = jnp.einsum("bhqd,bhkd->bhqk", qh, kh) / math.sqrt(dk)
    s = jnp.where(mask[:, :, None, :] == 0.0, -1e9, s)
    p = jax.nn.softmax(s, axis=-1)
    ctx = jnp.einsum("bhqk,bhkd->bhqd", p, vh).transpose(0, 2, 1, 3).reshape(B, S, D)
    attn = ctx @ params["wo"] + params["bo"][0]
    y1 = xn + attn
    y1n = ln(y1, params["ln2_g"][0], params["ln2_b"][0])
    hid = jnp.maximum(y1n @ params["w1"] + params["b1"][0], 0.0)
    return y1n + hid @ params["w2"] + params["b2"][0]


if __name__ == "__main__":
    B, S, D, H, DFF = 2, 8, 32, 4, 64

    key = jax.random.PRNGKey(0)
    keys = jax.random.split(key, 16)

    def rnd(k, shape, scale=0.1):
        return (scale * jax.random.normal(k, shape, jnp.float32)).astype(jnp.float32)

    params = {
        "wq": rnd(keys[0], (D, D)), "bq": rnd(keys[1], (1, D)),
        "wk": rnd(keys[2], (D, D)), "bk": rnd(keys[3], (1, D)),
        "wv": rnd(keys[4], (D, D)), "bv": rnd(keys[5], (1, D)),
        "wo": rnd(keys[6], (D, D)), "bo": rnd(keys[7], (1, D)),
        "ln1_g": jnp.ones((1, D), jnp.float32), "ln1_b": jnp.zeros((1, D), jnp.float32),
        "ln2_g": jnp.ones((1, D), jnp.float32), "ln2_b": jnp.zeros((1, D), jnp.float32),
        "w1": rnd(keys[8], (D, DFF)), "b1": rnd(keys[9], (1, DFF)),
        "w2": rnd(keys[10], (DFF, D)), "b2": rnd(keys[11], (1, D)),
    }

    x = rnd(keys[12], (B, S, D), scale=1.0)
    # mask: 1 = attend, 0 = masked; mask out the last two keys of batch 1.
    mask = jnp.ones((B, 1, S), jnp.float32)
    mask = mask.at[1, 0, -2:].set(0.0)

    out = slot_attention_layer(x, mask, params, num_heads=H)
    out = jax.block_until_ready(out)

    ref = slot_attention_layer_ref(x, mask, params, num_heads=H)
    assert out.shape == (B, S, D) and out.dtype == jnp.float32
    err = float(jnp.max(jnp.abs(out - ref)))
    # Exact f32 softmax + pinned matmul precision -> expected agreement ~1e-5; 2e-3 leaves
    # headroom for Mosaic's native multi-pass f32 MXU path on real hardware.
    assert jnp.allclose(out, ref, rtol=2e-3, atol=2e-3), f"mismatch vs reference, max err {err}"

    print("KERNEL_OK")
</pallas_src>

<mosaic_0001>
module attributes {stable_mosaic.version = 11 : i64} {
  func.func @_slot_attention_kernel(%arg0: i32, %arg1: memref<16x32xf32, #tpu.memory_space<vmem>>, %arg2: memref<64x64xf32, #tpu.memory_space<vmem>>, %arg3: memref<32x192xf32, #tpu.memory_space<vmem>>, %arg4: memref<64x32xf32, #tpu.memory_space<vmem>>, %arg5: memref<8x128xf32, #tpu.memory_space<vmem>>, %arg6: memref<16x32xf32, #tpu.memory_space<vmem>>) attributes {dimension_semantics = [#tpu.dimension_semantics<arbitrary>], iteration_bounds = array<i64: 1>, scalar_prefetch = 0 : i64, scratch_operands = 0 : i64, tpu.core_type = #tpu.core_type<tc>, window_params = [{pipeline_mode = #tpu.pipeline_mode<synchronous>, transform_indices = @transform_0, window_bounds = array<i64: 16, 32>}, {pipeline_mode = #tpu.pipeline_mode<synchronous>, transform_indices = @transform_1, window_bounds = array<i64: 64, 64>}, {pipeline_mode = #tpu.pipeline_mode<synchronous>, transform_indices = @transform_2, window_bounds = array<i64: 32, 192>}, {pipeline_mode = #tpu.pipeline_mode<synchronous>, transform_indices = @transform_3, window_bounds = array<i64: 64, 32>}, {pipeline_mode = #tpu.pipeline_mode<synchronous>, transform_indices = @transform_4, window_bounds = array<i64: 8, 128>}, {pipeline_mode = #tpu.pipeline_mode<synchronous>, transform_indices = @transform_5, window_bounds = array<i64: 16, 32>}]} {
    %c0 = arith.constant 0 : index
    %c0_0 = arith.constant 0 : index
    %0 = vector.load %arg3[%c0, %c0_0] : memref<32x192xf32, #tpu.memory_space<vmem>>, vector<32x96xf32>
    %c0_1 = arith.constant 0 : index
    %c96 = arith.constant 96 : index
    %1 = vector.load %arg3[%c0_1, %c96] : memref<32x192xf32, #tpu.memory_space<vmem>>, vector<32x32xf32>
    %c0_2 = arith.constant 0 : index
    %c128 = arith.constant 128 : index
    %2 = vector.load %arg3[%c0_2, %c128] : memref<32x192xf32, #tpu.memory_space<vmem>>, vector<32x64xf32>
    %c0_3 = arith.constant 0 : index
    %c0_4 = arith.constant 0 : index
    %3 = vector.load %arg4[%c0_3, %c0_4] : memref<64x32xf32, #tpu.memory_space<vmem>>, vector<64x32xf32>
    %c0_5 = arith.constant 0 : index
    %c0_6 = arith.constant 0 : index
    %4 = vector.load %arg5[%c0_5, %c0_6] : memref<8x128xf32, #tpu.memory_space<vmem>>, vector<1x96xf32>
    %c1 = arith.constant 1 : index
    %c0_7 = arith.constant 0 : index
    %5 = vector.load %arg5[%c1, %c0_7] : memref<8x128xf32, #tpu.memory_space<vmem>>, vector<1x32xf32>
    %c2 = arith.constant 2 : index
    %c0_8 = arith.constant 0 : index
    %6 = vector.load %arg5[%c2, %c0_8] : memref<8x128xf32, #tpu.memory_space<vmem>>, vector<1x64xf32>
    %c3 = arith.constant 3 : index
    %c0_9 = arith.constant 0 : index
    %7 = vector.load %arg5[%c3, %c0_9] : memref<8x128xf32, #tpu.memory_space<vmem>>, vector<1x32xf32>
    %c4 = arith.constant 4 : index
    %c0_10 = arith.constant 0 : index
    %8 = vector.load %arg5[%c4, %c0_10] : memref<8x128xf32, #tpu.memory_space<vmem>>, vector<1x32xf32>
    %c5 = arith.constant 5 : index
    %c0_11 = arith.constant 0 : index
    %9 = vector.load %arg5[%c5, %c0_11] : memref<8x128xf32, #tpu.memory_space<vmem>>, vector<1x32xf32>
    %c6 = arith.constant 6 : index
    %c0_12 = arith.constant 0 : index
    %10 = vector.load %arg5[%c6, %c0_12] : memref<8x128xf32, #tpu.memory_space<vmem>>, vector<1x32xf32>
    %c7 = arith.constant 7 : index
    %c0_13 = arith.constant 0 : index
    %11 = vector.load %arg5[%c7, %c0_13] : memref<8x128xf32, #tpu.memory_space<vmem>>, vector<1x32xf32>
    %c0_14 = arith.constant 0 : index
    %c0_15 = arith.constant 0 : index
    %12 = vector.load %arg1[%c0_14, %c0_15] : memref<16x32xf32, #tpu.memory_space<vmem>>, vector<16x32xf32>
    %cst = arith.constant dense<0.000000e+00> : vector<16xf32>
    %13 = vector.multi_reduction <add>, %12, %cst [1] : vector<16x32xf32> to vector<16xf32>
    %14 = vector.shape_cast %13 : vector<16xf32> to vector<16x1xf32>
    %cst_16 = arith.constant 3.200000e+01 : f32
    %15 = vector.broadcast %cst_16 : f32 to vector<16x1xf32>
    %16 = arith.divf %14, %15 : vector<16x1xf32>
    %17 = vector.broadcast %16 : vector<16x1xf32> to vector<16x32xf32>
    %18 = arith.subf %12, %17 : vector<16x32xf32>
    %19 = arith.mulf %18, %18 : vector<16x32xf32>
    %cst_17 = arith.constant dense<0.000000e+00> : vector<16xf32>
    %20 = vector.multi_reduction <add>, %19, %cst_17 [1] : vector<16x32xf32> to vector<16xf32>
    %21 = vector.shape_cast %20 : vector<16xf32> to vector<16x1xf32>
    %cst_18 = arith.constant 3.200000e+01 : f32
    %22 = vector.broadcast %cst_18 : f32 to vector<16x1xf32>
    %23 = arith.divf %21, %22 : vector<16x1xf32>
    %24 = vector.broadcast %16 : vector<16x1xf32> to vector<16x32xf32>
    %25 = arith.subf %12, %24 : vector<16x32xf32>
    %cst_19 = arith.constant 9.99999974E-6 : f32
    %26 = vector.broadcast %cst_19 : f32 to vector<16x1xf32>
    %27 = arith.addf %23, %26 : vector<16x1xf32>
    %28 = math.rsqrt %27 : vector<16x1xf32>
    %29 = vector.broadcast %28 : vector<16x1xf32> to vector<16x32xf32>
    %30 = arith.mulf %25, %29 : vector<16x32xf32>
    %31 = vector.broadcast %8 : vector<1x32xf32> to vector<16x32xf32>
    %32 = arith.mulf %30, %31 : vector<16x32xf32>
    %33 = vector.broadcast %9 : vector<1x32xf32> to vector<16x32xf32>
    %34 = arith.addf %32, %33 : vector<16x32xf32>
    %cst_20 = arith.constant dense<0.000000e+00> : vector<16x96xf32>
    %35 = tpu.matmul %34, %0, %cst_20 {dimension_numbers = #tpu.dot_dimension_numbers<[1], [0], [0], [1], [0, 0, 1, 1], [], []>, precision = #tpu.contract_precision<fp32>} : vector<16x32xf32>, vector<32x96xf32>, vector<16x96xf32> -> vector<16x96xf32>
    %36 = vector.broadcast %4 : vector<1x96xf32> to vector<16x96xf32>
    %37 = arith.addf %35, %36 : vector<16x96xf32>
    %38 = vector.shape_cast %37 : vector<16x96xf32> to vector<16x12x8xf32>
    %39 = tpu.transpose %38, [1, 0, 2] : vector<16x12x8xf32> -> vector<12x16x8xf32>
    %40 = vector.extract_strided_slice %39 {offsets = [0, 0, 0], sizes = [4, 16, 8], strides = [1, 1, 1]} : vector<12x16x8xf32> to vector<4x16x8xf32>
    %41 = vector.shape_cast %40 : vector<4x16x8xf32> to vector<64x8xf32>
    %42 = vector.extract_strided_slice %39 {offsets = [4, 0, 0], sizes = [4, 16, 8], strides = [1, 1, 1]} : vector<12x16x8xf32> to vector<4x16x8xf32>
    %43 = vector.shape_cast %42 : vector<4x16x8xf32> to vector<64x8xf32>
    %44 = vector.extract_strided_slice %39 {offsets = [8, 0, 0], sizes = [4, 16, 8], strides = [1, 1, 1]} : vector<12x16x8xf32> to vector<4x16x8xf32>
    %45 = vector.shape_cast %44 : vector<4x16x8xf32> to vector<64x8xf32>
    %cst_21 = arith.constant dense<0.000000e+00> : vector<64x64xf32>
    %46 = tpu.matmul %41, %43, %cst_21 {dimension_numbers = #tpu.dot_dimension_numbers<[1], [1], [0], [0], [0, 0, 1, 0], [], []>, precision = #tpu.contract_precision<fp32>} : vector<64x8xf32>, vector<64x8xf32>, vector<64x64xf32> -> vector<64x64xf32>
    %cst_22 = arith.constant 0.353553385 : f32
    %47 = vector.broadcast %cst_22 : f32 to vector<64x64xf32>
    %48 = arith.mulf %46, %47 : vector<64x64xf32>
    %c0_23 = arith.constant 0 : index
    %c0_24 = arith.constant 0 : index
    %49 = vector.load %arg2[%c0_23, %c0_24] : memref<64x64xf32, #tpu.memory_space<vmem>>, vector<64x64xf32>
    %cst_25 = arith.constant 0.000000e+00 : f32
    %50 = vector.broadcast %cst_25 : f32 to vector<64x64xf32>
    %51 = arith.cmpf oeq, %49, %50 : vector<64x64xf32>
    %52 = arith.select %51, %48, %49 : vector<64x64xi1>, vector<64x64xf32>
    %cst_26 = arith.constant dense<0xFF800000> : vector<64xf32>
    %53 = vector.multi_reduction <maximumf>, %52, %cst_26 [1] : vector<64x64xf32> to vector<64xf32>
    %54 = vector.shape_cast %53 : vector<64xf32> to vector<64x1xf32>
    %55 = vector.broadcast %54 : vector<64x1xf32> to vector<64x64xf32>
    %56 = arith.subf %52, %55 : vector<64x64xf32>
    %57 = math.exp %56 : vector<64x64xf32>
    %cst_27 = arith.constant dense<0.000000e+00> : vector<64xf32>
    %58 = vector.multi_reduction <add>, %57, %cst_27 [1] : vector<64x64xf32> to vector<64xf32>
    %59 = vector.shape_cast %58 : vector<64xf32> to vector<64x1xf32>
    %60 = vector.broadcast %59 : vector<64x1xf32> to vector<64x64xf32>
    %61 = arith.divf %57, %60 : vector<64x64xf32>
    %cst_28 = arith.constant dense<0.000000e+00> : vector<64x8xf32>
    %62 = tpu.matmul %61, %45, %cst_28 {dimension_numbers = #tpu.dot_dimension_numbers<[1], [0], [0], [1], [0, 0, 1, 1], [], []>, precision = #tpu.contract_precision<fp32>} : vector<64x64xf32>, vector<64x8xf32>, vector<64x8xf32> -> vector<64x8xf32>
    %63 = vector.shape_cast %62 : vector<64x8xf32> to vector<4x16x8xf32>
    %64 = tpu.transpose %63, [1, 0, 2] : vector<4x16x8xf32> -> vector<16x4x8xf32>
    %65 = vector.shape_cast %64 : vector<16x4x8xf32> to vector<16x32xf32>
    %cst_29 = arith.constant dense<0.000000e+00> : vector<16x32xf32>
    %66 = tpu.matmul %65, %1, %cst_29 {dimension_numbers = #tpu.dot_dimension_numbers<[1], [0], [0], [1], [0, 0, 1, 1], [], []>, precision = #tpu.contract_precision<fp32>} : vector<16x32xf32>, vector<32x32xf32>, vector<16x32xf32> -> vector<16x32xf32>
    %67 = vector.broadcast %5 : vector<1x32xf32> to vector<16x32xf32>
    %68 = arith.addf %66, %67 : vector<16x32xf32>
    %69 = arith.addf %34, %68 : vector<16x32xf32>
    %cst_30 = arith.constant dense<0.000000e+00> : vector<16xf32>
    %70 = vector.multi_reduction <add>, %69, %cst_30 [1] : vector<16x32xf32> to vector<16xf32>
    %71 = vector.shape_cast %70 : vector<16xf32> to vector<16x1xf32>
    %cst_31 = arith.constant 3.200000e+01 : f32
    %72 = vector.broadcast %cst_31 : f32 to vector<16x1xf32>
    %73 = arith.divf %71, %72 : vector<16x1xf32>
    %74 = vector.broadcast %73 : vector<16x1xf32> to vector<16x32xf32>
    %75 = arith.subf %69, %74 : vector<16x32xf32>
    %76 = arith.mulf %75, %75 : vector<16x32xf32>
    %cst_32 = arith.constant dense<0.000000e+00> : vector<16xf32>
    %77 = vector.multi_reduction <add>, %76, %cst_32 [1] : vector<16x32xf32> to vector<16xf32>
    %78 = vector.shape_cast %77 : vector<16xf32> to vector<16x1xf32>
    %cst_33 = arith.constant 3.200000e+01 : f32
    %79 = vector.broadcast %cst_33 : f32 to vector<16x1xf32>
    %80 = arith.divf %78, %79 : vector<16x1xf32>
    %81 = vector.broadcast %73 : vector<16x1xf32> to vector<16x32xf32>
    %82 = arith.subf %69, %81 : vector<16x32xf32>
    %cst_34 = arith.constant 9.99999974E-6 : f32
    %83 = vector.broadcast %cst_34 : f32 to vector<16x1xf32>
    %84 = arith.addf %80, %83 : vector<16x1xf32>
    %85 = math.rsqrt %84 : vector<16x1xf32>
    %86 = vector.broadcast %85 : vector<16x1xf32> to vector<16x32xf32>
    %87 = arith.mulf %82, %86 : vector<16x32xf32>
    %88 = vector.broadcast %10 : vector<1x32xf32> to vector<16x32xf32>
    %89 = arith.mulf %87, %88 : vector<16x32xf32>
    %90 = vector.broadcast %11 : vector<1x32xf32> to vector<16x32xf32>
    %91 = arith.addf %89, %90 : vector<16x32xf32>
    %cst_35 = arith.constant dense<0.000000e+00> : vector<16x64xf32>
    %92 = tpu.matmul %91, %2, %cst_35 {dimension_numbers = #tpu.dot_dimension_numbers<[1], [0], [0], [1], [0, 0, 1, 1], [], []>, precision = #tpu.contract_precision<fp32>} : vector<16x32xf32>, vector<32x64xf32>, vector<16x64xf32> -> vector<16x64xf32>
    %93 = vector.broadcast %6 : vector<1x64xf32> to vector<16x64xf32>
    %94 = arith.addf %92, %93 : vector<16x64xf32>
    %cst_36 = arith.constant 0.000000e+00 : f32
    %95 = vector.broadcast %cst_36 : f32 to vector<16x64xf32>
    %96 = arith.maximumf %94, %95 : vector<16x64xf32>
    %cst_37 = arith.constant dense<0.000000e+00> : vector<16x32xf32>
    %97 = tpu.matmul %96, %3, %cst_37 {dimension_numbers = #tpu.dot_dimension_numbers<[1], [0], [0], [1], [0, 0, 1, 1], [], []>, precision = #tpu.contract_precision<fp32>} : vector<16x64xf32>, vector<64x32xf32>, vector<16x32xf32> -> vector<16x32xf32>
    %98 = vector.broadcast %7 : vector<1x32xf32> to vector<16x32xf32>
    %99 = arith.addf %97, %98 : vector<16x32xf32>
    %100 = arith.addf %91, %99 : vector<16x32xf32>
    %c0_38 = arith.constant 0 : index
    %c0_39 = arith.constant 0 : index
    %101 = vector.load %arg6[%c0_38, %c0_39] : memref<16x32xf32, #tpu.memory_space<vmem>>, vector<16x32xf32>
    tpu.vector_store %arg6[%c0_38, %c0_39], %100 {strides = array<i32>} : memref<16x32xf32, #tpu.memory_space<vmem>>, vector<16x32xf32>,
    return
  }
  func.func @transform_0(%arg0: i32) -> (i32, i32) {
    %c0_i32 = arith.constant 0 : i32
    %c0_i32_0 = arith.constant 0 : i32
    %c0_i32_1 = arith.constant 0 : i32
    return %c0_i32, %c0_i32_0 : i32, i32
  }
  func.func @transform_1(%arg0: i32) -> (i32, i32) {
    %c0_i32 = arith.constant 0 : i32
    %c0_i32_0 = arith.constant 0 : i32
    %c0_i32_1 = arith.constant 0 : i32
    return %c0_i32, %c0_i32_0 : i32, i32
  }
  func.func @transform_2(%arg0: i32) -> (i32, i32) {
    %c0_i32 = arith.constant 0 : i32
    %c0_i32_0 = arith.constant 0 : i32
    %c0_i32_1 = arith.constant 0 : i32
    return %c0_i32, %c0_i32_0 : i32, i32
  }
  func.func @transform_3(%arg0: i32) -> (i32, i32) {
    %c0_i32 = arith.constant 0 : i32
    %c0_i32_0 = arith.constant 0 : i32
    %c0_i32_1 = arith.constant 0 : i32
    return %c0_i32, %c0_i32_0 : i32, i32
  }
  func.func @transform_4(%arg0: i32) -> (i32, i32) {
    %c0_i32 = arith.constant 0 : i32
    %c0_i32_0 = arith.constant 0 : i32
    %c0_i32_1 = arith.constant 0 : i32
    return %c0_i32, %c0_i32_0 : i32, i32
  }
  func.func @transform_5(%arg0: i32) -> (i32, i32) {
    %c0_i32 = arith.constant 0 : i32
    %c0_i32_0 = arith.constant 0 : i32
    %c0_i32_1 = arith.constant 0 : i32
    return %c0_i32, %c0_i32_0 : i32, i32
  }
}

</mosaic_0001>

<llo_original>
// kernel: tpu_custom_call.1
$region0: #{tpu_custom_call.1}
  #allocation0 [shape = 'u32[]', space=smem, size = 0x4, offset = 0x4, fixed_abs, tag = 'smem constant byte address 0x4 - core index']
  #allocation1 [shape = 'u32[144,128]{1,0:T(1,128)}', space=vmem, size = 0x12000, scoped, tag = 'internal scratch']
  %s0 = inlined_call_operand.vmem [shape: f32[16,32], index: 0, kind: input, shape index: {}]
  %s1 = inlined_call_operand.vmem [shape: f32[64,64], index: 1, kind: input, shape index: {}]
  %s2 = inlined_call_operand.hbm [shape: f32[32,192], index: 2, kind: input, shape index: {}]
  %s3 = inlined_call_operand.vmem [shape: f32[64,32], index: 3, kind: input, shape index: {}]
  %s4 = inlined_call_operand.vmem [shape: f32[8,128], index: 4, kind: input, shape index: {}]
  %s5 = inlined_call_operand.hbm [shape: f32[16,32], index: 5, kind: output, shape index: {}]
  %s6 = sld [smem:[#allocation0]]
  $region34: #{tpu_custom_call.1} parent=0
    _
  %s8 = ssub.s32 1, %s6
  %s9 = scalar_select 0, %s8, %s6
  $region1: #{tpu_custom_call.1} parent=0
    #allocation2 [shape = 'u8[32768]{0}', space=vmem, size = 0x8000, scoped, tag = 'input window, operand 2, single buffered']
    #allocation3 [shape = 's32[1]{0}', space=sflag, size = 0x4, scoped, tag = 'scoped memory for tpu_custom_call.1']
    #allocation4 [shape = 's32[1]{0}', space=sflag, size = 0x4, scoped, tag = 'scoped memory for tpu_custom_call.1']
    #allocation5 [shape = 'u8[8192]{0}', space=vmem, size = 0x2000, scoped, tag = 'output window, operand 0, single buffered']
    %10 = vsyncpa [#allocation3], 0
    %11 = vsyncpa [#allocation4], 0
    // Predicated region
    $region2: #{tpu_custom_call.1} parent=1 // pred_check
      _
    $region3: #{tpu_custom_call.1} parent=1 // pred_check_branch
      %13 = sbr.rel (0) target = $region5
    $region4: #{tpu_custom_call.1} parent=1 // pred_region
      _
    $region5: #{tpu_custom_call.1} parent=1 // pred_fallthru
      _
    // Predicated region
    $region6: #{tpu_custom_call.1} parent=1 // pred_check
      _
    $region7: #{tpu_custom_call.1} parent=1 // pred_check_branch
      %15 = sbr.rel (0) target = $region9
    $region8: #{tpu_custom_call.1} parent=1 // pred_region
      _
    $region9: #{tpu_custom_call.1} parent=1 // pred_fallthru
      _
    // Predicated region
    $region10: #{tpu_custom_call.1} parent=1 // pred_check
      _
    $region11: #{tpu_custom_call.1} parent=1 // pred_check_branch
      %17 = sbr.rel (0) target = $region13
    $region12: #{tpu_custom_call.1} parent=1 // pred_region
      %s19 = ssub.s32 1024, 1024
      %20 = vsyncadd [#allocation3], %s19
      %s21 = sshll.u32 [#allocation2], 4
      %s22 = int_to_ptr.vmem [resolvable:$true] %s21
      %27 = dma.hbm_to_vmem [thread:$0]  %s2, 1024, %s22, [#allocation3], 256, 256, 16
    $region13: #{tpu_custom_call.1} parent=1 // pred_fallthru
      _
    // Predicated region
    $region14: #{tpu_custom_call.1} parent=1 // pred_check
      _
    $region15: #{tpu_custom_call.1} parent=1 // pred_check_branch
      %29 = sbr.rel (0) target = $region17
    $region16: #{tpu_custom_call.1} parent=1 // pred_region
      _
    $region17: #{tpu_custom_call.1} parent=1 // pred_fallthru
      _
    // Predicated region
    $region18: #{tpu_custom_call.1} parent=1 // pred_check
      _
    $region19: #{tpu_custom_call.1} parent=1 // pred_check_branch
      %31 = sbr.rel (0) target = $region21
    $region20: #{tpu_custom_call.1} parent=1 // pred_region
      _
    $region21: #{tpu_custom_call.1} parent=1 // pred_fallthru
      _
    // Predicated region
    $region22: #{tpu_custom_call.1} parent=1 // pred_check
      _
    $region23: #{tpu_custom_call.1} parent=1 // pred_check_branch
      %33 = sbr.rel (0) target = $region25
    $region24: #{tpu_custom_call.1} parent=1 // pred_region
      %34 = dma.done [#allocation3], 1024
    $region25: #{tpu_custom_call.1} parent=1 // pred_fallthru
      _
    %v35 = vld [vmem:[#allocation2] sm:$0xff]
    %v36 = vld [vmem:[#allocation2 + $0x10] sm:$0xff]
    %v37 = vld [vmem:[#allocation2 + $0x20] sm:$0xff]
    %v38 = vld [vmem:[#allocation2 + $0x30] sm:$0xff]
    %v39 = vld [vmem:[#allocation2 + $0x8] sm:$0xff]
    %v40 = vld [vmem:[#allocation2 + $0x18] sm:$0xff]
    %v41 = vld [vmem:[#allocation2 + $0x28] sm:$0xff]
    %v42 = vld [vmem:[#allocation2 + $0x38] sm:$0xff]
    %v43 = vld [vmem:[%s3] sm:$0xff]
    %v44 = vld [vmem:[%s3 + $0x8] sm:$0xff]
    %v45 = vld [vmem:[%s3 + $0x10] sm:$0xff]
    %v46 = vld [vmem:[%s3 + $0x18] sm:$0xff]
    %v47 = vld [vmem:[%s3 + $0x20] sm:$0xff]
    %v48 = vld [vmem:[%s3 + $0x28] sm:$0xff]
    %v49 = vld [vmem:[%s3 + $0x30] sm:$0xff]
    %v50 = vld [vmem:[%s3 + $0x38] sm:$0xff]
    %v51 = vld [vmem:[%s4] sm:$0x1]
    %v52 = vld [vmem:[%s4 + $0x1] sm:$0x1]
    %v53 = vld [vmem:[%s4 + $0x2] sm:$0x1]
    %v54 = vld [vmem:[%s4 + $0x3] sm:$0x1]
    %v55 = vld [vmem:[%s4 + $0x4] sm:$0x1]
    %v56 = vld [vmem:[%s4 + $0x5] sm:$0x1]
    %v57 = vld [vmem:[%s4 + $0x6] sm:$0x1]
    %v58 = vld [vmem:[%s4 + $0x7] sm:$0x1]
    %v59 = vld [vmem:[%s0] sm:$0xff]
    %v60 = vld [vmem:[%s0 + $0x8] sm:$0xff]
    %vm61 = vcmask 261120
    %v62 = vsel %vm61, %v59, 0.0
    %63 = vadd.xlane.f32.xlu0 %v62
    %v64 = vpop.xlane.xlu0 %63
    %v65 = vsel %vm61, %v60, 0.0
    %66 = vadd.xlane.f32.xlu0 %v65
    %v67 = vpop.xlane.xlu0 %66
    %v68 = vrcp.pop 32.0
    %v69 = vmul.f32 %v64, %v68
    %v70 = vmul.f32 %v67, %v68
    %v71 = vsub.f32 %v59, %v69
    %v72 = vsub.f32 %v60, %v70
    %v73 = vmul.f32 %v71, %v71
    %v74 = vmul.f32 %v72, %v72
    %v75 = vsel %vm61, %v73, 0.0
    %76 = vadd.xlane.f32.xlu0 %v75
    %v77 = vpop.xlane.xlu0 %76
    %v78 = vsel %vm61, %v74, 0.0
    %79 = vadd.xlane.f32.xlu0 %v78
    %v80 = vpop.xlane.xlu0 %79
    %v81 = vmul.f32 %v77, %v68
    %v82 = vmul.f32 %v80, %v68
    %v83 = vadd.f32 %v81, 1e-05
    %v84 = vadd.f32 %v82, 1e-05
    %v85 = vrsqrt.pop %v83
    %v86 = vrsqrt.pop %v84
    %v87 = vmul.f32 %v71, %v85
    %v88 = vmul.f32 %v72, %v86
    %v89 = vlaneseq
    %v90 = vshrl.u32 %v89, 7
    %v91 = vsub.s32 0, %v90
    %v92 = vrot.slane %v55, %v91
    %v93 = vmul.f32 %v87, %v92
    %v94 = vmul.f32 %v88, %v92
    %v95 = vlaneseq
    %v96 = vshrl.u32 %v95, 7
    %v97 = vsub.s32 0, %v96
    %v98 = vrot.slane %v56, %v97
    %v99 = vadd.f32 %v93, %v98
    %v100 = vadd.f32 %v94, %v98
    %v101 = vlaneseq
    %v102 = vshrl.u32 %v101, 7
    %v103 = vsub.s32 0, %v102
    %v104 = vrot.slane %v51, %v103
    %v106 = vsel %vm61, %v99, 0
    %v109 = vsel %vm61, %v100, 0
    %111 = vmatprep.subr.mxu0 0.0
    %112 = vmatpush1.msra.mxu0 0.0
    %113 = vmatprep.subr.mxu0 0.0
    %114 = vmatpush1.msra.mxu0 0.0
    %115 = vmatprep.subr.mxu0 0.0
    %116 = vmatpush1.msra.mxu0 0.0
    %117 = vmatprep.subr.mxu0 0.0
    %118 = vmatpush1.msra.mxu0 0.0
    %119 = vmatprep.subr.mxu0 0.0
    %120 = vmatpush1.msra.mxu0 0.0
    %121 = vmatprep.subr.mxu0 0.0
    %122 = vmatpush1.msra.mxu0 0.0
    %123 = vmatprep.subr.mxu0 0.0
    %124 = vmatpush1.msra.mxu0 0.0
    %125 = vmatprep.subr.mxu0 0.0
    %126 = vmatpush1.msra.mxu0 0.0
    %127 = vmatprep.subr.mxu0 0.0
    %128 = vmatpush1.msra.mxu0 0.0
    %129 = vmatprep.subr.mxu0 0.0
    %130 = vmatpush1.msra.mxu0 0.0
    %131 = vmatprep.subr.mxu0 0.0
    %132 = vmatpush1.msra.mxu0 0.0
    %133 = vmatprep.subr.mxu0 0.0
    %134 = vmatpush1.msra.mxu0 0.0
    %135 = vmatprep.subr.mxu0 0.0
    %v136 = vand.u32 %v38, 4294901760
    %137 = vmatpush1.msra.mxu0 %v136
    %138 = vmatprep.subr.mxu0 0.0
    %v139 = vand.u32 %v37, 4294901760
    %140 = vmatpush1.msra.mxu0 %v139
    %141 = vmatprep.subr.mxu0 0.0
    %v142 = vand.u32 %v36, 4294901760
    %143 = vmatpush1.msra.mxu0 %v142
    %144 = vmatprep.subr.mxu0 0.0
    %v145 = vand.u32 %v35, 4294901760
    %146 = vmatpush1.msra.mxu0 %v145
    %147 = vmatprep.subr.mxu0 0.0
    %148 = vmatpush2.msra.mxu0 0.0
    %149 = vmatprep.subr.mxu0 0.0
    %150 = vmatpush2.msra.mxu0 0.0
    %151 = vmatprep.subr.mxu0 0.0
    %152 = vmatpush2.msra.mxu0 0.0
    %153 = vmatprep.subr.mxu0 0.0
    %154 = vmatpush2.msra.mxu0 0.0
    %155 = vmatprep.subr.mxu0 0.0
    %156 = vmatpush2.msra.mxu0 0.0
    %157 = vmatprep.subr.mxu0 0.0
    %158 = vmatpush2.msra.mxu0 0.0
    %159 = vmatprep.subr.mxu0 0.0
    %160 = vmatpush2.msra.mxu0 0.0
    %161 = vmatprep.subr.mxu0 0.0
    %162 = vmatpush2.msra.mxu0 0.0
    %163 = vmatprep.subr.mxu0 0.0
    %164 = vmatpush2.msra.mxu0 0.0
    %165 = vmatprep.subr.mxu0 0.0
    %166 = vmatpush2.msra.mxu0 0.0
    %167 = vmatprep.subr.mxu0 0.0
    %168 = vmatpush2.msra.mxu0 0.0
    %169 = vmatprep.subr.mxu0 0.0
    %170 = vmatpush2.msra.mxu0 0.0
    %171 = vmatprep.subr.mxu0 0.0
    %172 = vmatpush2.msra.mxu0 0.0
    %173 = vmatprep.subr.mxu0 0.0
    %174 = vmatpush2.msra.mxu0 0.0
    %175 = vmatprep.subr.mxu0 0.0
    %176 = vmatpush2.msra.mxu0 0.0
    %177 = vmatprep.subr.mxu0 0.0
    %178 = vmatpush2.msra.mxu0 0.0
    %179 = vmatprep.mubr.f32.mxu0 0.0
    %v180 = vand.u32 %v106, 4294901760
    %v181 = vsub.f32 %v106, %v180
    %v182 = vand.u32 %v181, 4294901760
    %v183 = vsub.f32 %v181, %v182
    %v184 = vand.u32 %v183, 4294901760
    %185 = vmatmul.mubr.f32.gmra.mxu0 %v184
    %v186 = vpop.f32.mrf.mxu0
    %v187 = vadd.f32 %v104, %v186
    %v188 = vpop.f32.mrf.mxu0
    %189 = vmatprep.mubr.f32.mxu0 0.0
    %v190 = vand.u32 %v109, 4294901760
    %v191 = vsub.f32 %v109, %v190
    %v192 = vand.u32 %v191, 4294901760
    %v193 = vsub.f32 %v191, %v192
    %v194 = vand.u32 %v193, 4294901760
    %195 = vmatmul.mubr.f32.gmra.mxu0 %v194
    %v196 = vpop.f32.mrf.mxu0
    %v197 = vadd.f32 %v104, %v196
    %v198 = vpop.f32.mrf.mxu0
    %199 = vdwg.mxu0
    %200 = vmatprep.subr.mxu0 0.0
    %201 = vmatpush1.msra.mxu0 0.0
    %202 = vmatprep.subr.mxu0 0.0
    %203 = vmatpush1.msra.mxu0 0.0
    %204 = vmatprep.subr.mxu0 0.0
    %205 = vmatpush1.msra.mxu0 0.0
    %206 = vmatprep.subr.mxu0 0.0
    %207 = vmatpush1.msra.mxu0 0.0
    %208 = vmatprep.subr.mxu0 0.0
    %209 = vmatpush1.msra.mxu0 0.0
    %210 = vmatprep.subr.mxu0 0.0
    %211 = vmatpush1.msra.mxu0 0.0
    %212 = vmatprep.subr.mxu0 0.0
    %213 = vmatpush1.msra.mxu0 0.0
    %214 = vmatprep.subr.mxu0 0.0
    %215 = vmatpush1.msra.mxu0 0.0
    %216 = vmatprep.subr.mxu0 0.0
    %217 = vmatpush1.msra.mxu0 0.0
    %218 = vmatprep.subr.mxu0 0.0
    %219 = vmatpush1.msra.mxu0 0.0
    %220 = vmatprep.subr.mxu0 0.0
    %221 = vmatpush1.msra.mxu0 0.0
    %222 = vmatprep.subr.mxu0 0.0
    %223 = vmatpush1.msra.mxu0 0.0
    %224 = vmatprep.subr.mxu0 0.0
    %v225 = vand.u32 %v38, 4294901760
    %v226 = vsub.f32 %v38, %v225
    %v227 = vand.u32 %v226, 4294901760
    %v228 = vsub.f32 %v226, %v227
    %v229 = vand.u32 %v228, 4294901760
    %230 = vmatpush1.msra.mxu0 %v229
    %231 = vmatprep.subr.mxu0 0.0
    %v232 = vand.u32 %v37, 4294901760
    %v233 = vsub.f32 %v37, %v232
    %v234 = vand.u32 %v233, 4294901760
    %v235 = vsub.f32 %v233, %v234
    %v236 = vand.u32 %v235, 4294901760
    %237 = vmatpush1.msra.mxu0 %v236
    %238 = vmatprep.subr.mxu0 0.0
    %v239 = vand.u32 %v36, 4294901760
    %v240 = vsub.f32 %v36, %v239
    %v241 = vand.u32 %v240, 4294901760
    %v242 = vsub.f32 %v240, %v241
    %v243 = vand.u32 %v242, 4294901760
    %244 = vmatpush1.msra.mxu0 %v243
    %245 = vmatprep.subr.mxu0 0.0
    %v246 = vand.u32 %v35, 4294901760
    %v247 = vsub.f32 %v35, %v246
    %v248 = vand.u32 %v247, 4294901760
    %v249 = vsub.f32 %v247, %v248
    %v250 = vand.u32 %v249, 4294901760
    %251 = vmatpush1.msra.mxu0 %v250
    %252 = vmatprep.subr.mxu0 0.0
    %253 = vmatpush2.msra.mxu0 0.0
    %254 = vmatprep.subr.mxu0 0.0
    %255 = vmatpush2.msra.mxu0 0.0
    %256 = vmatprep.subr.mxu0 0.0
    %257 = vmatpush2.msra.mxu0 0.0
    %258 = vmatprep.subr.mxu0 0.0
    %259 = vmatpush2.msra.mxu0 0.0
    %260 = vmatprep.subr.mxu0 0.0
    %261 = vmatpush2.msra.mxu0 0.0
    %262 = vmatprep.subr.mxu0 0.0
    %263 = vmatpush2.msra.mxu0 0.0
    %264 = vmatprep.subr.mxu0 0.0
    %265 = vmatpush2.msra.mxu0 0.0
    %266 = vmatprep.subr.mxu0 0.0
    %267 = vmatpush2.msra.mxu0 0.0
    %268 = vmatprep.subr.mxu0 0.0
    %269 = vmatpush2.msra.mxu0 0.0
    %270 = vmatprep.subr.mxu0 0.0
    %271 = vmatpush2.msra.mxu0 0.0
    %272 = vmatprep.subr.mxu0 0.0
    %273 = vmatpush2.msra.mxu0 0.0
    %274 = vmatprep.subr.mxu0 0.0
    %275 = vmatpush2.msra.mxu0 0.0
    %276 = vmatprep.subr.mxu0 0.0
    %277 = vmatpush2.msra.mxu0 0.0
    %278 = vmatprep.subr.mxu0 0.0
    %279 = vmatpush2.msra.mxu0 0.0
    %280 = vmatprep.subr.mxu0 0.0
    %281 = vmatpush2.msra.mxu0 0.0
    %282 = vmatprep.subr.mxu0 0.0
    %283 = vmatpush2.msra.mxu0 0.0
    %284 = vmatprep.mubr.f32.mxu0 0.0
    %v285 = vand.u32 %v106, 4294901760
    %286 = vmatmul.mubr.f32.gmra.mxu0 %v285
    %v287 = vpop.f32.mrf.mxu0
    %v288 = vadd.f32 %v187, %v287
    %v289 = vpop.f32.mrf.mxu0
    %290 = vmatprep.mubr.f32.mxu0 0.0
    %v291 = vand.u32 %v109, 4294901760
    %292 = vmatmul.mubr.f32.gmra.mxu0 %v291
    %v293 = vpop.f32.mrf.mxu0
    %v294 = vadd.f32 %v197, %v293
    %v295 = vpop.f32.mrf.mxu0
    %296 = vdwg.mxu0
    %297 = vmatprep.subr.mxu0 0.0
    %298 = vmatpush1.msra.mxu0 0.0
    %299 = vmatprep.subr.mxu0 0.0
    %300 = vmatpush1.msra.mxu0 0.0
    %301 = vmatprep.subr.mxu0 0.0
    %302 = vmatpush1.msra.mxu0 0.0
    %303 = vmatprep.subr.mxu0 0.0
    %304 = vmatpush1.msra.mxu0 0.0
    %305 = vmatprep.subr.mxu0 0.0
    %306 = vmatpush1.msra.mxu0 0.0
    %307 = vmatprep.subr.mxu0 0.0
    %308 = vmatpush1.msra.mxu0 0.0
    %309 = vmatprep.subr.mxu0 0.0
    %310 = vmatpush1.msra.mxu0 0.0
    %311 = vmatprep.subr.mxu0 0.0
    %312 = vmatpush1.msra.mxu0 0.0
    %313 = vmatprep.subr.mxu0 0.0
    %314 = vmatpush1.msra.mxu0 0.0
    %315 = vmatprep.subr.mxu0 0.0
    %316 = vmatpush1.msra.mxu0 0.0
    %317 = vmatprep.subr.mxu0 0.0
    %318 = vmatpush1.msra.mxu0 0.0
    %319 = vmatprep.subr.mxu0 0.0
    %320 = vmatpush1.msra.mxu0 0.0
    %321 = vmatprep.subr.mxu0 0.0
    %v322 = vand.u32 %v38, 4294901760
    %v323 = vsub.f32 %v38, %v322
    %324 = vmatpush1.msra.mxu0 %v323
    %325 = vmatprep.subr.mxu0 0.0
    %v326 = vand.u32 %v37, 4294901760
    %v327 = vsub.f32 %v37, %v326
    %328 = vmatpush1.msra.mxu0 %v327
    %329 = vmatprep.subr.mxu0 0.0
    %v330 = vand.u32 %v36, 4294901760
    %v331 = vsub.f32 %v36, %v330
    %332 = vmatpush1.msra.mxu0 %v331
    %333 = vmatprep.subr.mxu0 0.0
    %v334 = vand.u32 %v35, 4294901760
    %v335 = vsub.f32 %v35, %v334
    %336 = vmatpush1.msra.mxu0 %v335
    %337 = vmatprep.subr.mxu0 0.0
    %338 = vmatpush2.msra.mxu0 0.0
    %339 = vmatprep.subr.mxu0 0.0
    %340 = vmatpush2.msra.mxu0 0.0
    %341 = vmatprep.subr.mxu0 0.0
    %342 = vmatpush2.msra.mxu0 0.0
    %343 = vmatprep.subr.mxu0 0.0
    %344 = vmatpush2.msra.mxu0 0.0
    %345 = vmatprep.subr.mxu0 0.0
    %346 = vmatpush2.msra.mxu0 0.0
    %347 = vmatprep.subr.mxu0 0.0
    %348 = vmatpush2.msra.mxu0 0.0
    %349 = vmatprep.subr.mxu0 0.0
    %350 = vmatpush2.msra.mxu0 0.0
    %351 = vmatprep.subr.mxu0 0.0
    %352 = vmatpush2.msra.mxu0 0.0
    %353 = vmatprep.subr.mxu0 0.0
    %354 = vmatpush2.msra.mxu0 0.0
    %355 = vmatprep.subr.mxu0 0.0
    %356 = vmatpush2.msra.mxu0 0.0
    %357 = vmatprep.subr.mxu0 0.0
    %358 = vmatpush2.msra.mxu0 0.0
    %359 = vmatprep.subr.mxu0 0.0
    %360 = vmatpush2.msra.mxu0 0.0
    %361 = vmatprep.subr.mxu0 0.0
    %362 = vmatpush2.msra.mxu0 0.0
    %363 = vmatprep.subr.mxu0 0.0
    %364 = vmatpush2.msra.mxu0 0.0
    %365 = vmatprep.subr.mxu0 0.0
    %366 = vmatpush2.msra.mxu0 0.0
    %367 = vmatprep.subr.mxu0 0.0
    %368 = vmatpush2.msra.mxu0 0.0
    %369 = vmatprep.mubr.f32.mxu0 0.0
    %v370 = vand.u32 %v106, 4294901760
    %v371 = vsub.f32 %v106, %v370
    %372 = vmatmul.mubr.f32.gmra.mxu0 %v371
    %v373 = vpop.f32.mrf.mxu0
    %v374 = vadd.f32 %v288, %v373
    %v375 = vpop.f32.mrf.mxu0
    %376 = vmatprep.mubr.f32.mxu0 0.0
    %v377 = vand.u32 %v109, 4294901760
    %v378 = vsub.f32 %v109, %v377
    %379 = vmatmul.mubr.f32.gmra.mxu0 %v378
    %v380 = vpop.f32.mrf.mxu0
    %v381 = vadd.f32 %v294, %v380
    %v382 = vpop.f32.mrf.mxu0
    %383 = vdwg.mxu0
    %384 = vmatprep.subr.mxu0 0.0
    %385 = vmatpush1.msra.mxu0 0.0
    %386 = vmatprep.subr.mxu0 0.0
    %387 = vmatpush1.msra.mxu0 0.0
    %388 = vmatprep.subr.mxu0 0.0
    %389 = vmatpush1.msra.mxu0 0.0
    %390 = vmatprep.subr.mxu0 0.0
    %391 = vmatpush1.msra.mxu0 0.0
    %392 = vmatprep.subr.mxu0 0.0
    %393 = vmatpush1.msra.mxu0 0.0
    %394 = vmatprep.subr.mxu0 0.0
    %395 = vmatpush1.msra.mxu0 0.0
    %396 = vmatprep.subr.mxu0 0.0
    %397 = vmatpush1.msra.mxu0 0.0
    %398 = vmatprep.subr.mxu0 0.0
    %399 = vmatpush1.msra.mxu0 0.0
    %400 = vmatprep.subr.mxu0 0.0
    %401 = vmatpush1.msra.mxu0 0.0
    %402 = vmatprep.subr.mxu0 0.0
    %403 = vmatpush1.msra.mxu0 0.0
    %404 = vmatprep.subr.mxu0 0.0
    %405 = vmatpush1.msra.mxu0 0.0
    %406 = vmatprep.subr.mxu0 0.0
    %407 = vmatpush1.msra.mxu0 0.0
    %408 = vmatprep.subr.mxu0 0.0
    %v409 = vand.u32 %v38, 4294901760
    %410 = vmatpush1.msra.mxu0 %v409
    %411 = vmatprep.subr.mxu0 0.0
    %v412 = vand.u32 %v37, 4294901760
    %413 = vmatpush1.msra.mxu0 %v412
    %414 = vmatprep.subr.mxu0 0.0
    %v415 = vand.u32 %v36, 4294901760
    %416 = vmatpush1.msra.mxu0 %v415
    %417 = vmatprep.subr.mxu0 0.0
    %v418 = vand.u32 %v35, 4294901760
    %419 = vmatpush1.msra.mxu0 %v418
    %420 = vmatprep.subr.mxu0 0.0
    %421 = vmatpush2.msra.mxu0 0.0
    %422 = vmatprep.subr.mxu0 0.0
    %423 = vmatpush2.msra.mxu0 0.0
    %424 = vmatprep.subr.mxu0 0.0
    %425 = vmatpush2.msra.mxu0 0.0
    %426 = vmatprep.subr.mxu0 0.0
    %427 = vmatpush2.msra.mxu0 0.0
    %428 = vmatprep.subr.mxu0 0.0
    %429 = vmatpush2.msra.mxu0 0.0
    %430 = vmatprep.subr.mxu0 0.0
    %431 = vmatpush2.msra.mxu0 0.0
    %432 = vmatprep.subr.mxu0 0.0
    %433 = vmatpush2.msra.mxu0 0.0
    %434 = vmatprep.subr.mxu0 0.0
    %435 = vmatpush2.msra.mxu0 0.0
    %436 = vmatprep.subr.mxu0 0.0
    %437 = vmatpush2.msra.mxu0 0.0
    %438 = vmatprep.subr.mxu0 0.0
    %439 = vmatpush2.msra.mxu0 0.0
    %440 = vmatprep.subr.mxu0 0.0
    %441 = vmatpush2.msra.mxu0 0.0
    %442 = vmatprep.subr.mxu0 0.0
    %443 = vmatpush2.msra.mxu0 0.0
    %444 = vmatprep.subr.mxu0 0.0
    %445 = vmatpush2.msra.mxu0 0.0
    %446 = vmatprep.subr.mxu0 0.0
    %447 = vmatpush2.msra.mxu0 0.0
    %448 = vmatprep.subr.mxu0 0.0
    %449 = vmatpush2.msra.mxu0 0.0
    %450 = vmatprep.subr.mxu0 0.0
    %451 = vmatpush2.msra.mxu0 0.0
    %452 = vmatprep.mubr.f32.mxu0 0.0
    %v453 = vand.u32 %v106, 4294901760
    %v454 = vsub.f32 %v106, %v453
    %v455 = vand.u32 %v454, 4294901760
    %456 = vmatmul.mubr.f32.gmra.mxu0 %v455
    %v457 = vpop.f32.mrf.mxu0
    %v458 = vadd.f32 %v374, %v457
    %v459 = vpop.f32.mrf.mxu0
    %460 = vmatprep.mubr.f32.mxu0 0.0
    %v461 = vand.u32 %v109, 4294901760
    %v462 = vsub.f32 %v109, %v461
    %v463 = vand.u32 %v462, 4294901760
    %464 = vmatmul.mubr.f32.gmra.mxu0 %v463
    %v465 = vpop.f32.mrf.mxu0
    %v466 = vadd.f32 %v381, %v465
    %v467 = vpop.f32.mrf.mxu0
    %468 = vdwg.mxu0
    %469 = vmatprep.subr.mxu0 0.0
    %470 = vmatpush1.msra.mxu0 0.0
    %471 = vmatprep.subr.mxu0 0.0
    %472 = vmatpush1.msra.mxu0 0.0
    %473 = vmatprep.subr.mxu0 0.0
    %474 = vmatpush1.msra.mxu0 0.0
    %475 = vmatprep.subr.mxu0 0.0
    %476 = vmatpush1.msra.mxu0 0.0
    %477 = vmatprep.subr.mxu0 0.0
    %478 = vmatpush1.msra.mxu0 0.0
    %479 = vmatprep.subr.mxu0 0.0
    %480 = vmatpush1.msra.mxu0 0.0
    %481 = vmatprep.subr.mxu0 0.0
    %482 = vmatpush1.msra.mxu0 0.0
    %483 = vmatprep.subr.mxu0 0.0
    %484 = vmatpush1.msra.mxu0 0.0
    %485 = vmatprep.subr.mxu0 0.0
    %486 = vmatpush1.msra.mxu0 0.0
    %487 = vmatprep.subr.mxu0 0.0
    %488 = vmatpush1.msra.mxu0 0.0
    %489 = vmatprep.subr.mxu0 0.0
    %490 = vmatpush1.msra.mxu0 0.0
    %491 = vmatprep.subr.mxu0 0.0
    %492 = vmatpush1.msra.mxu0 0.0
    %493 = vmatprep.subr.mxu0 0.0
    %v494 = vand.u32 %v38, 4294901760
    %v495 = vsub.f32 %v38, %v494
    %v496 = vand.u32 %v495, 4294901760
    %497 = vmatpush1.msra.mxu0 %v496
    %498 = vmatprep.subr.mxu0 0.0
    %v499 = vand.u32 %v37, 4294901760
    %v500 = vsub.f32 %v37, %v499
    %v501 = vand.u32 %v500, 4294901760
    %502 = vmatpush1.msra.mxu0 %v501
    %503 = vmatprep.subr.mxu0 0.0
    %v504 = vand.u32 %v36, 4294901760
    %v505 = vsub.f32 %v36, %v504
    %v506 = vand.u32 %v505, 4294901760
    %507 = vmatpush1.msra.mxu0 %v506
    %508 = vmatprep.subr.mxu0 0.0
    %v509 = vand.u32 %v35, 4294901760
    %v510 = vsub.f32 %v35, %v509
    %v511 = vand.u32 %v510, 4294901760
    %512 = vmatpush1.msra.mxu0 %v511
    %513 = vmatprep.subr.mxu0 0.0
    %514 = vmatpush2.msra.mxu0 0.0
    %515 = vmatprep.subr.mxu0 0.0
    %516 = vmatpush2.msra.mxu0 0.0
    %517 = vmatprep.subr.mxu0 0.0
    %518 = vmatpush2.msra.mxu0 0.0
    %519 = vmatprep.subr.mxu0 0.0
    %520 = vmatpush2.msra.mxu0 0.0
    %521 = vmatprep.subr.mxu0 0.0
    %522 = vmatpush2.msra.mxu0 0.0
    %523 = vmatprep.subr.mxu0 0.0
    %524 = vmatpush2.msra.mxu0 0.0
    %525 = vmatprep.subr.mxu0 0.0
    %526 = vmatpush2.msra.mxu0 0.0
    %527 = vmatprep.subr.mxu0 0.0
    %528 = vmatpush2.msra.mxu0 0.0
    %529 = vmatprep.subr.mxu0 0.0
    %530 = vmatpush2.msra.mxu0 0.0
    %531 = vmatprep.subr.mxu0 0.0
    %532 = vmatpush2.msra.mxu0 0.0
    %533 = vmatprep.subr.mxu0 0.0
    %534 = vmatpush2.msra.mxu0 0.0
    %535 = vmatprep.subr.mxu0 0.0
    %536 = vmatpush2.msra.mxu0 0.0
    %537 = vmatprep.subr.mxu0 0.0
    %538 = vmatpush2.msra.mxu0 0.0
    %539 = vmatprep.subr.mxu0 0.0
    %540 = vmatpush2.msra.mxu0 0.0
    %541 = vmatprep.subr.mxu0 0.0
    %542 = vmatpush2.msra.mxu0 0.0
    %543 = vmatprep.subr.mxu0 0.0
    %544 = vmatpush2.msra.mxu0 0.0
    %545 = vmatprep.mubr.f32.mxu0 0.0
    %v546 = vand.u32 %v106, 4294901760
    %547 = vmatmul.mubr.f32.gmra.mxu0 %v546
    %v548 = vpop.f32.mrf.mxu0
    %v549 = vadd.f32 %v458, %v548
    %v550 = vpop.f32.mrf.mxu0
    %551 = vmatprep.mubr.f32.mxu0 0.0
    %v552 = vand.u32 %v109, 4294901760
    %553 = vmatmul.mubr.f32.gmra.mxu0 %v552
    %v554 = vpop.f32.mrf.mxu0
    %v555 = vadd.f32 %v466, %v554
    %v556 = vpop.f32.mrf.mxu0
    %557 = vdwg.mxu0
    %558 = vmatprep.subr.mxu0 0.0
    %559 = vmatpush1.msra.mxu0 0.0
    %560 = vmatprep.subr.mxu0 0.0
    %561 = vmatpush1.msra.mxu0 0.0
    %562 = vmatprep.subr.mxu0 0.0
    %563 = vmatpush1.msra.mxu0 0.0
    %564 = vmatprep.subr.mxu0 0.0
    %565 = vmatpush1.msra.mxu0 0.0
    %566 = vmatprep.subr.mxu0 0.0
    %567 = vmatpush1.msra.mxu0 0.0
    %568 = vmatprep.subr.mxu0 0.0
    %569 = vmatpush1.msra.mxu0 0.0
    %570 = vmatprep.subr.mxu0 0.0
    %571 = vmatpush1.msra.mxu0 0.0
    %572 = vmatprep.subr.mxu0 0.0
    %573 = vmatpush1.msra.mxu0 0.0
    %574 = vmatprep.subr.mxu0 0.0
    %575 = vmatpush1.msra.mxu0 0.0
    %576 = vmatprep.subr.mxu0 0.0
    %577 = vmatpush1.msra.mxu0 0.0
    %578 = vmatprep.subr.mxu0 0.0
    %579 = vmatpush1.msra.mxu0 0.0
    %580 = vmatprep.subr.mxu0 0.0
    %581 = vmatpush1.msra.mxu0 0.0
    %582 = vmatprep.subr.mxu0 0.0
    %v583 = vand.u32 %v38, 4294901760
    %584 = vmatpush1.msra.mxu0 %v583
    %585 = vmatprep.subr.mxu0 0.0
    %v586 = vand.u32 %v37, 4294901760
    %587 = vmatpush1.msra.mxu0 %v586
    %588 = vmatprep.subr.mxu0 0.0
    %v589 = vand.u32 %v36, 4294901760
    %590 = vmatpush1.msra.mxu0 %v589
    %591 = vmatprep.subr.mxu0 0.0
    %v592 = vand.u32 %v35, 4294901760
    %593 = vmatpush1.msra.mxu0 %v592
    %594 = vmatprep.subr.mxu0 0.0
    %595 = vmatpush2.msra.mxu0 0.0
    %596 = vmatprep.subr.mxu0 0.0
    %597 = vmatpush2.msra.mxu0 0.0
    %598 = vmatprep.subr.mxu0 0.0
    %599 = vmatpush2.msra.mxu0 0.0
    %600 = vmatprep.subr.mxu0 0.0
    %601 = vmatpush2.msra.mxu0 0.0
    %602 = vmatprep.subr.mxu0 0.0
    %603 = vmatpush2.msra.mxu0 0.0
    %604 = vmatprep.subr.mxu0 0.0
    %605 = vmatpush2.msra.mxu0 0.0
    %606 = vmatprep.subr.mxu0 0.0
    %607 = vmatpush2.msra.mxu0 0.0
    %608 = vmatprep.subr.mxu0 0.0
    %609 = vmatpush2.msra.mxu0 0.0
    %610 = vmatprep.subr.mxu0 0.0
    %611 = vmatpush2.msra.mxu0 0.0
    %612 = vmatprep.subr.mxu0 0.0
    %613 = vmatpush2.msra.mxu0 0.0
    %614 = vmatprep.subr.mxu0 0.0
    %615 = vmatpush2.msra.mxu0 0.0
    %616 = vmatprep.subr.mxu0 0.0
    %617 = vmatpush2.msra.mxu0 0.0
    %618 = vmatprep.subr.mxu0 0.0
    %619 = vmatpush2.msra.mxu0 0.0
    %620 = vmatprep.subr.mxu0 0.0
    %621 = vmatpush2.msra.mxu0 0.0
    %622 = vmatprep.subr.mxu0 0.0
    %623 = vmatpush2.msra.mxu0 0.0
    %624 = vmatprep.subr.mxu0 0.0
    %625 = vmatpush2.msra.mxu0 0.0
    %626 = vmatprep.mubr.f32.mxu0 0.0
    %v627 = vand.u32 %v106, 4294901760
    %628 = vmatmul.mubr.f32.gmra.mxu0 %v627
    %v629 = vpop.f32.mrf.mxu0
    %v630 = vadd.f32 %v549, %v629
    %v631 = vpop.f32.mrf.mxu0
    %632 = vmatprep.mubr.f32.mxu0 0.0
    %v633 = vand.u32 %v109, 4294901760
    %634 = vmatmul.mubr.f32.gmra.mxu0 %v633
    %v635 = vpop.f32.mrf.mxu0
    %v636 = vadd.f32 %v555, %v635
    %v637 = vpop.f32.mrf.mxu0
    %638 = vdwg.mxu0
    %641 = vrot.lane.b32.xlu0 %v630, 120
    %v642 = vpop.permute.xlu0 %641
    %643 = vrot.lane.b32.xlu0 %v636, 120
    %v644 = vpop.permute.xlu0 %643
    %647 = vrot.lane.b32.xlu0 %v630, 112
    %v648 = vpop.permute.xlu0 %647
    %649 = vrot.lane.b32.xlu0 %v636, 112
    %v650 = vpop.permute.xlu0 %649
    %653 = vrot.lane.b32.xlu0 %v630, 104
    %v654 = vpop.permute.xlu0 %653
    %655 = vrot.lane.b32.xlu0 %v636, 104
    %v656 = vpop.permute.xlu0 %655
    %659 = vrot.lane.b32.xlu0 %v630, 96
    %v660 = vpop.permute.xlu0 %659
    %661 = vrot.lane.b32.xlu0 %v636, 96
    %v662 = vpop.permute.xlu0 %661
    %665 = vrot.lane.b32.xlu0 %v630, 88
    %v666 = vpop.permute.xlu0 %665
    %667 = vrot.lane.b32.xlu0 %v636, 88
    %v668 = vpop.permute.xlu0 %667
    %671 = vrot.lane.b32.xlu0 %v630, 80
    %v672 = vpop.permute.xlu0 %671
    %673 = vrot.lane.b32.xlu0 %v636, 80
    %v674 = vpop.permute.xlu0 %673
    %677 = vrot.lane.b32.xlu0 %v630, 72
    %v678 = vpop.permute.xlu0 %677
    %679 = vrot.lane.b32.xlu0 %v636, 72
    %v680 = vpop.permute.xlu0 %679
    %683 = vrot.lane.b32.xlu0 %v630, 64
    %v684 = vpop.permute.xlu0 %683
    %685 = vrot.lane.b32.xlu0 %v636, 64
    %v686 = vpop.permute.xlu0 %685
    %689 = vrot.lane.b32.xlu0 %v630, 56
    %v690 = vpop.permute.xlu0 %689
    %691 = vrot.lane.b32.xlu0 %v636, 56
    %v692 = vpop.permute.xlu0 %691
    %695 = vrot.lane.b32.xlu0 %v630, 48
    %v696 = vpop.permute.xlu0 %695
    %697 = vrot.lane.b32.xlu0 %v636, 48
    %v698 = vpop.permute.xlu0 %697
    %701 = vrot.lane.b32.xlu0 %v630, 40
    %v702 = vpop.permute.xlu0 %701
    %703 = vrot.lane.b32.xlu0 %v636, 40
    %v704 = vpop.permute.xlu0 %703
    %v707 = vcombine.low %v630, %v648
    %v708 = vcombine.high %v630, %v648
    %v710 = vunpack.c.l.s4 1983009808
    %v711 = vunpack.c.0.s8 %v710
    %v712 = vlaneseq
    %v713 = vshrl.u32 %v712, 7
    %v714 = vsub.s32 %v711, %v713
    %v715 = vrot.slane %v707, %v714
    %v717 = vunpack.c.l.s4 1983009808
    %v718 = vunpack.c.0.s8 %v717
    %v719 = vlaneseq
    %v720 = vshrl.u32 %v719, 7
    %v721 = vsub.s32 %v718, %v720
    %v722 = vrot.slane %v708, %v721
    %v723 = vcombine.low %v642, %v654
    %v724 = vcombine.high %v642, %v654
    %v726 = vunpack.c.l.s4 1983009808
    %v727 = vunpack.c.0.s8 %v726
    %v728 = vlaneseq
    %v729 = vshrl.u32 %v728, 7
    %v730 = vsub.s32 %v727, %v729
    %v731 = vrot.slane %v723, %v730
    %v733 = vunpack.c.l.s4 1983009808
    %v734 = vunpack.c.0.s8 %v733
    %v735 = vlaneseq
    %v736 = vshrl.u32 %v735, 7
    %v737 = vsub.s32 %v734, %v736
    %v738 = vrot.slane %v724, %v737
    %v739 = vcombine.low %v660, %v672
    %v740 = vcombine.high %v660, %v672
    %v742 = vunpack.c.l.s4 1983009808
    %v743 = vunpack.c.0.s8 %v742
    %v744 = vlaneseq
    %v745 = vshrl.u32 %v744, 7
    %v746 = vsub.s32 %v743, %v745
    %v747 = vrot.slane %v739, %v746
    %v749 = vunpack.c.l.s4 1983009808
    %v750 = vunpack.c.0.s8 %v749
    %v751 = vlaneseq
    %v752 = vshrl.u32 %v751, 7
    %v753 = vsub.s32 %v750, %v752
    %v754 = vrot.slane %v740, %v753
    %v755 = vcombine.low %v666, %v678
    %v756 = vcombine.high %v666, %v678
    %v758 = vunpack.c.l.s4 1983009808
    %v759 = vunpack.c.0.s8 %v758
    %v760 = vlaneseq
    %v761 = vshrl.u32 %v760, 7
    %v762 = vsub.s32 %v759, %v761
    %v763 = vrot.slane %v755, %v762
    %v765 = vunpack.c.l.s4 1983009808
    %v766 = vunpack.c.0.s8 %v765
    %v767 = vlaneseq
    %v768 = vshrl.u32 %v767, 7
    %v769 = vsub.s32 %v766, %v768
    %v770 = vrot.slane %v756, %v769
    %v771 = vcombine.low %v715, %v731
    %v772 = vcombine.high %v715, %v731
    %v774 = vunpack.c.l.s4 1934713408
    %v775 = vunpack.c.0.s8 %v774
    %v776 = vlaneseq
    %v777 = vshrl.u32 %v776, 7
    %v778 = vsub.s32 %v775, %v777
    %v779 = vrot.slane %v771, %v778
    %v781 = vunpack.c.l.s4 1934713408
    %v782 = vunpack.c.0.s8 %v781
    %v783 = vlaneseq
    %v784 = vshrl.u32 %v783, 7
    %v785 = vsub.s32 %v782, %v784
    %v786 = vrot.slane %v772, %v785
    %v787 = vcombine.low %v722, %v738
    %v788 = vcombine.high %v722, %v738
    %v790 = vunpack.c.l.s4 1934713408
    %v791 = vunpack.c.0.s8 %v790
    %v792 = vlaneseq
    %v793 = vshrl.u32 %v792, 7
    %v794 = vsub.s32 %v791, %v793
    %v795 = vrot.slane %v787, %v794
    %v797 = vunpack.c.l.s4 1934713408
    %v798 = vunpack.c.0.s8 %v797
    %v799 = vlaneseq
    %v800 = vshrl.u32 %v799, 7
    %v801 = vsub.s32 %v798, %v800
    %v802 = vrot.slane %v788, %v801
    %v803 = vcombine.low %v747, %v763
    %v804 = vcombine.high %v747, %v763
    %v806 = vunpack.c.l.s4 1934713408
    %v807 = vunpack.c.0.s8 %v806
    %v808 = vlaneseq
    %v809 = vshrl.u32 %v808, 7
    %v810 = vsub.s32 %v807, %v809
    %v811 = vrot.slane %v803, %v810
    %v813 = vunpack.c.l.s4 1934713408
    %v814 = vunpack.c.0.s8 %v813
    %v815 = vlaneseq
    %v816 = vshrl.u32 %v815, 7
    %v817 = vsub.s32 %v814, %v816
    %v818 = vrot.slane %v804, %v817
    %v819 = vcombine.low %v754, %v770
    %v820 = vcombine.high %v754, %v770
    %v822 = vunpack.c.l.s4 1934713408
    %v823 = vunpack.c.0.s8 %v822
    %v824 = vlaneseq
    %v825 = vshrl.u32 %v824, 7
    %v826 = vsub.s32 %v823, %v825
    %v827 = vrot.slane %v819, %v826
    %v829 = vunpack.c.l.s4 1934713408
    %v830 = vunpack.c.0.s8 %v829
    %v831 = vlaneseq
    %v832 = vshrl.u32 %v831, 7
    %v833 = vsub.s32 %v830, %v832
    %v834 = vrot.slane %v820, %v833
    %v835 = vcombine.low %v779, %v811
    %v836 = vcombine.high %v779, %v811
    %v837 = vcombine.low %v786, %v818
    %v838 = vcombine.high %v786, %v818
    %v839 = vcombine.low %v795, %v827
    %v840 = vcombine.high %v795, %v827
    %v841 = vcombine.low %v802, %v834
    %v842 = vcombine.high %v802, %v834
    %v843 = vcombine.low %v684, %v696
    %v844 = vcombine.high %v684, %v696
    %v846 = vunpack.c.l.s4 1983009808
    %v847 = vunpack.c.0.s8 %v846
    %v848 = vlaneseq
    %v849 = vshrl.u32 %v848, 7
    %v850 = vsub.s32 %v847, %v849
    %v851 = vrot.slane %v843, %v850
    %v853 = vunpack.c.l.s4 1983009808
    %v854 = vunpack.c.0.s8 %v853
    %v855 = vlaneseq
    %v856 = vshrl.u32 %v855, 7
    %v857 = vsub.s32 %v854, %v856
    %v858 = vrot.slane %v844, %v857
    %v859 = vcombine.low %v690, %v702
    %v860 = vcombine.high %v690, %v702
    %v862 = vunpack.c.l.s4 1983009808
    %v863 = vunpack.c.0.s8 %v862
    %v864 = vlaneseq
    %v865 = vshrl.u32 %v864, 7
    %v866 = vsub.s32 %v863, %v865
    %v867 = vrot.slane %v859, %v866
    %v869 = vunpack.c.l.s4 1983009808
    %v870 = vunpack.c.0.s8 %v869
    %v871 = vlaneseq
    %v872 = vshrl.u32 %v871, 7
    %v873 = vsub.s32 %v870, %v872
    %v874 = vrot.slane %v860, %v873
    %v875 = vcombine.low %v851, %v867
    %v876 = vcombine.high %v851, %v867
    %v878 = vunpack.c.l.s4 1934713408
    %v879 = vunpack.c.0.s8 %v878
    %v880 = vlaneseq
    %v881 = vshrl.u32 %v880, 7
    %v882 = vsub.s32 %v879, %v881
    %v883 = vrot.slane %v875, %v882
    %v885 = vunpack.c.l.s4 1934713408
    %v886 = vunpack.c.0.s8 %v885
    %v887 = vlaneseq
    %v888 = vshrl.u32 %v887, 7
    %v889 = vsub.s32 %v886, %v888
    %v890 = vrot.slane %v876, %v889
    %v891 = vcombine.low %v858, %v874
    %v892 = vcombine.high %v858, %v874
    %v894 = vunpack.c.l.s4 1934713408
    %v895 = vunpack.c.0.s8 %v894
    %v896 = vlaneseq
    %v897 = vshrl.u32 %v896, 7
    %v898 = vsub.s32 %v895, %v897
    %v899 = vrot.slane %v891, %v898
    %v901 = vunpack.c.l.s4 1934713408
    %v902 = vunpack.c.0.s8 %v901
    %v903 = vlaneseq
    %v904 = vshrl.u32 %v903, 7
    %v905 = vsub.s32 %v902, %v904
    %v906 = vrot.slane %v892, %v905
    %v907 = vcombine.high %v883, 0.0
    %v908 = vcombine.high %v890, 0.0
    %v909 = vcombine.high %v899, 0.0
    %v910 = vcombine.high %v906, 0.0
    %v911 = vcombine.low %v636, %v650
    %v912 = vcombine.high %v636, %v650
    %v914 = vunpack.c.l.s4 1983009808
    %v915 = vunpack.c.0.s8 %v914
    %v916 = vlaneseq
    %v917 = vshrl.u32 %v916, 7
    %v918 = vsub.s32 %v915, %v917
    %v919 = vrot.slane %v911, %v918
    %v921 = vunpack.c.l.s4 1983009808
    %v922 = vunpack.c.0.s8 %v921
    %v923 = vlaneseq
    %v924 = vshrl.u32 %v923, 7
    %v925 = vsub.s32 %v922, %v924
    %v926 = vrot.slane %v912, %v925
    %v927 = vcombine.low %v644, %v656
    %v928 = vcombine.high %v644, %v656
    %v930 = vunpack.c.l.s4 1983009808
    %v931 = vunpack.c.0.s8 %v930
    %v932 = vlaneseq
    %v933 = vshrl.u32 %v932, 7
    %v934 = vsub.s32 %v931, %v933
    %v935 = vrot.slane %v927, %v934
    %v937 = vunpack.c.l.s4 1983009808
    %v938 = vunpack.c.0.s8 %v937
    %v939 = vlaneseq
    %v940 = vshrl.u32 %v939, 7
    %v941 = vsub.s32 %v938, %v940
    %v942 = vrot.slane %v928, %v941
    %v943 = vcombine.low %v662, %v674
    %v944 = vcombine.high %v662, %v674
    %v946 = vunpack.c.l.s4 1983009808
    %v947 = vunpack.c.0.s8 %v946
    %v948 = vlaneseq
    %v949 = vshrl.u32 %v948, 7
    %v950 = vsub.s32 %v947, %v949
    %v951 = vrot.slane %v943, %v950
    %v953 = vunpack.c.l.s4 1983009808
    %v954 = vunpack.c.0.s8 %v953
    %v955 = vlaneseq
    %v956 = vshrl.u32 %v955, 7
    %v957 = vsub.s32 %v954, %v956
    %v958 = vrot.slane %v944, %v957
    %v959 = vcombine.low %v668, %v680
    %v960 = vcombine.high %v668, %v680
    %v962 = vunpack.c.l.s4 1983009808
    %v963 = vunpack.c.0.s8 %v962
    %v964 = vlaneseq
    %v965 = vshrl.u32 %v964, 7
    %v966 = vsub.s32 %v963, %v965
    %v967 = vrot.slane %v959, %v966
    %v969 = vunpack.c.l.s4 1983009808
    %v970 = vunpack.c.0.s8 %v969
    %v971 = vlaneseq
    %v972 = vshrl.u32 %v971, 7
    %v973 = vsub.s32 %v970, %v972
    %v974 = vrot.slane %v960, %v973
    %v975 = vcombine.low %v919, %v935
    %v976 = vcombine.high %v919, %v935
    %v978 = vunpack.c.l.s4 1934713408
    %v979 = vunpack.c.0.s8 %v978
    %v980 = vlaneseq
    %v981 = vshrl.u32 %v980, 7
    %v982 = vsub.s32 %v979, %v981
    %v983 = vrot.slane %v975, %v982
    %v985 = vunpack.c.l.s4 1934713408
    %v986 = vunpack.c.0.s8 %v985
    %v987 = vlaneseq
    %v988 = vshrl.u32 %v987, 7
    %v989 = vsub.s32 %v986, %v988
    %v990 = vrot.slane %v976, %v989
    %v991 = vcombine.low %v926, %v942
    %v992 = vcombine.high %v926, %v942
    %v994 = vunpack.c.l.s4 1934713408
    %v995 = vunpack.c.0.s8 %v994
    %v996 = vlaneseq
    %v997 = vshrl.u32 %v996, 7
    %v998 = vsub.s32 %v995, %v997
    %v999 = vrot.slane %v991, %v998
    %v1001 = vunpack.c.l.s4 1934713408
    %v1002 = vunpack.c.0.s8 %v1001
    %v1003 = vlaneseq
    %v1004 = vshrl.u32 %v1003, 7
    %v1005 = vsub.s32 %v1002, %v1004
    %v1006 = vrot.slane %v992, %v1005
    %v1007 = vcombine.low %v951, %v967
    %v1008 = vcombine.high %v951, %v967
    %v1010 = vunpack.c.l.s4 1934713408
    %v1011 = vunpack.c.0.s8 %v1010
    %v1012 = vlaneseq
    %v1013 = vshrl.u32 %v1012, 7
    %v1014 = vsub.s32 %v1011, %v1013
    %v1015 = vrot.slane %v1007, %v1014
    %v1017 = vunpack.c.l.s4 1934713408
    %v1018 = vunpack.c.0.s8 %v1017
    %v1019 = vlaneseq
    %v1020 = vshrl.u32 %v1019, 7
    %v1021 = vsub.s32 %v1018, %v1020
    %v1022 = vrot.slane %v1008, %v1021
    %v1023 = vcombine.low %v958, %v974
    %v1024 = vcombine.high %v958, %v974
    %v1026 = vunpack.c.l.s4 1934713408
    %v1027 = vunpack.c.0.s8 %v1026
    %v1028 = vlaneseq
    %v1029 = vshrl.u32 %v1028, 7
    %v1030 = vsub.s32 %v1027, %v1029
    %v1031 = vrot.slane %v1023, %v1030
    %v1033 = vunpack.c.l.s4 1934713408
    %v1034 = vunpack.c.0.s8 %v1033
    %v1035 = vlaneseq
    %v1036 = vshrl.u32 %v1035, 7
    %v1037 = vsub.s32 %v1034, %v1036
    %v1038 = vrot.slane %v1024, %v1037
    %v1039 = vcombine.low %v983, %v1015
    %v1040 = vcombine.high %v983, %v1015
    %v1041 = vcombine.low %v990, %v1022
    %v1042 = vcombine.high %v990, %v1022
    %v1043 = vcombine.low %v999, %v1031
    %v1044 = vcombine.high %v999, %v1031
    %v1045 = vcombine.low %v1006, %v1038
    %v1046 = vcombine.high %v1006, %v1038
    %v1047 = vcombine.low %v686, %v698
    %v1048 = vcombine.high %v686, %v698
    %v1050 = vunpack.c.l.s4 1983009808
    %v1051 = vunpack.c.0.s8 %v1050
    %v1052 = vlaneseq
    %v1053 = vshrl.u32 %v1052, 7
    %v1054 = vsub.s32 %v1051, %v1053
    %v1055 = vrot.slane %v1047, %v1054
    %v1057 = vunpack.c.l.s4 1983009808
    %v1058 = vunpack.c.0.s8 %v1057
    %v1059 = vlaneseq
    %v1060 = vshrl.u32 %v1059, 7
    %v1061 = vsub.s32 %v1058, %v1060
    %v1062 = vrot.slane %v1048, %v1061
    %v1063 = vcombine.low %v692, %v704
    %v1064 = vcombine.high %v692, %v704
    %v1066 = vunpack.c.l.s4 1983009808
    %v1067 = vunpack.c.0.s8 %v1066
    %v1068 = vlaneseq
    %v1069 = vshrl.u32 %v1068, 7
    %v1070 = vsub.s32 %v1067, %v1069
    %v1071 = vrot.slane %v1063, %v1070
    %v1073 = vunpack.c.l.s4 1983009808
    %v1074 = vunpack.c.0.s8 %v1073
    %v1075 = vlaneseq
    %v1076 = vshrl.u32 %v1075, 7
    %v1077 = vsub.s32 %v1074, %v1076
    %v1078 = vrot.slane %v1064, %v1077
    %v1079 = vcombine.low %v1055, %v1071
    %v1080 = vcombine.high %v1055, %v1071
    %v1082 = vunpack.c.l.s4 1934713408
    %v1083 = vunpack.c.0.s8 %v1082
    %v1084 = vlaneseq
    %v1085 = vshrl.u32 %v1084, 7
    %v1086 = vsub.s32 %v1083, %v1085
    %v1087 = vrot.slane %v1079, %v1086
    %v1089 = vunpack.c.l.s4 1934713408
    %v1090 = vunpack.c.0.s8 %v1089
    %v1091 = vlaneseq
    %v1092 = vshrl.u32 %v1091, 7
    %v1093 = vsub.s32 %v1090, %v1092
    %v1094 = vrot.slane %v1080, %v1093
    %v1095 = vcombine.low %v1062, %v1078
    %v1096 = vcombine.high %v1062, %v1078
    %v1098 = vunpack.c.l.s4 1934713408
    %v1099 = vunpack.c.0.s8 %v1098
    %v1100 = vlaneseq
    %v1101 = vshrl.u32 %v1100, 7
    %v1102 = vsub.s32 %v1099, %v1101
    %v1103 = vrot.slane %v1095, %v1102
    %v1105 = vunpack.c.l.s4 1934713408
    %v1106 = vunpack.c.0.s8 %v1105
    %v1107 = vlaneseq
    %v1108 = vshrl.u32 %v1107, 7
    %v1109 = vsub.s32 %v1106, %v1108
    %v1110 = vrot.slane %v1096, %v1109
    %v1111 = vcombine.high %v1087, 0.0
    %v1112 = vcombine.high %v1094, 0.0
    %v1113 = vcombine.high %v1103, 0.0
    %v1114 = vcombine.high %v1110, 0.0
    %v1115 = vcombine.low %v835, %v837
    %v1116 = vcombine.high %v835, %v837
    %v1118 = vunpack.c.l.s4 1983009808
    %v1119 = vunpack.c.0.s8 %v1118
    %v1120 = vlaneseq
    %v1121 = vshrl.u32 %v1120, 7
    %v1122 = vsub.s32 %v1119, %v1121
    %v1123 = vrot.slane %v1115, %v1122
    %v1125 = vunpack.c.l.s4 1983009808
    %v1126 = vunpack.c.0.s8 %v1125
    %v1127 = vlaneseq
    %v1128 = vshrl.u32 %v1127, 7
    %v1129 = vsub.s32 %v1126, %v1128
    %v1130 = vrot.slane %v1116, %v1129
    %v1131 = vcombine.low %v836, %v838
    %v1132 = vcombine.high %v836, %v838
    %v1134 = vunpack.c.l.s4 1983009808
    %v1135 = vunpack.c.0.s8 %v1134
    %v1136 = vlaneseq
    %v1137 = vshrl.u32 %v1136, 7
    %v1138 = vsub.s32 %v1135, %v1137
    %v1139 = vrot.slane %v1131, %v1138
    %v1141 = vunpack.c.l.s4 1983009808
    %v1142 = vunpack.c.0.s8 %v1141
    %v1143 = vlaneseq
    %v1144 = vshrl.u32 %v1143, 7
    %v1145 = vsub.s32 %v1142, %v1144
    %v1146 = vrot.slane %v1132, %v1145
    %v1147 = vcombine.low %v839, %v841
    %v1148 = vcombine.high %v839, %v841
    %v1150 = vunpack.c.l.s4 1983009808
    %v1151 = vunpack.c.0.s8 %v1150
    %v1152 = vlaneseq
    %v1153 = vshrl.u32 %v1152, 7
    %v1154 = vsub.s32 %v1151, %v1153
    %v1155 = vrot.slane %v1147, %v1154
    %v1157 = vunpack.c.l.s4 1983009808
    %v1158 = vunpack.c.0.s8 %v1157
    %v1159 = vlaneseq
    %v1160 = vshrl.u32 %v1159, 7
    %v1161 = vsub.s32 %v1158, %v1160
    %v1162 = vrot.slane %v1148, %v1161
    %v1163 = vcombine.low %v840, %v842
    %v1164 = vcombine.high %v840, %v842
    %v1166 = vunpack.c.l.s4 1983009808
    %v1167 = vunpack.c.0.s8 %v1166
    %v1168 = vlaneseq
    %v1169 = vshrl.u32 %v1168, 7
    %v1170 = vsub.s32 %v1167, %v1169
    %v1171 = vrot.slane %v1163, %v1170
    %v1173 = vunpack.c.l.s4 1983009808
    %v1174 = vunpack.c.0.s8 %v1173
    %v1175 = vlaneseq
    %v1176 = vshrl.u32 %v1175, 7
    %v1177 = vsub.s32 %v1174, %v1176
    %v1178 = vrot.slane %v1164, %v1177
    %v1179 = vcombine.low %v1123, %v1139
    %v1180 = vcombine.high %v1123, %v1139
    %v1182 = vunpack.c.l.s4 1934713408
    %v1183 = vunpack.c.0.s8 %v1182
    %v1184 = vlaneseq
    %v1185 = vshrl.u32 %v1184, 7
    %v1186 = vsub.s32 %v1183, %v1185
    %v1187 = vrot.slane %v1179, %v1186
    %v1189 = vunpack.c.l.s4 1934713408
    %v1190 = vunpack.c.0.s8 %v1189
    %v1191 = vlaneseq
    %v1192 = vshrl.u32 %v1191, 7
    %v1193 = vsub.s32 %v1190, %v1192
    %v1194 = vrot.slane %v1180, %v1193
    %v1195 = vcombine.low %v1130, %v1146
    %v1196 = vcombine.high %v1130, %v1146
    %v1198 = vunpack.c.l.s4 1934713408
    %v1199 = vunpack.c.0.s8 %v1198
    %v1200 = vlaneseq
    %v1201 = vshrl.u32 %v1200, 7
    %v1202 = vsub.s32 %v1199, %v1201
    %v1203 = vrot.slane %v1195, %v1202
    %v1205 = vunpack.c.l.s4 1934713408
    %v1206 = vunpack.c.0.s8 %v1205
    %v1207 = vlaneseq
    %v1208 = vshrl.u32 %v1207, 7
    %v1209 = vsub.s32 %v1206, %v1208
    %v1210 = vrot.slane %v1196, %v1209
    %v1211 = vcombine.low %v1155, %v1171
    %v1212 = vcombine.high %v1155, %v1171
    %v1214 = vunpack.c.l.s4 1934713408
    %v1215 = vunpack.c.0.s8 %v1214
    %v1216 = vlaneseq
    %v1217 = vshrl.u32 %v1216, 7
    %v1218 = vsub.s32 %v1215, %v1217
    %v1219 = vrot.slane %v1211, %v1218
    %v1221 = vunpack.c.l.s4 1934713408
    %v1222 = vunpack.c.0.s8 %v1221
    %v1223 = vlaneseq
    %v1224 = vshrl.u32 %v1223, 7
    %v1225 = vsub.s32 %v1222, %v1224
    %v1226 = vrot.slane %v1212, %v1225
    %v1227 = vcombine.low %v1162, %v1178
    %v1228 = vcombine.high %v1162, %v1178
    %v1230 = vunpack.c.l.s4 1934713408
    %v1231 = vunpack.c.0.s8 %v1230
    %v1232 = vlaneseq
    %v1233 = vshrl.u32 %v1232, 7
    %v1234 = vsub.s32 %v1231, %v1233
    %v1235 = vrot.slane %v1227, %v1234
    %v1237 = vunpack.c.l.s4 1934713408
    %v1238 = vunpack.c.0.s8 %v1237
    %v1239 = vlaneseq
    %v1240 = vshrl.u32 %v1239, 7
    %v1241 = vsub.s32 %v1238, %v1240
    %v1242 = vrot.slane %v1228, %v1241
    %v1243 = vcombine.low %v1187, %v1219
    %v1244 = vcombine.high %v1187, %v1219
    %v1245 = vcombine.low %v1194, %v1226
    %v1246 = vcombine.high %v1194, %v1226
    %v1247 = vcombine.low %v1203, %v1235
    %v1248 = vcombine.high %v1203, %v1235
    %v1249 = vcombine.low %v1210, %v1242
    %v1250 = vcombine.high %v1210, %v1242
    %v1251 = vcombine.low %v1039, %v1041
    %v1252 = vcombine.high %v1039, %v1041
    %v1254 = vunpack.c.l.s4 1983009808
    %v1255 = vunpack.c.0.s8 %v1254
    %v1256 = vlaneseq
    %v1257 = vshrl.u32 %v1256, 7
    %v1258 = vsub.s32 %v1255, %v1257
    %v1259 = vrot.slane %v1251, %v1258
    %v1261 = vunpack.c.l.s4 1983009808
    %v1262 = vunpack.c.0.s8 %v1261
    %v1263 = vlaneseq
    %v1264 = vshrl.u32 %v1263, 7
    %v1265 = vsub.s32 %v1262, %v1264
    %v1266 = vrot.slane %v1252, %v1265
    %v1267 = vcombine.low %v1040, %v1042
    %v1268 = vcombine.high %v1040, %v1042
    %v1270 = vunpack.c.l.s4 1983009808
    %v1271 = vunpack.c.0.s8 %v1270
    %v1272 = vlaneseq
    %v1273 = vshrl.u32 %v1272, 7
    %v1274 = vsub.s32 %v1271, %v1273
    %v1275 = vrot.slane %v1267, %v1274
    %v1277 = vunpack.c.l.s4 1983009808
    %v1278 = vunpack.c.0.s8 %v1277
    %v1279 = vlaneseq
    %v1280 = vshrl.u32 %v1279, 7
    %v1281 = vsub.s32 %v1278, %v1280
    %v1282 = vrot.slane %v1268, %v1281
    %v1283 = vcombine.low %v1043, %v1045
    %v1284 = vcombine.high %v1043, %v1045
    %v1286 = vunpack.c.l.s4 1983009808
    %v1287 = vunpack.c.0.s8 %v1286
    %v1288 = vlaneseq
    %v1289 = vshrl.u32 %v1288, 7
    %v1290 = vsub.s32 %v1287, %v1289
    %v1291 = vrot.slane %v1283, %v1290
    %v1293 = vunpack.c.l.s4 1983009808
    %v1294 = vunpack.c.0.s8 %v1293
    %v1295 = vlaneseq
    %v1296 = vshrl.u32 %v1295, 7
    %v1297 = vsub.s32 %v1294, %v1296
    %v1298 = vrot.slane %v1284, %v1297
    %v1299 = vcombine.low %v1044, %v1046
    %v1300 = vcombine.high %v1044, %v1046
    %v1302 = vunpack.c.l.s4 1983009808
    %v1303 = vunpack.c.0.s8 %v1302
    %v1304 = vlaneseq
    %v1305 = vshrl.u32 %v1304, 7
    %v1306 = vsub.s32 %v1303, %v1305
    %v1307 = vrot.slane %v1299, %v1306
    %v1309 = vunpack.c.l.s4 1983009808
    %v1310 = vunpack.c.0.s8 %v1309
    %v1311 = vlaneseq
    %v1312 = vshrl.u32 %v1311, 7
    %v1313 = vsub.s32 %v1310, %v1312
    %v1314 = vrot.slane %v1300, %v1313
    %v1315 = vcombine.low %v1259, %v1275
    %v1316 = vcombine.high %v1259, %v1275
    %v1318 = vunpack.c.l.s4 1934713408
    %v1319 = vunpack.c.0.s8 %v1318
    %v1320 = vlaneseq
    %v1321 = vshrl.u32 %v1320, 7
    %v1322 = vsub.s32 %v1319, %v1321
    %v1323 = vrot.slane %v1315, %v1322
    %v1325 = vunpack.c.l.s4 1934713408
    %v1326 = vunpack.c.0.s8 %v1325
    %v1327 = vlaneseq
    %v1328 = vshrl.u32 %v1327, 7
    %v1329 = vsub.s32 %v1326, %v1328
    %v1330 = vrot.slane %v1316, %v1329
    %v1331 = vcombine.low %v1266, %v1282
    %v1332 = vcombine.high %v1266, %v1282
    %v1334 = vunpack.c.l.s4 1934713408
    %v1335 = vunpack.c.0.s8 %v1334
    %v1336 = vlaneseq
    %v1337 = vshrl.u32 %v1336, 7
    %v1338 = vsub.s32 %v1335, %v1337
    %v1339 = vrot.slane %v1331, %v1338
    %v1341 = vunpack.c.l.s4 1934713408
    %v1342 = vunpack.c.0.s8 %v1341
    %v1343 = vlaneseq
    %v1344 = vshrl.u32 %v1343, 7
    %v1345 = vsub.s32 %v1342, %v1344
    %v1346 = vrot.slane %v1332, %v1345
    %v1347 = vcombine.low %v1291, %v1307
    %v1348 = vcombine.high %v1291, %v1307
    %v1350 = vunpack.c.l.s4 1934713408
    %v1351 = vunpack.c.0.s8 %v1350
    %v1352 = vlaneseq
    %v1353 = vshrl.u32 %v1352, 7
    %v1354 = vsub.s32 %v1351, %v1353
    %v1355 = vrot.slane %v1347, %v1354
    %v1357 = vunpack.c.l.s4 1934713408
    %v1358 = vunpack.c.0.s8 %v1357
    %v1359 = vlaneseq
    %v1360 = vshrl.u32 %v1359, 7
    %v1361 = vsub.s32 %v1358, %v1360
    %v1362 = vrot.slane %v1348, %v1361
    %v1363 = vcombine.low %v1298, %v1314
    %v1364 = vcombine.high %v1298, %v1314
    %v1366 = vunpack.c.l.s4 1934713408
    %v1367 = vunpack.c.0.s8 %v1366
    %v1368 = vlaneseq
    %v1369 = vshrl.u32 %v1368, 7
    %v1370 = vsub.s32 %v1367, %v1369
    %v1371 = vrot.slane %v1363, %v1370
    %v1373 = vunpack.c.l.s4 1934713408
    %v1374 = vunpack.c.0.s8 %v1373
    %v1375 = vlaneseq
    %v1376 = vshrl.u32 %v1375, 7
    %v1377 = vsub.s32 %v1374, %v1376
    %v1378 = vrot.slane %v1364, %v1377
    %v1379 = vcombine.low %v1323, %v1355
    %v1380 = vcombine.high %v1323, %v1355
    %v1381 = vcombine.low %v1330, %v1362
    %v1382 = vcombine.high %v1330, %v1362
    %v1383 = vcombine.low %v1339, %v1371
    %v1384 = vcombine.high %v1339, %v1371
    %v1385 = vcombine.low %v1346, %v1378
    %v1386 = vcombine.high %v1346, %v1378
    %v1387 = vcombine.low %v883, %v890
    %v1389 = vunpack.c.l.s4 1983009808
    %v1390 = vunpack.c.0.s8 %v1389
    %v1391 = vlaneseq
    %v1392 = vshrl.u32 %v1391, 7
    %v1393 = vsub.s32 %v1390, %v1392
    %v1394 = vrot.slane %v1387, %v1393
    %v1395 = vcombine.low %v907, %v908
    %v1397 = vunpack.c.l.s4 1983009808
    %v1398 = vunpack.c.0.s8 %v1397
    %v1399 = vlaneseq
    %v1400 = vshrl.u32 %v1399, 7
    %v1401 = vsub.s32 %v1398, %v1400
    %v1402 = vrot.slane %v1395, %v1401
    %v1403 = vcombine.low %v899, %v906
    %v1405 = vunpack.c.l.s4 1983009808
    %v1406 = vunpack.c.0.s8 %v1405
    %v1407 = vlaneseq
    %v1408 = vshrl.u32 %v1407, 7
    %v1409 = vsub.s32 %v1406, %v1408
    %v1410 = vrot.slane %v1403, %v1409
    %v1411 = vcombine.low %v909, %v910
    %v1413 = vunpack.c.l.s4 1983009808
    %v1414 = vunpack.c.0.s8 %v1413
    %v1415 = vlaneseq
    %v1416 = vshrl.u32 %v1415, 7
    %v1417 = vsub.s32 %v1414, %v1416
    %v1418 = vrot.slane %v1411, %v1417
    %v1419 = vcombine.low %v1394, %v1402
    %v1420 = vcombine.high %v1394, %v1402
    %v1422 = vunpack.c.l.s4 1934713408
    %v1423 = vunpack.c.0.s8 %v1422
    %v1424 = vlaneseq
    %v1425 = vshrl.u32 %v1424, 7
    %v1426 = vsub.s32 %v1423, %v1425
    %v1427 = vrot.slane %v1419, %v1426
    %v1429 = vunpack.c.l.s4 1934713408
    %v1430 = vunpack.c.0.s8 %v1429
    %v1431 = vlaneseq
    %v1432 = vshrl.u32 %v1431, 7
    %v1433 = vsub.s32 %v1430, %v1432
    %v1434 = vrot.slane %v1420, %v1433
    %v1435 = vcombine.low %v1410, %v1418
    %v1436 = vcombine.high %v1410, %v1418
    %v1438 = vunpack.c.l.s4 1934713408
    %v1439 = vunpack.c.0.s8 %v1438
    %v1440 = vlaneseq
    %v1441 = vshrl.u32 %v1440, 7
    %v1442 = vsub.s32 %v1439, %v1441
    %v1443 = vrot.slane %v1435, %v1442
    %v1445 = vunpack.c.l.s4 1934713408
    %v1446 = vunpack.c.0.s8 %v1445
    %v1447 = vlaneseq
    %v1448 = vshrl.u32 %v1447, 7
    %v1449 = vsub.s32 %v1446, %v1448
    %v1450 = vrot.slane %v1436, %v1449
    %v1451 = vcombine.low %v1427, %v1443
    %v1452 = vcombine.high %v1427, %v1443
    %v1453 = vcombine.low %v1434, %v1450
    %v1454 = vcombine.high %v1434, %v1450
    %v1455 = vcombine.low %v1087, %v1094
    %v1457 = vunpack.c.l.s4 1983009808
    %v1458 = vunpack.c.0.s8 %v1457
    %v1459 = vlaneseq
    %v1460 = vshrl.u32 %v1459, 7
    %v1461 = vsub.s32 %v1458, %v1460
    %v1462 = vrot.slane %v1455, %v1461
    %v1463 = vcombine.low %v1111, %v1112
    %v1465 = vunpack.c.l.s4 1983009808
    %v1466 = vunpack.c.0.s8 %v1465
    %v1467 = vlaneseq
    %v1468 = vshrl.u32 %v1467, 7
    %v1469 = vsub.s32 %v1466, %v1468
    %v1470 = vrot.slane %v1463, %v1469
    %v1471 = vcombine.low %v1103, %v1110
    %v1473 = vunpack.c.l.s4 1983009808
    %v1474 = vunpack.c.0.s8 %v1473
    %v1475 = vlaneseq
    %v1476 = vshrl.u32 %v1475, 7
    %v1477 = vsub.s32 %v1474, %v1476
    %v1478 = vrot.slane %v1471, %v1477
    %v1479 = vcombine.low %v1113, %v1114
    %v1481 = vunpack.c.l.s4 1983009808
    %v1482 = vunpack.c.0.s8 %v1481
    %v1483 = vlaneseq
    %v1484 = vshrl.u32 %v1483, 7
    %v1485 = vsub.s32 %v1482, %v1484
    %v1486 = vrot.slane %v1479, %v1485
    %v1487 = vcombine.low %v1462, %v1470
    %v1488 = vcombine.high %v1462, %v1470
    %v1490 = vunpack.c.l.s4 1934713408
    %v1491 = vunpack.c.0.s8 %v1490
    %v1492 = vlaneseq
    %v1493 = vshrl.u32 %v1492, 7
    %v1494 = vsub.s32 %v1491, %v1493
    %v1495 = vrot.slane %v1487, %v1494
    %v1497 = vunpack.c.l.s4 1934713408
    %v1498 = vunpack.c.0.s8 %v1497
    %v1499 = vlaneseq
    %v1500 = vshrl.u32 %v1499, 7
    %v1501 = vsub.s32 %v1498, %v1500
    %v1502 = vrot.slane %v1488, %v1501
    %v1503 = vcombine.low %v1478, %v1486
    %v1504 = vcombine.high %v1478, %v1486
    %v1506 = vunpack.c.l.s4 1934713408
    %v1507 = vunpack.c.0.s8 %v1506
    %v1508 = vlaneseq
    %v1509 = vshrl.u32 %v1508, 7
    %v1510 = vsub.s32 %v1507, %v1509
    %v1511 = vrot.slane %v1503, %v1510
    %v1513 = vunpack.c.l.s4 1934713408
    %v1514 = vunpack.c.0.s8 %v1513
    %v1515 = vlaneseq
    %v1516 = vshrl.u32 %v1515, 7
    %v1517 = vsub.s32 %v1514, %v1516
    %v1518 = vrot.slane %v1504, %v1517
    %v1519 = vcombine.low %v1495, %v1511
    %v1520 = vcombine.high %v1495, %v1511
    %v1521 = vcombine.low %v1502, %v1518
    %v1522 = vcombine.high %v1502, %v1518
    %vm1523 = vcmask 64512
    %v1525 = vsel %vm1523, %v1243, 0
    %v1528 = vsel %vm1523, %v1379, 0
    %v1531 = vsel %vm1523, %v1244, 0
    %v1534 = vsel %vm1523, %v1380, 0
    %v1537 = vsel %vm1523, %v1245, 0
    %v1540 = vsel %vm1523, %v1381, 0
    %v1543 = vsel %vm1523, %v1246, 0
    %v1546 = vsel %vm1523, %v1382, 0
    %v1549 = vsel %vm1523, %v1247, 0
    %v1552 = vsel %vm1523, %v1383, 0
    %v1555 = vsel %vm1523, %v1248, 0
    %v1558 = vsel %vm1523, %v1384, 0
    %v1561 = vsel %vm1523, %v1249, 0
    %v1564 = vsel %vm1523, %v1385, 0
    %v1567 = vsel %vm1523, %v1250, 0
    %v1570 = vsel %vm1523, %v1386, 0
    %1572 = vmatprep.subr.mxu0 0.0
    %1573 = vmatpush1.xpose.msra.mxu0 0.0
    %1574 = vmatprep.subr.mxu0 0.0
    %1575 = vmatpush1.xpose.msra.mxu0 0.0
    %1576 = vmatprep.subr.mxu0 0.0
    %1577 = vmatpush1.xpose.msra.mxu0 0.0
    %1578 = vmatprep.subr.mxu0 0.0
    %1579 = vmatpush1.xpose.msra.mxu0 0.0
    %1580 = vmatprep.subr.mxu0 0.0
    %1581 = vmatpush1.xpose.msra.mxu0 0.0
    %1582 = vmatprep.subr.mxu0 0.0
    %1583 = vmatpush1.xpose.msra.mxu0 0.0
    %1584 = vmatprep.subr.mxu0 0.0
    %1585 = vmatpush1.xpose.msra.mxu0 0.0
    %1586 = vmatprep.subr.mxu0 0.0
    %1587 = vmatpush1.xpose.msra.mxu0 0.0
    %1588 = vmatprep.subr.mxu0 0.0
    %v1589 = vand.u32 %v1570, 4294901760
    %1590 = vmatpush1.xpose.msra.mxu0 %v1589
    %1591 = vmatprep.subr.mxu0 0.0
    %v1592 = vand.u32 %v1567, 4294901760
    %1593 = vmatpush1.xpose.msra.mxu0 %v1592
    %1594 = vmatprep.subr.mxu0 0.0
    %v1595 = vand.u32 %v1564, 4294901760
    %1596 = vmatpush1.xpose.msra.mxu0 %v1595
    %1597 = vmatprep.subr.mxu0 0.0
    %v1598 = vand.u32 %v1561, 4294901760
    %1599 = vmatpush1.xpose.msra.mxu0 %v1598
    %1600 = vmatprep.subr.mxu0 0.0
    %v1601 = vand.u32 %v1558, 4294901760
    %1602 = vmatpush1.xpose.msra.mxu0 %v1601
    %1603 = vmatprep.subr.mxu0 0.0
    %v1604 = vand.u32 %v1555, 4294901760
    %1605 = vmatpush1.xpose.msra.mxu0 %v1604
    %1606 = vmatprep.subr.mxu0 0.0
    %v1607 = vand.u32 %v1552, 4294901760
    %1608 = vmatpush1.xpose.msra.mxu0 %v1607
    %1609 = vmatprep.subr.mxu0 0.0
    %v1610 = vand.u32 %v1549, 4294901760
    %1611 = vmatpush1.xpose.msra.mxu0 %v1610
    %1612 = vmatprep.subr.mxu0 0.0
    %1613 = vmatpush2.xpose.msra.mxu0 0.0
    %1614 = vmatprep.subr.mxu0 0.0
    %1615 = vmatpush2.xpose.msra.mxu0 0.0
    %1616 = vmatprep.subr.mxu0 0.0
    %1617 = vmatpush2.xpose.msra.mxu0 0.0
    %1618 = vmatprep.subr.mxu0 0.0
    %1619 = vmatpush2.xpose.msra.mxu0 0.0
    %1620 = vmatprep.subr.mxu0 0.0
    %1621 = vmatpush2.xpose.msra.mxu0 0.0
    %1622 = vmatprep.subr.mxu0 0.0
    %1623 = vmatpush2.xpose.msra.mxu0 0.0
    %1624 = vmatprep.subr.mxu0 0.0
    %1625 = vmatpush2.xpose.msra.mxu0 0.0
    %1626 = vmatprep.subr.mxu0 0.0
    %1627 = vmatpush2.xpose.msra.mxu0 0.0
    %1628 = vmatprep.subr.mxu0 0.0
    %1629 = vmatpush2.xpose.msra.mxu0 0.0
    %1630 = vmatprep.subr.mxu0 0.0
    %1631 = vmatpush2.xpose.msra.mxu0 0.0
    %1632 = vmatprep.subr.mxu0 0.0
    %1633 = vmatpush2.xpose.msra.mxu0 0.0
    %1634 = vmatprep.subr.mxu0 0.0
    %1635 = vmatpush2.xpose.msra.mxu0 0.0
    %1636 = vmatprep.subr.mxu0 0.0
    %1637 = vmatpush2.xpose.msra.mxu0 0.0
    %1638 = vmatprep.subr.mxu0 0.0
    %1639 = vmatpush2.xpose.msra.mxu0 0.0
    %1640 = vmatprep.subr.mxu0 0.0
    %1641 = vmatpush2.xpose.msra.mxu0 0.0
    %1642 = vmatprep.subr.mxu0 0.0
    %1643 = vmatpush2.xpose.msra.mxu0 0.0
    %1644 = vmatprep.mubr.f32.mxu0 0.0
    %v1645 = vand.u32 %v1525, 4294901760
    %v1646 = vsub.f32 %v1525, %v1645
    %v1647 = vand.u32 %v1646, 4294901760
    %v1648 = vsub.f32 %v1646, %v1647
    %v1649 = vand.u32 %v1648, 4294901760
    %1650 = vmatmul.mubr.f32.gmra.mxu0 %v1649
    %v1651 = vpop.f32.mrf.mxu0
    %v1652 = vadd.f32 0.0, %v1651
    %v1653 = vpop.f32.mrf.mxu0
    %1654 = vmatprep.mubr.f32.mxu0 0.0
    %v1655 = vand.u32 %v1528, 4294901760
    %v1656 = vsub.f32 %v1528, %v1655
    %v1657 = vand.u32 %v1656, 4294901760
    %v1658 = vsub.f32 %v1656, %v1657
    %v1659 = vand.u32 %v1658, 4294901760
    %1660 = vmatmul.mubr.f32.gmra.mxu0 %v1659
    %v1661 = vpop.f32.mrf.mxu0
    %v1662 = vadd.f32 0.0, %v1661
    %v1663 = vpop.f32.mrf.mxu0
    %1664 = vmatprep.mubr.f32.mxu0 0.0
    %v1665 = vand.u32 %v1531, 4294901760
    %v1666 = vsub.f32 %v1531, %v1665
    %v1667 = vand.u32 %v1666, 4294901760
    %v1668 = vsub.f32 %v1666, %v1667
    %v1669 = vand.u32 %v1668, 4294901760
    %1670 = vmatmul.mubr.f32.gmra.mxu0 %v1669
    %v1671 = vpop.f32.mrf.mxu0
    %v1672 = vadd.f32 0.0, %v1671
    %v1673 = vpop.f32.mrf.mxu0
    %1674 = vmatprep.mubr.f32.mxu0 0.0
    %v1675 = vand.u32 %v1534, 4294901760
    %v1676 = vsub.f32 %v1534, %v1675
    %v1677 = vand.u32 %v1676, 4294901760
    %v1678 = vsub.f32 %v1676, %v1677
    %v1679 = vand.u32 %v1678, 4294901760
    %1680 = vmatmul.mubr.f32.gmra.mxu0 %v1679
    %v1681 = vpop.f32.mrf.mxu0
    %v1682 = vadd.f32 0.0, %v1681
    %v1683 = vpop.f32.mrf.mxu0
    %1684 = vmatprep.mubr.f32.mxu0 0.0
    %v1685 = vand.u32 %v1537, 4294901760
    %v1686 = vsub.f32 %v1537, %v1685
    %v1687 = vand.u32 %v1686, 4294901760
    %v1688 = vsub.f32 %v1686, %v1687
    %v1689 = vand.u32 %v1688, 4294901760
    %1690 = vmatmul.mubr.f32.gmra.mxu0 %v1689
    %v1691 = vpop.f32.mrf.mxu0
    %v1692 = vadd.f32 0.0, %v1691
    %v1693 = vpop.f32.mrf.mxu0
    %1694 = vmatprep.mubr.f32.mxu0 0.0
    %v1695 = vand.u32 %v1540, 4294901760
    %v1696 = vsub.f32 %v1540, %v1695
    %v1697 = vand.u32 %v1696, 4294901760
    %v1698 = vsub.f32 %v1696, %v1697
    %v1699 = vand.u32 %v1698, 4294901760
    %1700 = vmatmul.mubr.f32.gmra.mxu0 %v1699
    %v1701 = vpop.f32.mrf.mxu0
    %v1702 = vadd.f32 0.0, %v1701
    %v1703 = vpop.f32.mrf.mxu0
    %1704 = vmatprep.mubr.f32.mxu0 0.0
    %v1705 = vand.u32 %v1543, 4294901760
    %v1706 = vsub.f32 %v1543, %v1705
    %v1707 = vand.u32 %v1706, 4294901760
    %v1708 = vsub.f32 %v1706, %v1707
    %v1709 = vand.u32 %v1708, 4294901760
    %1710 = vmatmul.mubr.f32.gmra.mxu0 %v1709
    %v1711 = vpop.f32.mrf.mxu0
    %v1712 = vadd.f32 0.0, %v1711
    %v1713 = vpop.f32.mrf.mxu0
    %1714 = vmatprep.mubr.f32.mxu0 0.0
    %v1715 = vand.u32 %v1546, 4294901760
    %v1716 = vsub.f32 %v1546, %v1715
    %v1717 = vand.u32 %v1716, 4294901760
    %v1718 = vsub.f32 %v1716, %v1717
    %v1719 = vand.u32 %v1718, 4294901760
    %1720 = vmatmul.mubr.f32.gmra.mxu0 %v1719
    %v1721 = vpop.f32.mrf.mxu0
    %v1722 = vadd.f32 0.0, %v1721
    %v1723 = vpop.f32.mrf.mxu0
    %1724 = vdwg.mxu0
    %1725 = vmatprep.subr.mxu0 0.0
    %1726 = vmatpush1.xpose.msra.mxu0 0.0
    %1727 = vmatprep.subr.mxu0 0.0
    %1728 = vmatpush1.xpose.msra.mxu0 0.0
    %1729 = vmatprep.subr.mxu0 0.0
    %1730 = vmatpush1.xpose.msra.mxu0 0.0
    %1731 = vmatprep.subr.mxu0 0.0
    %1732 = vmatpush1.xpose.msra.mxu0 0.0
    %1733 = vmatprep.subr.mxu0 0.0
    %1734 = vmatpush1.xpose.msra.mxu0 0.0
    %1735 = vmatprep.subr.mxu0 0.0
    %1736 = vmatpush1.xpose.msra.mxu0 0.0
    %1737 = vmatprep.subr.mxu0 0.0
    %1738 = vmatpush1.xpose.msra.mxu0 0.0
    %1739 = vmatprep.subr.mxu0 0.0
    %1740 = vmatpush1.xpose.msra.mxu0 0.0
    %1741 = vmatprep.subr.mxu0 0.0
    %v1742 = vand.u32 %v1570, 4294901760
    %v1743 = vsub.f32 %v1570, %v1742
    %v1744 = vand.u32 %v1743, 4294901760
    %v1745 = vsub.f32 %v1743, %v1744
    %v1746 = vand.u32 %v1745, 4294901760
    %1747 = vmatpush1.xpose.msra.mxu0 %v1746
    %1748 = vmatprep.subr.mxu0 0.0
    %v1749 = vand.u32 %v1567, 4294901760
    %v1750 = vsub.f32 %v1567, %v1749
    %v1751 = vand.u32 %v1750, 4294901760
    %v1752 = vsub.f32 %v1750, %v1751
    %v1753 = vand.u32 %v1752, 4294901760
    %1754 = vmatpush1.xpose.msra.mxu0 %v1753
    %1755 = vmatprep.subr.mxu0 0.0
    %v1756 = vand.u32 %v1564, 4294901760
    %v1757 = vsub.f32 %v1564, %v1756
    %v1758 = vand.u32 %v1757, 4294901760
    %v1759 = vsub.f32 %v1757, %v1758
    %v1760 = vand.u32 %v1759, 4294901760
    %1761 = vmatpush1.xpose.msra.mxu0 %v1760
    %1762 = vmatprep.subr.mxu0 0.0
    %v1763 = vand.u32 %v1561, 4294901760
    %v1764 = vsub.f32 %v1561, %v1763
    %v1765 = vand.u32 %v1764, 4294901760
    %v1766 = vsub.f32 %v1764, %v1765
    %v1767 = vand.u32 %v1766, 4294901760
    %1768 = vmatpush1.xpose.msra.mxu0 %v1767
    %1769 = vmatprep.subr.mxu0 0.0
    %v1770 = vand.u32 %v1558, 4294901760
    %v1771 = vsub.f32 %v1558, %v1770
    %v1772 = vand.u32 %v1771, 4294901760
    %v1773 = vsub.f32 %v1771, %v1772
    %v1774 = vand.u32 %v1773, 4294901760
    %1775 = vmatpush1.xpose.msra.mxu0 %v1774
    %1776 = vmatprep.subr.mxu0 0.0
    %v1777 = vand.u32 %v1555, 4294901760
    %v1778 = vsub.f32 %v1555, %v1777
    %v1779 = vand.u32 %v1778, 4294901760
    %v1780 = vsub.f32 %v1778, %v1779
    %v1781 = vand.u32 %v1780, 4294901760
    %1782 = vmatpush1.xpose.msra.mxu0 %v1781
    %1783 = vmatprep.subr.mxu0 0.0
    %v1784 = vand.u32 %v1552, 4294901760
    %v1785 = vsub.f32 %v1552, %v1784
    %v1786 = vand.u32 %v1785, 4294901760
    %v1787 = vsub.f32 %v1785, %v1786
    %v1788 = vand.u32 %v1787, 4294901760
    %1789 = vmatpush1.xpose.msra.mxu0 %v1788
    %1790 = vmatprep.subr.mxu0 0.0
    %v1791 = vand.u32 %v1549, 4294901760
    %v1792 = vsub.f32 %v1549, %v1791
    %v1793 = vand.u32 %v1792, 4294901760
    %v1794 = vsub.f32 %v1792, %v1793
    %v1795 = vand.u32 %v1794, 4294901760
    %1796 = vmatpush1.xpose.msra.mxu0 %v1795
    %1797 = vmatprep.subr.mxu0 0.0
    %1798 = vmatpush2.xpose.msra.mxu0 0.0
    %1799 = vmatprep.subr.mxu0 0.0
    %1800 = vmatpush2.xpose.msra.mxu0 0.0
    %1801 = vmatprep.subr.mxu0 0.0
    %1802 = vmatpush2.xpose.msra.mxu0 0.0
    %1803 = vmatprep.subr.mxu0 0.0
    %1804 = vmatpush2.xpose.msra.mxu0 0.0
    %1805 = vmatprep.subr.mxu0 0.0
    %1806 = vmatpush2.xpose.msra.mxu0 0.0
    %1807 = vmatprep.subr.mxu0 0.0
    %1808 = vmatpush2.xpose.msra.mxu0 0.0
    %1809 = vmatprep.subr.mxu0 0.0
    %1810 = vmatpush2.xpose.msra.mxu0 0.0
    %1811 = vmatprep.subr.mxu0 0.0
    %1812 = vmatpush2.xpose.msra.mxu0 0.0
    %1813 = vmatprep.subr.mxu0 0.0
    %1814 = vmatpush2.xpose.msra.mxu0 0.0
    %1815 = vmatprep.subr.mxu0 0.0
    %1816 = vmatpush2.xpose.msra.mxu0 0.0
    %1817 = vmatprep.subr.mxu0 0.0
    %1818 = vmatpush2.xpose.msra.mxu0 0.0
    %1819 = vmatprep.subr.mxu0 0.0
    %1820 = vmatpush2.xpose.msra.mxu0 0.0
    %1821 = vmatprep.subr.mxu0 0.0
    %1822 = vmatpush2.xpose.msra.mxu0 0.0
    %1823 = vmatprep.subr.mxu0 0.0
    %1824 = vmatpush2.xpose.msra.mxu0 0.0
    %1825 = vmatprep.subr.mxu0 0.0
    %1826 = vmatpush2.xpose.msra.mxu0 0.0
    %1827 = vmatprep.subr.mxu0 0.0
    %1828 = vmatpush2.xpose.msra.mxu0 0.0
    %1829 = vmatprep.mubr.f32.mxu0 0.0
    %v1830 = vand.u32 %v1525, 4294901760
    %1831 = vmatmul.mubr.f32.gmra.mxu0 %v1830
    %v1832 = vpop.f32.mrf.mxu0
    %v1833 = vadd.f32 %v1652, %v1832
    %v1834 = vpop.f32.mrf.mxu0
    %1835 = vmatprep.mubr.f32.mxu0 0.0
    %v1836 = vand.u32 %v1528, 4294901760
    %1837 = vmatmul.mubr.f32.gmra.mxu0 %v1836
    %v1838 = vpop.f32.mrf.mxu0
    %v1839 = vadd.f32 %v1662, %v1838
    %v1840 = vpop.f32.mrf.mxu0
    %1841 = vmatprep.mubr.f32.mxu0 0.0
    %v1842 = vand.u32 %v1531, 4294901760
    %1843 = vmatmul.mubr.f32.gmra.mxu0 %v1842
    %v1844 = vpop.f32.mrf.mxu0
    %v1845 = vadd.f32 %v1672, %v1844
    %v1846 = vpop.f32.mrf.mxu0
    %1847 = vmatprep.mubr.f32.mxu0 0.0
    %v1848 = vand.u32 %v1534, 4294901760
    %1849 = vmatmul.mubr.f32.gmra.mxu0 %v1848
    %v1850 = vpop.f32.mrf.mxu0
    %v1851 = vadd.f32 %v1682, %v1850
    %v1852 = vpop.f32.mrf.mxu0
    %1853 = vmatprep.mubr.f32.mxu0 0.0
    %v1854 = vand.u32 %v1537, 4294901760
    %1855 = vmatmul.mubr.f32.gmra.mxu0 %v1854
    %v1856 = vpop.f32.mrf.mxu0
    %v1857 = vadd.f32 %v1692, %v1856
    %v1858 = vpop.f32.mrf.mxu0
    %1859 = vmatprep.mubr.f32.mxu0 0.0
    %v1860 = vand.u32 %v1540, 4294901760
    %1861 = vmatmul.mubr.f32.gmra.mxu0 %v1860
    %v1862 = vpop.f32.mrf.mxu0
    %v1863 = vadd.f32 %v1702, %v1862
    %v1864 = vpop.f32.mrf.mxu0
    %1865 = vmatprep.mubr.f32.mxu0 0.0
    %v1866 = vand.u32 %v1543, 4294901760
    %1867 = vmatmul.mubr.f32.gmra.mxu0 %v1866
    %v1868 = vpop.f32.mrf.mxu0
    %v1869 = vadd.f32 %v1712, %v1868
    %v1870 = vpop.f32.mrf.mxu0
    %1871 = vmatprep.mubr.f32.mxu0 0.0
    %v1872 = vand.u32 %v1546, 4294901760
    %1873 = vmatmul.mubr.f32.gmra.mxu0 %v1872
    %v1874 = vpop.f32.mrf.mxu0
    %v1875 = vadd.f32 %v1722, %v1874
    %v1876 = vpop.f32.mrf.mxu0
    %1877 = vdwg.mxu0
    %1878 = vmatprep.subr.mxu0 0.0
    %1879 = vmatpush1.xpose.msra.mxu0 0.0
    %1880 = vmatprep.subr.mxu0 0.0
    %1881 = vmatpush1.xpose.msra.mxu0 0.0
    %1882 = vmatprep.subr.mxu0 0.0
    %1883 = vmatpush1.xpose.msra.mxu0 0.0
    %1884 = vmatprep.subr.mxu0 0.0
    %1885 = vmatpush1.xpose.msra.mxu0 0.0
    %1886 = vmatprep.subr.mxu0 0.0
    %1887 = vmatpush1.xpose.msra.mxu0 0.0
    %1888 = vmatprep.subr.mxu0 0.0
    %1889 = vmatpush1.xpose.msra.mxu0 0.0
    %1890 = vmatprep.subr.mxu0 0.0
    %1891 = vmatpush1.xpose.msra.mxu0 0.0
    %1892 = vmatprep.subr.mxu0 0.0
    %1893 = vmatpush1.xpose.msra.mxu0 0.0
    %1894 = vmatprep.subr.mxu0 0.0
    %v1895 = vand.u32 %v1570, 4294901760
    %v1896 = vsub.f32 %v1570, %v1895
    %1897 = vmatpush1.xpose.msra.mxu0 %v1896
    %1898 = vmatprep.subr.mxu0 0.0
    %v1899 = vand.u32 %v1567, 4294901760
    %v1900 = vsub.f32 %v1567, %v1899
    %1901 = vmatpush1.xpose.msra.mxu0 %v1900
    %1902 = vmatprep.subr.mxu0 0.0
    %v1903 = vand.u32 %v1564, 4294901760
    %v1904 = vsub.f32 %v1564, %v1903
    %1905 = vmatpush1.xpose.msra.mxu0 %v1904
    %1906 = vmatprep.subr.mxu0 0.0
    %v1907 = vand.u32 %v1561, 4294901760
    %v1908 = vsub.f32 %v1561, %v1907
    %1909 = vmatpush1.xpose.msra.mxu0 %v1908
    %1910 = vmatprep.subr.mxu0 0.0
    %v1911 = vand.u32 %v1558, 4294901760
    %v1912 = vsub.f32 %v1558, %v1911
    %1913 = vmatpush1.xpose.msra.mxu0 %v1912
    %1914 = vmatprep.subr.mxu0 0.0
    %v1915 = vand.u32 %v1555, 4294901760
    %v1916 = vsub.f32 %v1555, %v1915
    %1917 = vmatpush1.xpose.msra.mxu0 %v1916
    %1918 = vmatprep.subr.mxu0 0.0
    %v1919 = vand.u32 %v1552, 4294901760
    %v1920 = vsub.f32 %v1552, %v1919
    %1921 = vmatpush1.xpose.msra.mxu0 %v1920
    %1922 = vmatprep.subr.mxu0 0.0
    %v1923 = vand.u32 %v1549, 4294901760
    %v1924 = vsub.f32 %v1549, %v1923
    %1925 = vmatpush1.xpose.msra.mxu0 %v1924
    %1926 = vmatprep.subr.mxu0 0.0
    %1927 = vmatpush2.xpose.msra.mxu0 0.0
    %1928 = vmatprep.subr.mxu0 0.0
    %1929 = vmatpush2.xpose.msra.mxu0 0.0
    %1930 = vmatprep.subr.mxu0 0.0
    %1931 = vmatpush2.xpose.msra.mxu0 0.0
    %1932 = vmatprep.subr.mxu0 0.0
    %1933 = vmatpush2.xpose.msra.mxu0 0.0
    %1934 = vmatprep.subr.mxu0 0.0
    %1935 = vmatpush2.xpose.msra.mxu0 0.0
    %1936 = vmatprep.subr.mxu0 0.0
    %1937 = vmatpush2.xpose.msra.mxu0 0.0
    %1938 = vmatprep.subr.mxu0 0.0
    %1939 = vmatpush2.xpose.msra.mxu0 0.0
    %1940 = vmatprep.subr.mxu0 0.0
    %1941 = vmatpush2.xpose.msra.mxu0 0.0
    %1942 = vmatprep.subr.mxu0 0.0
    %1943 = vmatpush2.xpose.msra.mxu0 0.0
    %1944 = vmatprep.subr.mxu0 0.0
    %1945 = vmatpush2.xpose.msra.mxu0 0.0
    %1946 = vmatprep.subr.mxu0 0.0
    %1947 = vmatpush2.xpose.msra.mxu0 0.0
    %1948 = vmatprep.subr.mxu0 0.0
    %1949 = vmatpush2.xpose.msra.mxu0 0.0
    %1950 = vmatprep.subr.mxu0 0.0
    %1951 = vmatpush2.xpose.msra.mxu0 0.0
    %1952 = vmatprep.subr.mxu0 0.0
    %1953 = vmatpush2.xpose.msra.mxu0 0.0
    %1954 = vmatprep.subr.mxu0 0.0
    %1955 = vmatpush2.xpose.msra.mxu0 0.0
    %1956 = vmatprep.subr.mxu0 0.0
    %1957 = vmatpush2.xpose.msra.mxu0 0.0
    %1958 = vmatprep.mubr.f32.mxu0 0.0
    %v1959 = vand.u32 %v1525, 4294901760
    %v1960 = vsub.f32 %v1525, %v1959
    %1961 = vmatmul.mubr.f32.gmra.mxu0 %v1960
    %v1962 = vpop.f32.mrf.mxu0
    %v1963 = vadd.f32 %v1833, %v1962
    %v1964 = vpop.f32.mrf.mxu0
    %1965 = vmatprep.mubr.f32.mxu0 0.0
    %v1966 = vand.u32 %v1528, 4294901760
    %v1967 = vsub.f32 %v1528, %v1966
    %1968 = vmatmul.mubr.f32.gmra.mxu0 %v1967
    %v1969 = vpop.f32.mrf.mxu0
    %v1970 = vadd.f32 %v1839, %v1969
    %v1971 = vpop.f32.mrf.mxu0
    %1972 = vmatprep.mubr.f32.mxu0 0.0
    %v1973 = vand.u32 %v1531, 4294901760
    %v1974 = vsub.f32 %v1531, %v1973
    %1975 = vmatmul.mubr.f32.gmra.mxu0 %v1974
    %v1976 = vpop.f32.mrf.mxu0
    %v1977 = vadd.f32 %v1845, %v1976
    %v1978 = vpop.f32.mrf.mxu0
    %1979 = vmatprep.mubr.f32.mxu0 0.0
    %v1980 = vand.u32 %v1534, 4294901760
    %v1981 = vsub.f32 %v1534, %v1980
    %1982 = vmatmul.mubr.f32.gmra.mxu0 %v1981
    %v1983 = vpop.f32.mrf.mxu0
    %v1984 = vadd.f32 %v1851, %v1983
    %v1985 = vpop.f32.mrf.mxu0
    %1986 = vmatprep.mubr.f32.mxu0 0.0
    %v1987 = vand.u32 %v1537, 4294901760
    %v1988 = vsub.f32 %v1537, %v1987
    %1989 = vmatmul.mubr.f32.gmra.mxu0 %v1988
    %v1990 = vpop.f32.mrf.mxu0
    %v1991 = vadd.f32 %v1857, %v1990
    %v1992 = vpop.f32.mrf.mxu0
    %1993 = vmatprep.mubr.f32.mxu0 0.0
    %v1994 = vand.u32 %v1540, 4294901760
    %v1995 = vsub.f32 %v1540, %v1994
    %1996 = vmatmul.mubr.f32.gmra.mxu0 %v1995
    %v1997 = vpop.f32.mrf.mxu0
    %v1998 = vadd.f32 %v1863, %v1997
    %v1999 = vpop.f32.mrf.mxu0
    %2000 = vmatprep.mubr.f32.mxu0 0.0
    %v2001 = vand.u32 %v1543, 4294901760
    %v2002 = vsub.f32 %v1543, %v2001
    %2003 = vmatmul.mubr.f32.gmra.mxu0 %v2002
    %v2004 = vpop.f32.mrf.mxu0
    %v2005 = vadd.f32 %v1869, %v2004
    %v2006 = vpop.f32.mrf.mxu0
    %2007 = vmatprep.mubr.f32.mxu0 0.0
    %v2008 = vand.u32 %v1546, 4294901760
    %v2009 = vsub.f32 %v1546, %v2008
    %2010 = vmatmul.mubr.f32.gmra.mxu0 %v2009
    %v2011 = vpop.f32.mrf.mxu0
    %v2012 = vadd.f32 %v1875, %v2011
    %v2013 = vpop.f32.mrf.mxu0
    %2014 = vdwg.mxu0
    %2015 = vmatprep.subr.mxu0 0.0
    %2016 = vmatpush1.xpose.msra.mxu0 0.0
    %2017 = vmatprep.subr.mxu0 0.0
    %2018 = vmatpush1.xpose.msra.mxu0 0.0
    %2019 = vmatprep.subr.mxu0 0.0
    %2020 = vmatpush1.xpose.msra.mxu0 0.0
    %2021 = vmatprep.subr.mxu0 0.0
    %2022 = vmatpush1.xpose.msra.mxu0 0.0
    %2023 = vmatprep.subr.mxu0 0.0
    %2024 = vmatpush1.xpose.msra.mxu0 0.0
    %2025 = vmatprep.subr.mxu0 0.0
    %2026 = vmatpush1.xpose.msra.mxu0 0.0
    %2027 = vmatprep.subr.mxu0 0.0
    %2028 = vmatpush1.xpose.msra.mxu0 0.0
    %2029 = vmatprep.subr.mxu0 0.0
    %2030 = vmatpush1.xpose.msra.mxu0 0.0
    %2031 = vmatprep.subr.mxu0 0.0
    %v2032 = vand.u32 %v1570, 4294901760
    %2033 = vmatpush1.xpose.msra.mxu0 %v2032
    %2034 = vmatprep.subr.mxu0 0.0
    %v2035 = vand.u32 %v1567, 4294901760
    %2036 = vmatpush1.xpose.msra.mxu0 %v2035
    %2037 = vmatprep.subr.mxu0 0.0
    %v2038 = vand.u32 %v1564, 4294901760
    %2039 = vmatpush1.xpose.msra.mxu0 %v2038
    %2040 = vmatprep.subr.mxu0 0.0
    %v2041 = vand.u32 %v1561, 4294901760
    %2042 = vmatpush1.xpose.msra.mxu0 %v2041
    %2043 = vmatprep.subr.mxu0 0.0
    %v2044 = vand.u32 %v1558, 4294901760
    %2045 = vmatpush1.xpose.msra.mxu0 %v2044
    %2046 = vmatprep.subr.mxu0 0.0
    %v2047 = vand.u32 %v1555, 4294901760
    %2048 = vmatpush1.xpose.msra.mxu0 %v2047
    %2049 = vmatprep.subr.mxu0 0.0
    %v2050 = vand.u32 %v1552, 4294901760
    %2051 = vmatpush1.xpose.msra.mxu0 %v2050
    %2052 = vmatprep.subr.mxu0 0.0
    %v2053 = vand.u32 %v1549, 4294901760
    %2054 = vmatpush1.xpose.msra.mxu0 %v2053
    %2055 = vmatprep.subr.mxu0 0.0
    %2056 = vmatpush2.xpose.msra.mxu0 0.0
    %2057 = vmatprep.subr.mxu0 0.0
    %2058 = vmatpush2.xpose.msra.mxu0 0.0
    %2059 = vmatprep.subr.mxu0 0.0
    %2060 = vmatpush2.xpose.msra.mxu0 0.0
    %2061 = vmatprep.subr.mxu0 0.0
    %2062 = vmatpush2.xpose.msra.mxu0 0.0
    %2063 = vmatprep.subr.mxu0 0.0
    %2064 = vmatpush2.xpose.msra.mxu0 0.0
    %2065 = vmatprep.subr.mxu0 0.0
    %2066 = vmatpush2.xpose.msra.mxu0 0.0
    %2067 = vmatprep.subr.mxu0 0.0
    %2068 = vmatpush2.xpose.msra.mxu0 0.0
    %2069 = vmatprep.subr.mxu0 0.0
    %2070 = vmatpush2.xpose.msra.mxu0 0.0
    %2071 = vmatprep.subr.mxu0 0.0
    %2072 = vmatpush2.xpose.msra.mxu0 0.0
    %2073 = vmatprep.subr.mxu0 0.0
    %2074 = vmatpush2.xpose.msra.mxu0 0.0
    %2075 = vmatprep.subr.mxu0 0.0
    %2076 = vmatpush2.xpose.msra.mxu0 0.0
    %2077 = vmatprep.subr.mxu0 0.0
    %2078 = vmatpush2.xpose.msra.mxu0 0.0
    %2079 = vmatprep.subr.mxu0 0.0
    %2080 = vmatpush2.xpose.msra.mxu0 0.0
    %2081 = vmatprep.subr.mxu0 0.0
    %2082 = vmatpush2.xpose.msra.mxu0 0.0
    %2083 = vmatprep.subr.mxu0 0.0
    %2084 = vmatpush2.xpose.msra.mxu0 0.0
    %2085 = vmatprep.subr.mxu0 0.0
    %2086 = vmatpush2.xpose.msra.mxu0 0.0
    %2087 = vmatprep.mubr.f32.mxu0 0.0
    %v2088 = vand.u32 %v1525, 4294901760
    %v2089 = vsub.f32 %v1525, %v2088
    %v2090 = vand.u32 %v2089, 4294901760
    %2091 = vmatmul.mubr.f32.gmra.mxu0 %v2090
    %v2092 = vpop.f32.mrf.mxu0
    %v2093 = vadd.f32 %v1963, %v2092
    %v2094 = vpop.f32.mrf.mxu0
    %2095 = vmatprep.mubr.f32.mxu0 0.0
    %v2096 = vand.u32 %v1528, 4294901760
    %v2097 = vsub.f32 %v1528, %v2096
    %v2098 = vand.u32 %v2097, 4294901760
    %2099 = vmatmul.mubr.f32.gmra.mxu0 %v2098
    %v2100 = vpop.f32.mrf.mxu0
    %v2101 = vadd.f32 %v1970, %v2100
    %v2102 = vpop.f32.mrf.mxu0
    %2103 = vmatprep.mubr.f32.mxu0 0.0
    %v2104 = vand.u32 %v1531, 4294901760
    %v2105 = vsub.f32 %v1531, %v2104
    %v2106 = vand.u32 %v2105, 4294901760
    %2107 = vmatmul.mubr.f32.gmra.mxu0 %v2106
    %v2108 = vpop.f32.mrf.mxu0
    %v2109 = vadd.f32 %v1977, %v2108
    %v2110 = vpop.f32.mrf.mxu0
    %2111 = vmatprep.mubr.f32.mxu0 0.0
    %v2112 = vand.u32 %v1534, 4294901760
    %v2113 = vsub.f32 %v1534, %v2112
    %v2114 = vand.u32 %v2113, 4294901760
    %2115 = vmatmul.mubr.f32.gmra.mxu0 %v2114
    %v2116 = vpop.f32.mrf.mxu0
    %v2117 = vadd.f32 %v1984, %v2116
    %v2118 = vpop.f32.mrf.mxu0
    %2119 = vmatprep.mubr.f32.mxu0 0.0
    %v2120 = vand.u32 %v1537, 4294901760
    %v2121 = vsub.f32 %v1537, %v2120
    %v2122 = vand.u32 %v2121, 4294901760
    %2123 = vmatmul.mubr.f32.gmra.mxu0 %v2122
    %v2124 = vpop.f32.mrf.mxu0
    %v2125 = vadd.f32 %v1991, %v2124
    %v2126 = vpop.f32.mrf.mxu0
    %2127 = vmatprep.mubr.f32.mxu0 0.0
    %v2128 = vand.u32 %v1540, 4294901760
    %v2129 = vsub.f32 %v1540, %v2128
    %v2130 = vand.u32 %v2129, 4294901760
    %2131 = vmatmul.mubr.f32.gmra.mxu0 %v2130
    %v2132 = vpop.f32.mrf.mxu0
    %v2133 = vadd.f32 %v1998, %v2132
    %v2134 = vpop.f32.mrf.mxu0
    %2135 = vmatprep.mubr.f32.mxu0 0.0
    %v2136 = vand.u32 %v1543, 4294901760
    %v2137 = vsub.f32 %v1543, %v2136
    %v2138 = vand.u32 %v2137, 4294901760
    %2139 = vmatmul.mubr.f32.gmra.mxu0 %v2138
    %v2140 = vpop.f32.mrf.mxu0
    %v2141 = vadd.f32 %v2005, %v2140
    %v2142 = vpop.f32.mrf.mxu0
    %2143 = vmatprep.mubr.f32.mxu0 0.0
    %v2144 = vand.u32 %v1546, 4294901760
    %v2145 = vsub.f32 %v1546, %v2144
    %v2146 = vand.u32 %v2145, 4294901760
    %2147 = vmatmul.mubr.f32.gmra.mxu0 %v2146
    %v2148 = vpop.f32.mrf.mxu0
    %v2149 = vadd.f32 %v2012, %v2148
    %v2150 = vpop.f32.mrf.mxu0
    %2151 = vdwg.mxu0
    %2152 = vmatprep.subr.mxu0 0.0
    %2153 = vmatpush1.xpose.msra.mxu0 0.0
    %2154 = vmatprep.subr.mxu0 0.0
    %2155 = vmatpush1.xpose.msra.mxu0 0.0
    %2156 = vmatprep.subr.mxu0 0.0
    %2157 = vmatpush1.xpose.msra.mxu0 0.0
    %2158 = vmatprep.subr.mxu0 0.0
    %2159 = vmatpush1.xpose.msra.mxu0 0.0
    %2160 = vmatprep.subr.mxu0 0.0
    %2161 = vmatpush1.xpose.msra.mxu0 0.0
    %2162 = vmatprep.subr.mxu0 0.0
    %2163 = vmatpush1.xpose.msra.mxu0 0.0
    %2164 = vmatprep.subr.mxu0 0.0
    %2165 = vmatpush1.xpose.msra.mxu0 0.0
    %2166 = vmatprep.subr.mxu0 0.0
    %2167 = vmatpush1.xpose.msra.mxu0 0.0
    %2168 = vmatprep.subr.mxu0 0.0
    %v2169 = vand.u32 %v1570, 4294901760
    %v2170 = vsub.f32 %v1570, %v2169
    %v2171 = vand.u32 %v2170, 4294901760
    %2172 = vmatpush1.xpose.msra.mxu0 %v2171
    %2173 = vmatprep.subr.mxu0 0.0
    %v2174 = vand.u32 %v1567, 4294901760
    %v2175 = vsub.f32 %v1567, %v2174
    %v2176 = vand.u32 %v2175, 4294901760
    %2177 = vmatpush1.xpose.msra.mxu0 %v2176
    %2178 = vmatprep.subr.mxu0 0.0
    %v2179 = vand.u32 %v1564, 4294901760
    %v2180 = vsub.f32 %v1564, %v2179
    %v2181 = vand.u32 %v2180, 4294901760
    %2182 = vmatpush1.xpose.msra.mxu0 %v2181
    %2183 = vmatprep.subr.mxu0 0.0
    %v2184 = vand.u32 %v1561, 4294901760
    %v2185 = vsub.f32 %v1561, %v2184
    %v2186 = vand.u32 %v2185, 4294901760
    %2187 = vmatpush1.xpose.msra.mxu0 %v2186
    %2188 = vmatprep.subr.mxu0 0.0
    %v2189 = vand.u32 %v1558, 4294901760
    %v2190 = vsub.f32 %v1558, %v2189
    %v2191 = vand.u32 %v2190, 4294901760
    %2192 = vmatpush1.xpose.msra.mxu0 %v2191
    %2193 = vmatprep.subr.mxu0 0.0
    %v2194 = vand.u32 %v1555, 4294901760
    %v2195 = vsub.f32 %v1555, %v2194
    %v2196 = vand.u32 %v2195, 4294901760
    %2197 = vmatpush1.xpose.msra.mxu0 %v2196
    %2198 = vmatprep.subr.mxu0 0.0
    %v2199 = vand.u32 %v1552, 4294901760
    %v2200 = vsub.f32 %v1552, %v2199
    %v2201 = vand.u32 %v2200, 4294901760
    %2202 = vmatpush1.xpose.msra.mxu0 %v2201
    %2203 = vmatprep.subr.mxu0 0.0
    %v2204 = vand.u32 %v1549, 4294901760
    %v2205 = vsub.f32 %v1549, %v2204
    %v2206 = vand.u32 %v2205, 4294901760
    %2207 = vmatpush1.xpose.msra.mxu0 %v2206
    %2208 = vmatprep.subr.mxu0 0.0
    %2209 = vmatpush2.xpose.msra.mxu0 0.0
    %2210 = vmatprep.subr.mxu0 0.0
    %2211 = vmatpush2.xpose.msra.mxu0 0.0
    %2212 = vmatprep.subr.mxu0 0.0
    %2213 = vmatpush2.xpose.msra.mxu0 0.0
    %2214 = vmatprep.subr.mxu0 0.0
    %2215 = vmatpush2.xpose.msra.mxu0 0.0
    %2216 = vmatprep.subr.mxu0 0.0
    %2217 = vmatpush2.xpose.msra.mxu0 0.0
    %2218 = vmatprep.subr.mxu0 0.0
    %2219 = vmatpush2.xpose.msra.mxu0 0.0
    %2220 = vmatprep.subr.mxu0 0.0
    %2221 = vmatpush2.xpose.msra.mxu0 0.0
    %2222 = vmatprep.subr.mxu0 0.0
    %2223 = vmatpush2.xpose.msra.mxu0 0.0
    %2224 = vmatprep.subr.mxu0 0.0
    %2225 = vmatpush2.xpose.msra.mxu0 0.0
    %2226 = vmatprep.subr.mxu0 0.0
    %2227 = vmatpush2.xpose.msra.mxu0 0.0
    %2228 = vmatprep.subr.mxu0 0.0
    %2229 = vmatpush2.xpose.msra.mxu0 0.0
    %2230 = vmatprep.subr.mxu0 0.0
    %2231 = vmatpush2.xpose.msra.mxu0 0.0
    %2232 = vmatprep.subr.mxu0 0.0
    %2233 = vmatpush2.xpose.msra.mxu0 0.0
    %2234 = vmatprep.subr.mxu0 0.0
    %2235 = vmatpush2.xpose.msra.mxu0 0.0
    %2236 = vmatprep.subr.mxu0 0.0
    %2237 = vmatpush2.xpose.msra.mxu0 0.0
    %2238 = vmatprep.subr.mxu0 0.0
    %2239 = vmatpush2.xpose.msra.mxu0 0.0
    %2240 = vmatprep.mubr.f32.mxu0 0.0
    %v2241 = vand.u32 %v1525, 4294901760
    %2242 = vmatmul.mubr.f32.gmra.mxu0 %v2241
    %v2243 = vpop.f32.mrf.mxu0
    %v2244 = vadd.f32 %v2093, %v2243
    %v2245 = vpop.f32.mrf.mxu0
    %2246 = vmatprep.mubr.f32.mxu0 0.0
    %v2247 = vand.u32 %v1528, 4294901760
    %2248 = vmatmul.mubr.f32.gmra.mxu0 %v2247
    %v2249 = vpop.f32.mrf.mxu0
    %v2250 = vadd.f32 %v2101, %v2249
    %v2251 = vpop.f32.mrf.mxu0
    %2252 = vmatprep.mubr.f32.mxu0 0.0
    %v2253 = vand.u32 %v1531, 4294901760
    %2254 = vmatmul.mubr.f32.gmra.mxu0 %v2253
    %v2255 = vpop.f32.mrf.mxu0
    %v2256 = vadd.f32 %v2109, %v2255
    %v2257 = vpop.f32.mrf.mxu0
    %2258 = vmatprep.mubr.f32.mxu0 0.0
    %v2259 = vand.u32 %v1534, 4294901760
    %2260 = vmatmul.mubr.f32.gmra.mxu0 %v2259
    %v2261 = vpop.f32.mrf.mxu0
    %v2262 = vadd.f32 %v2117, %v2261
    %v2263 = vpop.f32.mrf.mxu0
    %2264 = vmatprep.mubr.f32.mxu0 0.0
    %v2265 = vand.u32 %v1537, 4294901760
    %2266 = vmatmul.mubr.f32.gmra.mxu0 %v2265
    %v2267 = vpop.f32.mrf.mxu0
    %v2268 = vadd.f32 %v2125, %v2267
    %v2269 = vpop.f32.mrf.mxu0
    %2270 = vmatprep.mubr.f32.mxu0 0.0
    %v2271 = vand.u32 %v1540, 4294901760
    %2272 = vmatmul.mubr.f32.gmra.mxu0 %v2271
    %v2273 = vpop.f32.mrf.mxu0
    %v2274 = vadd.f32 %v2133, %v2273
    %v2275 = vpop.f32.mrf.mxu0
    %2276 = vmatprep.mubr.f32.mxu0 0.0
    %v2277 = vand.u32 %v1543, 4294901760
    %2278 = vmatmul.mubr.f32.gmra.mxu0 %v2277
    %v2279 = vpop.f32.mrf.mxu0
    %v2280 = vadd.f32 %v2141, %v2279
    %v2281 = vpop.f32.mrf.mxu0
    %2282 = vmatprep.mubr.f32.mxu0 0.0
    %v2283 = vand.u32 %v1546, 4294901760
    %2284 = vmatmul.mubr.f32.gmra.mxu0 %v2283
    %v2285 = vpop.f32.mrf.mxu0
    %v2286 = vadd.f32 %v2149, %v2285
    %v2287 = vpop.f32.mrf.mxu0
    %2288 = vdwg.mxu0
    %2289 = vmatprep.subr.mxu0 0.0
    %2290 = vmatpush1.xpose.msra.mxu0 0.0
    %2291 = vmatprep.subr.mxu0 0.0
    %2292 = vmatpush1.xpose.msra.mxu0 0.0
    %2293 = vmatprep.subr.mxu0 0.0
    %2294 = vmatpush1.xpose.msra.mxu0 0.0
    %2295 = vmatprep.subr.mxu0 0.0
    %2296 = vmatpush1.xpose.msra.mxu0 0.0
    %2297 = vmatprep.subr.mxu0 0.0
    %2298 = vmatpush1.xpose.msra.mxu0 0.0
    %2299 = vmatprep.subr.mxu0 0.0
    %2300 = vmatpush1.xpose.msra.mxu0 0.0
    %2301 = vmatprep.subr.mxu0 0.0
    %2302 = vmatpush1.xpose.msra.mxu0 0.0
    %2303 = vmatprep.subr.mxu0 0.0
    %2304 = vmatpush1.xpose.msra.mxu0 0.0
    %2305 = vmatprep.subr.mxu0 0.0
    %v2306 = vand.u32 %v1570, 4294901760
    %2307 = vmatpush1.xpose.msra.mxu0 %v2306
    %2308 = vmatprep.subr.mxu0 0.0
    %v2309 = vand.u32 %v1567, 4294901760
    %2310 = vmatpush1.xpose.msra.mxu0 %v2309
    %2311 = vmatprep.subr.mxu0 0.0
    %v2312 = vand.u32 %v1564, 4294901760
    %2313 = vmatpush1.xpose.msra.mxu0 %v2312
    %2314 = vmatprep.subr.mxu0 0.0
    %v2315 = vand.u32 %v1561, 4294901760
    %2316 = vmatpush1.xpose.msra.mxu0 %v2315
    %2317 = vmatprep.subr.mxu0 0.0
    %v2318 = vand.u32 %v1558, 4294901760
    %2319 = vmatpush1.xpose.msra.mxu0 %v2318
    %2320 = vmatprep.subr.mxu0 0.0
    %v2321 = vand.u32 %v1555, 4294901760
    %2322 = vmatpush1.xpose.msra.mxu0 %v2321
    %2323 = vmatprep.subr.mxu0 0.0
    %v2324 = vand.u32 %v1552, 4294901760
    %2325 = vmatpush1.xpose.msra.mxu0 %v2324
    %2326 = vmatprep.subr.mxu0 0.0
    %v2327 = vand.u32 %v1549, 4294901760
    %2328 = vmatpush1.xpose.msra.mxu0 %v2327
    %2329 = vmatprep.subr.mxu0 0.0
    %2330 = vmatpush2.xpose.msra.mxu0 0.0
    %2331 = vmatprep.subr.mxu0 0.0
    %2332 = vmatpush2.xpose.msra.mxu0 0.0
    %2333 = vmatprep.subr.mxu0 0.0
    %2334 = vmatpush2.xpose.msra.mxu0 0.0
    %2335 = vmatprep.subr.mxu0 0.0
    %2336 = vmatpush2.xpose.msra.mxu0 0.0
    %2337 = vmatprep.subr.mxu0 0.0
    %2338 = vmatpush2.xpose.msra.mxu0 0.0
    %2339 = vmatprep.subr.mxu0 0.0
    %2340 = vmatpush2.xpose.msra.mxu0 0.0
    %2341 = vmatprep.subr.mxu0 0.0
    %2342 = vmatpush2.xpose.msra.mxu0 0.0
    %2343 = vmatprep.subr.mxu0 0.0
    %2344 = vmatpush2.xpose.msra.mxu0 0.0
    %2345 = vmatprep.subr.mxu0 0.0
    %2346 = vmatpush2.xpose.msra.mxu0 0.0
    %2347 = vmatprep.subr.mxu0 0.0
    %2348 = vmatpush2.xpose.msra.mxu0 0.0
    %2349 = vmatprep.subr.mxu0 0.0
    %2350 = vmatpush2.xpose.msra.mxu0 0.0
    %2351 = vmatprep.subr.mxu0 0.0
    %2352 = vmatpush2.xpose.msra.mxu0 0.0
    %2353 = vmatprep.subr.mxu0 0.0
    %2354 = vmatpush2.xpose.msra.mxu0 0.0
    %2355 = vmatprep.subr.mxu0 0.0
    %2356 = vmatpush2.xpose.msra.mxu0 0.0
    %2357 = vmatprep.subr.mxu0 0.0
    %2358 = vmatpush2.xpose.msra.mxu0 0.0
    %2359 = vmatprep.subr.mxu0 0.0
    %2360 = vmatpush2.xpose.msra.mxu0 0.0
    %2361 = vmatprep.mubr.f32.mxu0 0.0
    %v2362 = vand.u32 %v1525, 4294901760
    %2363 = vmatmul.mubr.f32.gmra.mxu0 %v2362
    %v2364 = vpop.f32.mrf.mxu0
    %v2365 = vadd.f32 %v2244, %v2364
    %v2366 = vpop.f32.mrf.mxu0
    %2367 = vmatprep.mubr.f32.mxu0 0.0
    %v2368 = vand.u32 %v1528, 4294901760
    %2369 = vmatmul.mubr.f32.gmra.mxu0 %v2368
    %v2370 = vpop.f32.mrf.mxu0
    %v2371 = vadd.f32 %v2250, %v2370
    %v2372 = vpop.f32.mrf.mxu0
    %2373 = vmatprep.mubr.f32.mxu0 0.0
    %v2374 = vand.u32 %v1531, 4294901760
    %2375 = vmatmul.mubr.f32.gmra.mxu0 %v2374
    %v2376 = vpop.f32.mrf.mxu0
    %v2377 = vadd.f32 %v2256, %v2376
    %v2378 = vpop.f32.mrf.mxu0
    %2379 = vmatprep.mubr.f32.mxu0 0.0
    %v2380 = vand.u32 %v1534, 4294901760
    %2381 = vmatmul.mubr.f32.gmra.mxu0 %v2380
    %v2382 = vpop.f32.mrf.mxu0
    %v2383 = vadd.f32 %v2262, %v2382
    %v2384 = vpop.f32.mrf.mxu0
    %2385 = vmatprep.mubr.f32.mxu0 0.0
    %v2386 = vand.u32 %v1537, 4294901760
    %2387 = vmatmul.mubr.f32.gmra.mxu0 %v2386
    %v2388 = vpop.f32.mrf.mxu0
    %v2389 = vadd.f32 %v2268, %v2388
    %v2390 = vpop.f32.mrf.mxu0
    %2391 = vmatprep.mubr.f32.mxu0 0.0
    %v2392 = vand.u32 %v1540, 4294901760
    %2393 = vmatmul.mubr.f32.gmra.mxu0 %v2392
    %v2394 = vpop.f32.mrf.mxu0
    %v2395 = vadd.f32 %v2274, %v2394
    %v2396 = vpop.f32.mrf.mxu0
    %2397 = vmatprep.mubr.f32.mxu0 0.0
    %v2398 = vand.u32 %v1543, 4294901760
    %2399 = vmatmul.mubr.f32.gmra.mxu0 %v2398
    %v2400 = vpop.f32.mrf.mxu0
    %v2401 = vadd.f32 %v2280, %v2400
    %v2402 = vpop.f32.mrf.mxu0
    %2403 = vmatprep.mubr.f32.mxu0 0.0
    %v2404 = vand.u32 %v1546, 4294901760
    %2405 = vmatmul.mubr.f32.gmra.mxu0 %v2404
    %v2406 = vpop.f32.mrf.mxu0
    %v2407 = vadd.f32 %v2286, %v2406
    %v2408 = vpop.f32.mrf.mxu0
    %2409 = vdwg.mxu0
    %v2410 = vmul.f32 %v2365, 0.35355338
    %v2411 = vmul.f32 %v2371, 0.35355338
    %v2412 = vmul.f32 %v2377, 0.35355338
    %v2413 = vmul.f32 %v2383, 0.35355338
    %v2414 = vmul.f32 %v2389, 0.35355338
    %v2415 = vmul.f32 %v2395, 0.35355338
    %v2416 = vmul.f32 %v2401, 0.35355338
    %v2417 = vmul.f32 %v2407, 0.35355338
    %v2418 = vld [vmem:[%s1] sm:$0xff]
    %v2419 = vld [vmem:[%s1 + $0x8] sm:$0xff]
    %v2420 = vld [vmem:[%s1 + $0x10] sm:$0xff]
    %v2421 = vld [vmem:[%s1 + $0x18] sm:$0xff]
    %v2422 = vld [vmem:[%s1 + $0x20] sm:$0xff]
    %v2423 = vld [vmem:[%s1 + $0x28] sm:$0xff]
    %v2424 = vld [vmem:[%s1 + $0x30] sm:$0xff]
    %v2425 = vld [vmem:[%s1 + $0x38] sm:$0xff]
    %vm2426 = vcmp.eq.f32.partialorder %v2418, 0.0
    %vm2427 = vcmp.eq.f32.partialorder %v2419, 0.0
    %vm2428 = vcmp.eq.f32.partialorder %v2420, 0.0
    %vm2429 = vcmp.eq.f32.partialorder %v2421, 0.0
    %vm2430 = vcmp.eq.f32.partialorder %v2422, 0.0
    %vm2431 = vcmp.eq.f32.partialorder %v2423, 0.0
    %vm2432 = vcmp.eq.f32.partialorder %v2424, 0.0
    %vm2433 = vcmp.eq.f32.partialorder %v2425, 0.0
    %v2434 = vsel %vm2426, %v2410, %v2418
    %v2435 = vsel %vm2427, %v2411, %v2419
    %v2436 = vsel %vm2428, %v2412, %v2420
    %v2437 = vsel %vm2429, %v2413, %v2421
    %v2438 = vsel %vm2430, %v2414, %v2422
    %v2439 = vsel %vm2431, %v2415, %v2423
    %v2440 = vsel %vm2432, %v2416, %v2424
    %v2441 = vsel %vm2433, %v2417, %v2425
    %vm2442 = vcmask 523264
    %v2443 = vsel %vm2442, %v2434, -inf
    %2444 = vmax.xlane.f32.xlu0 %v2443
    %v2445 = vpop.xlane.xlu0 %2444
    %v2446 = vsel %vm2442, %v2435, -inf
    %2447 = vmax.xlane.f32.xlu0 %v2446
    %v2448 = vpop.xlane.xlu0 %2447
    %v2449 = vsel %vm2442, %v2436, -inf
    %2450 = vmax.xlane.f32.xlu0 %v2449
    %v2451 = vpop.xlane.xlu0 %2450
    %v2452 = vsel %vm2442, %v2437, -inf
    %2453 = vmax.xlane.f32.xlu0 %v2452
    %v2454 = vpop.xlane.xlu0 %2453
    %v2455 = vsel %vm2442, %v2438, -inf
    %2456 = vmax.xlane.f32.xlu0 %v2455
    %v2457 = vpop.xlane.xlu0 %2456
    %v2458 = vsel %vm2442, %v2439, -inf
    %2459 = vmax.xlane.f32.xlu0 %v2458
    %v2460 = vpop.xlane.xlu0 %2459
    %v2461 = vsel %vm2442, %v2440, -inf
    %2462 = vmax.xlane.f32.xlu0 %v2461
    %v2463 = vpop.xlane.xlu0 %2462
    %v2464 = vsel %vm2442, %v2441, -inf
    %2465 = vmax.xlane.f32.xlu0 %v2464
    %v2466 = vpop.xlane.xlu0 %2465
    %v2467 = vsub.f32 %v2434, %v2445
    %v2468 = vsub.f32 %v2435, %v2448
    %v2469 = vsub.f32 %v2436, %v2451
    %v2470 = vsub.f32 %v2437, %v2454
    %v2471 = vsub.f32 %v2438, %v2457
    %v2472 = vsub.f32 %v2439, %v2460
    %v2473 = vsub.f32 %v2440, %v2463
    %v2474 = vsub.f32 %v2441, %v2466
    %v2475 = vmul.f32 %v2467, 1.442695
    %v2476 = vpow.pop %v2475
    %v2477 = vmul.f32 %v2468, 1.442695
    %v2478 = vpow.pop %v2477
    %v2479 = vmul.f32 %v2469, 1.442695
    %v2480 = vpow.pop %v2479
    %v2481 = vmul.f32 %v2470, 1.442695
    %v2482 = vpow.pop %v2481
    %v2483 = vmul.f32 %v2471, 1.442695
    %v2484 = vpow.pop %v2483
    %v2485 = vmul.f32 %v2472, 1.442695
    %v2486 = vpow.pop %v2485
    %v2487 = vmul.f32 %v2473, 1.442695
    %v2488 = vpow.pop %v2487
    %v2489 = vmul.f32 %v2474, 1.442695
    %v2490 = vpow.pop %v2489
    %v2491 = vsel %vm2442, %v2476, 0.0
    %2492 = vadd.xlane.f32.xlu0 %v2491
    %v2493 = vpop.xlane.xlu0 %2492
    %v2494 = vsel %vm2442, %v2478, 0.0
    %2495 = vadd.xlane.f32.xlu0 %v2494
    %v2496 = vpop.xlane.xlu0 %2495
    %v2497 = vsel %vm2442, %v2480, 0.0
    %2498 = vadd.xlane.f32.xlu0 %v2497
    %v2499 = vpop.xlane.xlu0 %2498
    %v2500 = vsel %vm2442, %v2482, 0.0
    %2501 = vadd.xlane.f32.xlu0 %v2500
    %v2502 = vpop.xlane.xlu0 %2501
    %v2503 = vsel %vm2442, %v2484, 0.0
    %2504 = vadd.xlane.f32.xlu0 %v2503
    %v2505 = vpop.xlane.xlu0 %2504
    %v2506 = vsel %vm2442, %v2486, 0.0
    %2507 = vadd.xlane.f32.xlu0 %v2506
    %v2508 = vpop.xlane.xlu0 %2507
    %v2509 = vsel %vm2442, %v2488, 0.0
    %2510 = vadd.xlane.f32.xlu0 %v2509
    %v2511 = vpop.xlane.xlu0 %2510
    %v2512 = vsel %vm2442, %v2490, 0.0
    %2513 = vadd.xlane.f32.xlu0 %v2512
    %v2514 = vpop.xlane.xlu0 %2513
    %v2515 = vrcp.pop %v2493
    %v2516 = vmul.f32 %v2476, %v2515
    %v2517 = vrcp.pop %v2496
    %v2518 = vmul.f32 %v2478, %v2517
    %v2519 = vrcp.pop %v2499
    %v2520 = vmul.f32 %v2480, %v2519
    %v2521 = vrcp.pop %v2502
    %v2522 = vmul.f32 %v2482, %v2521
    %v2523 = vrcp.pop %v2505
    %v2524 = vmul.f32 %v2484, %v2523
    %v2525 = vrcp.pop %v2508
    %v2526 = vmul.f32 %v2486, %v2525
    %v2527 = vrcp.pop %v2511
    %v2528 = vmul.f32 %v2488, %v2527
    %v2529 = vrcp.pop %v2514
    %v2530 = vmul.f32 %v2490, %v2529
    %v2532 = vsel %vm2442, %v2516, 0
    %v2535 = vsel %vm2442, %v2518, 0
    %v2538 = vsel %vm2442, %v2520, 0
    %v2541 = vsel %vm2442, %v2522, 0
    %v2544 = vsel %vm2442, %v2524, 0
    %v2547 = vsel %vm2442, %v2526, 0
    %v2550 = vsel %vm2442, %v2528, 0
    %v2553 = vsel %vm2442, %v2530, 0
    %2555 = vmatprep.subr.mxu0 0.0
    %2556 = vmatpush1.msra.mxu0 0.0
    %2557 = vmatprep.subr.mxu0 0.0
    %2558 = vmatpush1.msra.mxu0 0.0
    %2559 = vmatprep.subr.mxu0 0.0
    %2560 = vmatpush1.msra.mxu0 0.0
    %2561 = vmatprep.subr.mxu0 0.0
    %2562 = vmatpush1.msra.mxu0 0.0
    %2563 = vmatprep.subr.mxu0 0.0
    %2564 = vmatpush1.msra.mxu0 0.0
    %2565 = vmatprep.subr.mxu0 0.0
    %2566 = vmatpush1.msra.mxu0 0.0
    %2567 = vmatprep.subr.mxu0 0.0
    %2568 = vmatpush1.msra.mxu0 0.0
    %2569 = vmatprep.subr.mxu0 0.0
    %2570 = vmatpush1.msra.mxu0 0.0
    %2571 = vmatprep.subr.mxu0 0.0
    %v2572 = vand.u32 %v1522, 4294901760
    %2573 = vmatpush1.msra.mxu0 %v2572
    %2574 = vmatprep.subr.mxu0 0.0
    %v2575 = vand.u32 %v1454, 4294901760
    %2576 = vmatpush1.msra.mxu0 %v2575
    %2577 = vmatprep.subr.mxu0 0.0
    %v2578 = vand.u32 %v1521, 4294901760
    %2579 = vmatpush1.msra.mxu0 %v2578
    %2580 = vmatprep.subr.mxu0 0.0
    %v2581 = vand.u32 %v1453, 4294901760
    %2582 = vmatpush1.msra.mxu0 %v2581
    %2583 = vmatprep.subr.mxu0 0.0
    %v2584 = vand.u32 %v1520, 4294901760
    %2585 = vmatpush1.msra.mxu0 %v2584
    %2586 = vmatprep.subr.mxu0 0.0
    %v2587 = vand.u32 %v1452, 4294901760
    %2588 = vmatpush1.msra.mxu0 %v2587
    %2589 = vmatprep.subr.mxu0 0.0
    %v2590 = vand.u32 %v1519, 4294901760
    %2591 = vmatpush1.msra.mxu0 %v2590
    %2592 = vmatprep.subr.mxu0 0.0
    %v2593 = vand.u32 %v1451, 4294901760
    %2594 = vmatpush1.msra.mxu0 %v2593
    %2595 = vmatprep.subr.mxu0 0.0
    %2596 = vmatpush2.msra.mxu0 0.0
    %2597 = vmatprep.subr.mxu0 0.0
    %2598 = vmatpush2.msra.mxu0 0.0
    %2599 = vmatprep.subr.mxu0 0.0
    %2600 = vmatpush2.msra.mxu0 0.0
    %2601 = vmatprep.subr.mxu0 0.0
    %2602 = vmatpush2.msra.mxu0 0.0
    %2603 = vmatprep.subr.mxu0 0.0
    %2604 = vmatpush2.msra.mxu0 0.0
    %2605 = vmatprep.subr.mxu0 0.0
    %2606 = vmatpush2.msra.mxu0 0.0
    %2607 = vmatprep.subr.mxu0 0.0
    %2608 = vmatpush2.msra.mxu0 0.0
    %2609 = vmatprep.subr.mxu0 0.0
    %2610 = vmatpush2.msra.mxu0 0.0
    %2611 = vmatprep.subr.mxu0 0.0
    %2612 = vmatpush2.msra.mxu0 0.0
    %2613 = vmatprep.subr.mxu0 0.0
    %2614 = vmatpush2.msra.mxu0 0.0
    %2615 = vmatprep.subr.mxu0 0.0
    %2616 = vmatpush2.msra.mxu0 0.0
    %2617 = vmatprep.subr.mxu0 0.0
    %2618 = vmatpush2.msra.mxu0 0.0
    %2619 = vmatprep.subr.mxu0 0.0
    %2620 = vmatpush2.msra.mxu0 0.0
    %2621 = vmatprep.subr.mxu0 0.0
    %2622 = vmatpush2.msra.mxu0 0.0
    %2623 = vmatprep.subr.mxu0 0.0
    %2624 = vmatpush2.msra.mxu0 0.0
    %2625 = vmatprep.subr.mxu0 0.0
    %2626 = vmatpush2.msra.mxu0 0.0
    %2627 = vmatprep.mubr.f32.mxu0 0.0
    %v2628 = vand.u32 %v2532, 4294901760
    %v2629 = vsub.f32 %v2532, %v2628
    %v2630 = vand.u32 %v2629, 4294901760
    %v2631 = vsub.f32 %v2629, %v2630
    %v2632 = vand.u32 %v2631, 4294901760
    %2633 = vmatmul.mubr.f32.gmra.mxu0 %v2632
    %v2634 = vpop.f32.mrf.mxu0
    %v2635 = vadd.f32 0.0, %v2634
    %v2636 = vpop.f32.mrf.mxu0
    %2637 = vmatprep.mubr.f32.mxu0 0.0
    %v2638 = vand.u32 %v2535, 4294901760
    %v2639 = vsub.f32 %v2535, %v2638
    %v2640 = vand.u32 %v2639, 4294901760
    %v2641 = vsub.f32 %v2639, %v2640
    %v2642 = vand.u32 %v2641, 4294901760
    %2643 = vmatmul.mubr.f32.gmra.mxu0 %v2642
    %v2644 = vpop.f32.mrf.mxu0
    %v2645 = vadd.f32 0.0, %v2644
    %v2646 = vpop.f32.mrf.mxu0
    %2647 = vmatprep.mubr.f32.mxu0 0.0
    %v2648 = vand.u32 %v2538, 4294901760
    %v2649 = vsub.f32 %v2538, %v2648
    %v2650 = vand.u32 %v2649, 4294901760
    %v2651 = vsub.f32 %v2649, %v2650
    %v2652 = vand.u32 %v2651, 4294901760
    %2653 = vmatmul.mubr.f32.gmra.mxu0 %v2652
    %v2654 = vpop.f32.mrf.mxu0
    %v2655 = vadd.f32 0.0, %v2654
    %v2656 = vpop.f32.mrf.mxu0
    %2657 = vmatprep.mubr.f32.mxu0 0.0
    %v2658 = vand.u32 %v2541, 4294901760
    %v2659 = vsub.f32 %v2541, %v2658
    %v2660 = vand.u32 %v2659, 4294901760
    %v2661 = vsub.f32 %v2659, %v2660
    %v2662 = vand.u32 %v2661, 4294901760
    %2663 = vmatmul.mubr.f32.gmra.mxu0 %v2662
    %v2664 = vpop.f32.mrf.mxu0
    %v2665 = vadd.f32 0.0, %v2664
    %v2666 = vpop.f32.mrf.mxu0
    %2667 = vmatprep.mubr.f32.mxu0 0.0
    %v2668 = vand.u32 %v2544, 4294901760
    %v2669 = vsub.f32 %v2544, %v2668
    %v2670 = vand.u32 %v2669, 4294901760
    %v2671 = vsub.f32 %v2669, %v2670
    %v2672 = vand.u32 %v2671, 4294901760
    %2673 = vmatmul.mubr.f32.gmra.mxu0 %v2672
    %v2674 = vpop.f32.mrf.mxu0
    %v2675 = vadd.f32 0.0, %v2674
    %v2676 = vpop.f32.mrf.mxu0
    %2677 = vmatprep.mubr.f32.mxu0 0.0
    %v2678 = vand.u32 %v2547, 4294901760
    %v2679 = vsub.f32 %v2547, %v2678
    %v2680 = vand.u32 %v2679, 4294901760
    %v2681 = vsub.f32 %v2679, %v2680
    %v2682 = vand.u32 %v2681, 4294901760
    %2683 = vmatmul.mubr.f32.gmra.mxu0 %v2682
    %v2684 = vpop.f32.mrf.mxu0
    %v2685 = vadd.f32 0.0, %v2684
    %v2686 = vpop.f32.mrf.mxu0
    %2687 = vmatprep.mubr.f32.mxu0 0.0
    %v2688 = vand.u32 %v2550, 4294901760
    %v2689 = vsub.f32 %v2550, %v2688
    %v2690 = vand.u32 %v2689, 4294901760
    %v2691 = vsub.f32 %v2689, %v2690
    %v2692 = vand.u32 %v2691, 4294901760
    %2693 = vmatmul.mubr.f32.gmra.mxu0 %v2692
    %v2694 = vpop.f32.mrf.mxu0
    %v2695 = vadd.f32 0.0, %v2694
    %v2696 = vpop.f32.mrf.mxu0
    %2697 = vmatprep.mubr.f32.mxu0 0.0
    %v2698 = vand.u32 %v2553, 4294901760
    %v2699 = vsub.f32 %v2553, %v2698
    %v2700 = vand.u32 %v2699, 4294901760
    %v2701 = vsub.f32 %v2699, %v2700
    %v2702 = vand.u32 %v2701, 4294901760
    %2703 = vmatmul.mubr.f32.gmra.mxu0 %v2702
    %v2704 = vpop.f32.mrf.mxu0
    %v2705 = vadd.f32 0.0, %v2704
    %v2706 = vpop.f32.mrf.mxu0
    %2707 = vdwg.mxu0
    %2708 = vmatprep.subr.mxu0 0.0
    %2709 = vmatpush1.msra.mxu0 0.0
    %2710 = vmatprep.subr.mxu0 0.0
    %2711 = vmatpush1.msra.mxu0 0.0
    %2712 = vmatprep.subr.mxu0 0.0
    %2713 = vmatpush1.msra.mxu0 0.0
    %2714 = vmatprep.subr.mxu0 0.0
    %2715 = vmatpush1.msra.mxu0 0.0
    %2716 = vmatprep.subr.mxu0 0.0
    %2717 = vmatpush1.msra.mxu0 0.0
    %2718 = vmatprep.subr.mxu0 0.0
    %2719 = vmatpush1.msra.mxu0 0.0
    %2720 = vmatprep.subr.mxu0 0.0
    %2721 = vmatpush1.msra.mxu0 0.0
    %2722 = vmatprep.subr.mxu0 0.0
    %2723 = vmatpush1.msra.mxu0 0.0
    %2724 = vmatprep.subr.mxu0 0.0
    %v2725 = vand.u32 %v1522, 4294901760
    %v2726 = vsub.f32 %v1522, %v2725
    %v2727 = vand.u32 %v2726, 4294901760
    %v2728 = vsub.f32 %v2726, %v2727
    %v2729 = vand.u32 %v2728, 4294901760
    %2730 = vmatpush1.msra.mxu0 %v2729
    %2731 = vmatprep.subr.mxu0 0.0
    %v2732 = vand.u32 %v1454, 4294901760
    %v2733 = vsub.f32 %v1454, %v2732
    %v2734 = vand.u32 %v2733, 4294901760
    %v2735 = vsub.f32 %v2733, %v2734
    %v2736 = vand.u32 %v2735, 4294901760
    %2737 = vmatpush1.msra.mxu0 %v2736
    %2738 = vmatprep.subr.mxu0 0.0
    %v2739 = vand.u32 %v1521, 4294901760
    %v2740 = vsub.f32 %v1521, %v2739
    %v2741 = vand.u32 %v2740, 4294901760
    %v2742 = vsub.f32 %v2740, %v2741
    %v2743 = vand.u32 %v2742, 4294901760
    %2744 = vmatpush1.msra.mxu0 %v2743
    %2745 = vmatprep.subr.mxu0 0.0
    %v2746 = vand.u32 %v1453, 4294901760
    %v2747 = vsub.f32 %v1453, %v2746
    %v2748 = vand.u32 %v2747, 4294901760
    %v2749 = vsub.f32 %v2747, %v2748
    %v2750 = vand.u32 %v2749, 4294901760
    %2751 = vmatpush1.msra.mxu0 %v2750
    %2752 = vmatprep.subr.mxu0 0.0
    %v2753 = vand.u32 %v1520, 4294901760
    %v2754 = vsub.f32 %v1520, %v2753
    %v2755 = vand.u32 %v2754, 4294901760
    %v2756 = vsub.f32 %v2754, %v2755
    %v2757 = vand.u32 %v2756, 4294901760
    %2758 = vmatpush1.msra.mxu0 %v2757
    %2759 = vmatprep.subr.mxu0 0.0
    %v2760 = vand.u32 %v1452, 4294901760
    %v2761 = vsub.f32 %v1452, %v2760
    %v2762 = vand.u32 %v2761, 4294901760
    %v2763 = vsub.f32 %v2761, %v2762
    %v2764 = vand.u32 %v2763, 4294901760
    %2765 = vmatpush1.msra.mxu0 %v2764
    %2766 = vmatprep.subr.mxu0 0.0
    %v2767 = vand.u32 %v1519, 4294901760
    %v2768 = vsub.f32 %v1519, %v2767
    %v2769 = vand.u32 %v2768, 4294901760
    %v2770 = vsub.f32 %v2768, %v2769
    %v2771 = vand.u32 %v2770, 4294901760
    %2772 = vmatpush1.msra.mxu0 %v2771
    %2773 = vmatprep.subr.mxu0 0.0
    %v2774 = vand.u32 %v1451, 4294901760
    %v2775 = vsub.f32 %v1451, %v2774
    %v2776 = vand.u32 %v2775, 4294901760
    %v2777 = vsub.f32 %v2775, %v2776
    %v2778 = vand.u32 %v2777, 4294901760
    %2779 = vmatpush1.msra.mxu0 %v2778
    %2780 = vmatprep.subr.mxu0 0.0
    %2781 = vmatpush2.msra.mxu0 0.0
    %2782 = vmatprep.subr.mxu0 0.0
    %2783 = vmatpush2.msra.mxu0 0.0
    %2784 = vmatprep.subr.mxu0 0.0
    %2785 = vmatpush2.msra.mxu0 0.0
    %2786 = vmatprep.subr.mxu0 0.0
    %2787 = vmatpush2.msra.mxu0 0.0
    %2788 = vmatprep.subr.mxu0 0.0
    %2789 = vmatpush2.msra.mxu0 0.0
    %2790 = vmatprep.subr.mxu0 0.0
    %2791 = vmatpush2.msra.mxu0 0.0
    %2792 = vmatprep.subr.mxu0 0.0
    %2793 = vmatpush2.msra.mxu0 0.0
    %2794 = vmatprep.subr.mxu0 0.0
    %2795 = vmatpush2.msra.mxu0 0.0
    %2796 = vmatprep.subr.mxu0 0.0
    %2797 = vmatpush2.msra.mxu0 0.0
    %2798 = vmatprep.subr.mxu0 0.0
    %2799 = vmatpush2.msra.mxu0 0.0
    %2800 = vmatprep.subr.mxu0 0.0
    %2801 = vmatpush2.msra.mxu0 0.0
    %2802 = vmatprep.subr.mxu0 0.0
    %2803 = vmatpush2.msra.mxu0 0.0
    %2804 = vmatprep.subr.mxu0 0.0
    %2805 = vmatpush2.msra.mxu0 0.0
    %2806 = vmatprep.subr.mxu0 0.0
    %2807 = vmatpush2.msra.mxu0 0.0
    %2808 = vmatprep.subr.mxu0 0.0
    %2809 = vmatpush2.msra.mxu0 0.0
    %2810 = vmatprep.subr.mxu0 0.0
    %2811 = vmatpush2.msra.mxu0 0.0
    %2812 = vmatprep.mubr.f32.mxu0 0.0
    %v2813 = vand.u32 %v2532, 4294901760
    %2814 = vmatmul.mubr.f32.gmra.mxu0 %v2813
    %v2815 = vpop.f32.mrf.mxu0
    %v2816 = vadd.f32 %v2635, %v2815
    %v2817 = vpop.f32.mrf.mxu0
    %2818 = vmatprep.mubr.f32.mxu0 0.0
    %v2819 = vand.u32 %v2535, 4294901760
    %2820 = vmatmul.mubr.f32.gmra.mxu0 %v2819
    %v2821 = vpop.f32.mrf.mxu0
    %v2822 = vadd.f32 %v2645, %v2821
    %v2823 = vpop.f32.mrf.mxu0
    %2824 = vmatprep.mubr.f32.mxu0 0.0
    %v2825 = vand.u32 %v2538, 4294901760
    %2826 = vmatmul.mubr.f32.gmra.mxu0 %v2825
    %v2827 = vpop.f32.mrf.mxu0
    %v2828 = vadd.f32 %v2655, %v2827
    %v2829 = vpop.f32.mrf.mxu0
    %2830 = vmatprep.mubr.f32.mxu0 0.0
    %v2831 = vand.u32 %v2541, 4294901760
    %2832 = vmatmul.mubr.f32.gmra.mxu0 %v2831
    %v2833 = vpop.f32.mrf.mxu0
    %v2834 = vadd.f32 %v2665, %v2833
    %v2835 = vpop.f32.mrf.mxu0
    %2836 = vmatprep.mubr.f32.mxu0 0.0
    %v2837 = vand.u32 %v2544, 4294901760
    %2838 = vmatmul.mubr.f32.gmra.mxu0 %v2837
    %v2839 = vpop.f32.mrf.mxu0
    %v2840 = vadd.f32 %v2675, %v2839
    %v2841 = vpop.f32.mrf.mxu0
    %2842 = vmatprep.mubr.f32.mxu0 0.0
    %v2843 = vand.u32 %v2547, 4294901760
    %2844 = vmatmul.mubr.f32.gmra.mxu0 %v2843
    %v2845 = vpop.f32.mrf.mxu0
    %v2846 = vadd.f32 %v2685, %v2845
    %v2847 = vpop.f32.mrf.mxu0
    %2848 = vmatprep.mubr.f32.mxu0 0.0
    %v2849 = vand.u32 %v2550, 4294901760
    %2850 = vmatmul.mubr.f32.gmra.mxu0 %v2849
    %v2851 = vpop.f32.mrf.mxu0
    %v2852 = vadd.f32 %v2695, %v2851
    %v2853 = vpop.f32.mrf.mxu0
    %2854 = vmatprep.mubr.f32.mxu0 0.0
    %v2855 = vand.u32 %v2553, 4294901760
    %2856 = vmatmul.mubr.f32.gmra.mxu0 %v2855
    %v2857 = vpop.f32.mrf.mxu0
    %v2858 = vadd.f32 %v2705, %v2857
    %v2859 = vpop.f32.mrf.mxu0
    %2860 = vdwg.mxu0
    %2861 = vmatprep.subr.mxu0 0.0
    %2862 = vmatpush1.msra.mxu0 0.0
    %2863 = vmatprep.subr.mxu0 0.0
    %2864 = vmatpush1.msra.mxu0 0.0
    %2865 = vmatprep.subr.mxu0 0.0
    %2866 = vmatpush1.msra.mxu0 0.0
    %2867 = vmatprep.subr.mxu0 0.0
    %2868 = vmatpush1.msra.mxu0 0.0
    %2869 = vmatprep.subr.mxu0 0.0
    %2870 = vmatpush1.msra.mxu0 0.0
    %2871 = vmatprep.subr.mxu0 0.0
    %2872 = vmatpush1.msra.mxu0 0.0
    %2873 = vmatprep.subr.mxu0 0.0
    %2874 = vmatpush1.msra.mxu0 0.0
    %2875 = vmatprep.subr.mxu0 0.0
    %2876 = vmatpush1.msra.mxu0 0.0
    %2877 = vmatprep.subr.mxu0 0.0
    %v2878 = vand.u32 %v1522, 4294901760
    %v2879 = vsub.f32 %v1522, %v2878
    %2880 = vmatpush1.msra.mxu0 %v2879
    %2881 = vmatprep.subr.mxu0 0.0
    %v2882 = vand.u32 %v1454, 4294901760
    %v2883 = vsub.f32 %v1454, %v2882
    %2884 = vmatpush1.msra.mxu0 %v2883
    %2885 = vmatprep.subr.mxu0 0.0
    %v2886 = vand.u32 %v1521, 4294901760
    %v2887 = vsub.f32 %v1521, %v2886
    %2888 = vmatpush1.msra.mxu0 %v2887
    %2889 = vmatprep.subr.mxu0 0.0
    %v2890 = vand.u32 %v1453, 4294901760
    %v2891 = vsub.f32 %v1453, %v2890
    %2892 = vmatpush1.msra.mxu0 %v2891
    %2893 = vmatprep.subr.mxu0 0.0
    %v2894 = vand.u32 %v1520, 4294901760
    %v2895 = vsub.f32 %v1520, %v2894
    %2896 = vmatpush1.msra.mxu0 %v2895
    %2897 = vmatprep.subr.mxu0 0.0
    %v2898 = vand.u32 %v1452, 4294901760
    %v2899 = vsub.f32 %v1452, %v2898
    %2900 = vmatpush1.msra.mxu0 %v2899
    %2901 = vmatprep.subr.mxu0 0.0
    %v2902 = vand.u32 %v1519, 4294901760
    %v2903 = vsub.f32 %v1519, %v2902
    %2904 = vmatpush1.msra.mxu0 %v2903
    %2905 = vmatprep.subr.mxu0 0.0
    %v2906 = vand.u32 %v1451, 4294901760
    %v2907 = vsub.f32 %v1451, %v2906
    %2908 = vmatpush1.msra.mxu0 %v2907
    %2909 = vmatprep.subr.mxu0 0.0
    %2910 = vmatpush2.msra.mxu0 0.0
    %2911 = vmatprep.subr.mxu0 0.0
    %2912 = vmatpush2.msra.mxu0 0.0
    %2913 = vmatprep.subr.mxu0 0.0
    %2914 = vmatpush2.msra.mxu0 0.0
    %2915 = vmatprep.subr.mxu0 0.0
    %2916 = vmatpush2.msra.mxu0 0.0
    %2917 = vmatprep.subr.mxu0 0.0
    %2918 = vmatpush2.msra.mxu0 0.0
    %2919 = vmatprep.subr.mxu0 0.0
    %2920 = vmatpush2.msra.mxu0 0.0
    %2921 = vmatprep.subr.mxu0 0.0
    %2922 = vmatpush2.msra.mxu0 0.0
    %2923 = vmatprep.subr.mxu0 0.0
    %2924 = vmatpush2.msra.mxu0 0.0
    %2925 = vmatprep.subr.mxu0 0.0
    %2926 = vmatpush2.msra.mxu0 0.0
    %2927 = vmatprep.subr.mxu0 0.0
    %2928 = vmatpush2.msra.mxu0 0.0
    %2929 = vmatprep.subr.mxu0 0.0
    %2930 = vmatpush2.msra.mxu0 0.0
    %2931 = vmatprep.subr.mxu0 0.0
    %2932 = vmatpush2.msra.mxu0 0.0
    %2933 = vmatprep.subr.mxu0 0.0
    %2934 = vmatpush2.msra.mxu0 0.0
    %2935 = vmatprep.subr.mxu0 0.0
    %2936 = vmatpush2.msra.mxu0 0.0
    %2937 = vmatprep.subr.mxu0 0.0
    %2938 = vmatpush2.msra.mxu0 0.0
    %2939 = vmatprep.subr.mxu0 0.0
    %2940 = vmatpush2.msra.mxu0 0.0
    %2941 = vmatprep.mubr.f32.mxu0 0.0
    %v2942 = vand.u32 %v2532, 4294901760
    %v2943 = vsub.f32 %v2532, %v2942
    %2944 = vmatmul.mubr.f32.gmra.mxu0 %v2943
    %v2945 = vpop.f32.mrf.mxu0
    %v2946 = vadd.f32 %v2816, %v2945
    %v2947 = vpop.f32.mrf.mxu0
    %2948 = vmatprep.mubr.f32.mxu0 0.0
    %v2949 = vand.u32 %v2535, 4294901760
    %v2950 = vsub.f32 %v2535, %v2949
    %2951 = vmatmul.mubr.f32.gmra.mxu0 %v2950
    %v2952 = vpop.f32.mrf.mxu0
    %v2953 = vadd.f32 %v2822, %v2952
    %v2954 = vpop.f32.mrf.mxu0
    %2955 = vmatprep.mubr.f32.mxu0 0.0
    %v2956 = vand.u32 %v2538, 4294901760
    %v2957 = vsub.f32 %v2538, %v2956
    %2958 = vmatmul.mubr.f32.gmra.mxu0 %v2957
    %v2959 = vpop.f32.mrf.mxu0
    %v2960 = vadd.f32 %v2828, %v2959
    %v2961 = vpop.f32.mrf.mxu0
    %2962 = vmatprep.mubr.f32.mxu0 0.0
    %v2963 = vand.u32 %v2541, 4294901760
    %v2964 = vsub.f32 %v2541, %v2963
    %2965 = vmatmul.mubr.f32.gmra.mxu0 %v2964
    %v2966 = vpop.f32.mrf.mxu0
    %v2967 = vadd.f32 %v2834, %v2966
    %v2968 = vpop.f32.mrf.mxu0
    %2969 = vmatprep.mubr.f32.mxu0 0.0
    %v2970 = vand.u32 %v2544, 4294901760
    %v2971 = vsub.f32 %v2544, %v2970
    %2972 = vmatmul.mubr.f32.gmra.mxu0 %v2971
    %v2973 = vpop.f32.mrf.mxu0
    %v2974 = vadd.f32 %v2840, %v2973
    %v2975 = vpop.f32.mrf.mxu0
    %2976 = vmatprep.mubr.f32.mxu0 0.0
    %v2977 = vand.u32 %v2547, 4294901760
    %v2978 = vsub.f32 %v2547, %v2977
    %2979 = vmatmul.mubr.f32.gmra.mxu0 %v2978
    %v2980 = vpop.f32.mrf.mxu0
    %v2981 = vadd.f32 %v2846, %v2980
    %v2982 = vpop.f32.mrf.mxu0
    %2983 = vmatprep.mubr.f32.mxu0 0.0
    %v2984 = vand.u32 %v2550, 4294901760
    %v2985 = vsub.f32 %v2550, %v2984
    %2986 = vmatmul.mubr.f32.gmra.mxu0 %v2985
    %v2987 = vpop.f32.mrf.mxu0
    %v2988 = vadd.f32 %v2852, %v2987
    %v2989 = vpop.f32.mrf.mxu0
    %2990 = vmatprep.mubr.f32.mxu0 0.0
    %v2991 = vand.u32 %v2553, 4294901760
    %v2992 = vsub.f32 %v2553, %v2991
    %2993 = vmatmul.mubr.f32.gmra.mxu0 %v2992
    %v2994 = vpop.f32.mrf.mxu0
    %v2995 = vadd.f32 %v2858, %v2994
    %v2996 = vpop.f32.mrf.mxu0
    %2997 = vdwg.mxu0
    %2998 = vmatprep.subr.mxu0 0.0
    %2999 = vmatpush1.msra.mxu0 0.0
    %3000 = vmatprep.subr.mxu0 0.0
    %3001 = vmatpush1.msra.mxu0 0.0
    %3002 = vmatprep.subr.mxu0 0.0
    %3003 = vmatpush1.msra.mxu0 0.0
    %3004 = vmatprep.subr.mxu0 0.0
    %3005 = vmatpush1.msra.mxu0 0.0
    %3006 = vmatprep.subr.mxu0 0.0
    %3007 = vmatpush1.msra.mxu0 0.0
    %3008 = vmatprep.subr.mxu0 0.0
    %3009 = vmatpush1.msra.mxu0 0.0
    %3010 = vmatprep.subr.mxu0 0.0
    %3011 = vmatpush1.msra.mxu0 0.0
    %3012 = vmatprep.subr.mxu0 0.0
    %3013 = vmatpush1.msra.mxu0 0.0
    %3014 = vmatprep.subr.mxu0 0.0
    %v3015 = vand.u32 %v1522, 4294901760
    %3016 = vmatpush1.msra.mxu0 %v3015
    %3017 = vmatprep.subr.mxu0 0.0
    %v3018 = vand.u32 %v1454, 4294901760
    %3019 = vmatpush1.msra.mxu0 %v3018
    %3020 = vmatprep.subr.mxu0 0.0
    %v3021 = vand.u32 %v1521, 4294901760
    %3022 = vmatpush1.msra.mxu0 %v3021
    %3023 = vmatprep.subr.mxu0 0.0
    %v3024 = vand.u32 %v1453, 4294901760
    %3025 = vmatpush1.msra.mxu0 %v3024
    %3026 = vmatprep.subr.mxu0 0.0
    %v3027 = vand.u32 %v1520, 4294901760
    %3028 = vmatpush1.msra.mxu0 %v3027
    %3029 = vmatprep.subr.mxu0 0.0
    %v3030 = vand.u32 %v1452, 4294901760
    %3031 = vmatpush1.msra.mxu0 %v3030
    %3032 = vmatprep.subr.mxu0 0.0
    %v3033 = vand.u32 %v1519, 4294901760
    %3034 = vmatpush1.msra.mxu0 %v3033
    %3035 = vmatprep.subr.mxu0 0.0
    %v3036 = vand.u32 %v1451, 4294901760
    %3037 = vmatpush1.msra.mxu0 %v3036
    %3038 = vmatprep.subr.mxu0 0.0
    %3039 = vmatpush2.msra.mxu0 0.0
    %3040 = vmatprep.subr.mxu0 0.0
    %3041 = vmatpush2.msra.mxu0 0.0
    %3042 = vmatprep.subr.mxu0 0.0
    %3043 = vmatpush2.msra.mxu0 0.0
    %3044 = vmatprep.subr.mxu0 0.0
    %3045 = vmatpush2.msra.mxu0 0.0
    %3046 = vmatprep.subr.mxu0 0.0
    %3047 = vmatpush2.msra.mxu0 0.0
    %3048 = vmatprep.subr.mxu0 0.0
    %3049 = vmatpush2.msra.mxu0 0.0
    %3050 = vmatprep.subr.mxu0 0.0
    %3051 = vmatpush2.msra.mxu0 0.0
    %3052 = vmatprep.subr.mxu0 0.0
    %3053 = vmatpush2.msra.mxu0 0.0
    %3054 = vmatprep.subr.mxu0 0.0
    %3055 = vmatpush2.msra.mxu0 0.0
    %3056 = vmatprep.subr.mxu0 0.0
    %3057 = vmatpush2.msra.mxu0 0.0
    %3058 = vmatprep.subr.mxu0 0.0
    %3059 = vmatpush2.msra.mxu0 0.0
    %3060 = vmatprep.subr.mxu0 0.0
    %3061 = vmatpush2.msra.mxu0 0.0
    %3062 = vmatprep.subr.mxu0 0.0
    %3063 = vmatpush2.msra.mxu0 0.0
    %3064 = vmatprep.subr.mxu0 0.0
    %3065 = vmatpush2.msra.mxu0 0.0
    %3066 = vmatprep.subr.mxu0 0.0
    %3067 = vmatpush2.msra.mxu0 0.0
    %3068 = vmatprep.subr.mxu0 0.0
    %3069 = vmatpush2.msra.mxu0 0.0
    %3070 = vmatprep.mubr.f32.mxu0 0.0
    %v3071 = vand.u32 %v2532, 4294901760
    %v3072 = vsub.f32 %v2532, %v3071
    %v3073 = vand.u32 %v3072, 4294901760
    %3074 = vmatmul.mubr.f32.gmra.mxu0 %v3073
    %v3075 = vpop.f32.mrf.mxu0
    %v3076 = vadd.f32 %v2946, %v3075
    %v3077 = vpop.f32.mrf.mxu0
    %3078 = vmatprep.mubr.f32.mxu0 0.0
    %v3079 = vand.u32 %v2535, 4294901760
    %v3080 = vsub.f32 %v2535, %v3079
    %v3081 = vand.u32 %v3080, 4294901760
    %3082 = vmatmul.mubr.f32.gmra.mxu0 %v3081
    %v3083 = vpop.f32.mrf.mxu0
    %v3084 = vadd.f32 %v2953, %v3083
    %v3085 = vpop.f32.mrf.mxu0
    %3086 = vmatprep.mubr.f32.mxu0 0.0
    %v3087 = vand.u32 %v2538, 4294901760
    %v3088 = vsub.f32 %v2538, %v3087
    %v3089 = vand.u32 %v3088, 4294901760
    %3090 = vmatmul.mubr.f32.gmra.mxu0 %v3089
    %v3091 = vpop.f32.mrf.mxu0
    %v3092 = vadd.f32 %v2960, %v3091
    %v3093 = vpop.f32.mrf.mxu0
    %3094 = vmatprep.mubr.f32.mxu0 0.0
    %v3095 = vand.u32 %v2541, 4294901760
    %v3096 = vsub.f32 %v2541, %v3095
    %v3097 = vand.u32 %v3096, 4294901760
    %3098 = vmatmul.mubr.f32.gmra.mxu0 %v3097
    %v3099 = vpop.f32.mrf.mxu0
    %v3100 = vadd.f32 %v2967, %v3099
    %v3101 = vpop.f32.mrf.mxu0
    %3102 = vmatprep.mubr.f32.mxu0 0.0
    %v3103 = vand.u32 %v2544, 4294901760
    %v3104 = vsub.f32 %v2544, %v3103
    %v3105 = vand.u32 %v3104, 4294901760
    %3106 = vmatmul.mubr.f32.gmra.mxu0 %v3105
    %v3107 = vpop.f32.mrf.mxu0
    %v3108 = vadd.f32 %v2974, %v3107
    %v3109 = vpop.f32.mrf.mxu0
    %3110 = vmatprep.mubr.f32.mxu0 0.0
    %v3111 = vand.u32 %v2547, 4294901760
    %v3112 = vsub.f32 %v2547, %v3111
    %v3113 = vand.u32 %v3112, 4294901760
    %3114 = vmatmul.mubr.f32.gmra.mxu0 %v3113
    %v3115 = vpop.f32.mrf.mxu0
    %v3116 = vadd.f32 %v2981, %v3115
    %v3117 = vpop.f32.mrf.mxu0
    %3118 = vmatprep.mubr.f32.mxu0 0.0
    %v3119 = vand.u32 %v2550, 4294901760
    %v3120 = vsub.f32 %v2550, %v3119
    %v3121 = vand.u32 %v3120, 4294901760
    %3122 = vmatmul.mubr.f32.gmra.mxu0 %v3121
    %v3123 = vpop.f32.mrf.mxu0
    %v3124 = vadd.f32 %v2988, %v3123
    %v3125 = vpop.f32.mrf.mxu0
    %3126 = vmatprep.mubr.f32.mxu0 0.0
    %v3127 = vand.u32 %v2553, 4294901760
    %v3128 = vsub.f32 %v2553, %v3127
    %v3129 = vand.u32 %v3128, 4294901760
    %3130 = vmatmul.mubr.f32.gmra.mxu0 %v3129
    %v3131 = vpop.f32.mrf.mxu0
    %v3132 = vadd.f32 %v2995, %v3131
    %v3133 = vpop.f32.mrf.mxu0
    %3134 = vdwg.mxu0
    %3135 = vmatprep.subr.mxu0 0.0
    %3136 = vmatpush1.msra.mxu0 0.0
    %3137 = vmatprep.subr.mxu0 0.0
    %3138 = vmatpush1.msra.mxu0 0.0
    %3139 = vmatprep.subr.mxu0 0.0
    %3140 = vmatpush1.msra.mxu0 0.0
    %3141 = vmatprep.subr.mxu0 0.0
    %3142 = vmatpush1.msra.mxu0 0.0
    %3143 = vmatprep.subr.mxu0 0.0
    %3144 = vmatpush1.msra.mxu0 0.0
    %3145 = vmatprep.subr.mxu0 0.0
    %3146 = vmatpush1.msra.mxu0 0.0
    %3147 = vmatprep.subr.mxu0 0.0
    %3148 = vmatpush1.msra.mxu0 0.0
    %3149 = vmatprep.subr.mxu0 0.0
    %3150 = vmatpush1.msra.mxu0 0.0
    %3151 = vmatprep.subr.mxu0 0.0
    %v3152 = vand.u32 %v1522, 4294901760
    %v3153 = vsub.f32 %v1522, %v3152
    %v3154 = vand.u32 %v3153, 4294901760
    %3155 = vmatpush1.msra.mxu0 %v3154
    %3156 = vmatprep.subr.mxu0 0.0
    %v3157 = vand.u32 %v1454, 4294901760
    %v3158 = vsub.f32 %v1454, %v3157
    %v3159 = vand.u32 %v3158, 4294901760
    %3160 = vmatpush1.msra.mxu0 %v3159
    %3161 = vmatprep.subr.mxu0 0.0
    %v3162 = vand.u32 %v1521, 4294901760
    %v3163 = vsub.f32 %v1521, %v3162
    %v3164 = vand.u32 %v3163, 4294901760
    %3165 = vmatpush1.msra.mxu0 %v3164
    %3166 = vmatprep.subr.mxu0 0.0
    %v3167 = vand.u32 %v1453, 4294901760
    %v3168 = vsub.f32 %v1453, %v3167
    %v3169 = vand.u32 %v3168, 4294901760
    %3170 = vmatpush1.msra.mxu0 %v3169
    %3171 = vmatprep.subr.mxu0 0.0
    %v3172 = vand.u32 %v1520, 4294901760
    %v3173 = vsub.f32 %v1520, %v3172
    %v3174 = vand.u32 %v3173, 4294901760
    %3175 = vmatpush1.msra.mxu0 %v3174
    %3176 = vmatprep.subr.mxu0 0.0
    %v3177 = vand.u32 %v1452, 4294901760
    %v3178 = vsub.f32 %v1452, %v3177
    %v3179 = vand.u32 %v3178, 4294901760
    %3180 = vmatpush1.msra.mxu0 %v3179
    %3181 = vmatprep.subr.mxu0 0.0
    %v3182 = vand.u32 %v1519, 4294901760
    %v3183 = vsub.f32 %v1519, %v3182
    %v3184 = vand.u32 %v3183, 4294901760
    %3185 = vmatpush1.msra.mxu0 %v3184
    %3186 = vmatprep.subr.mxu0 0.0
    %v3187 = vand.u32 %v1451, 4294901760
    %v3188 = vsub.f32 %v1451, %v3187
    %v3189 = vand.u32 %v3188, 4294901760
    %3190 = vmatpush1.msra.mxu0 %v3189
    %3191 = vmatprep.subr.mxu0 0.0
    %3192 = vmatpush2.msra.mxu0 0.0
    %3193 = vmatprep.subr.mxu0 0.0
    %3194 = vmatpush2.msra.mxu0 0.0
    %3195 = vmatprep.subr.mxu0 0.0
    %3196 = vmatpush2.msra.mxu0 0.0
    %3197 = vmatprep.subr.mxu0 0.0
    %3198 = vmatpush2.msra.mxu0 0.0
    %3199 = vmatprep.subr.mxu0 0.0
    %3200 = vmatpush2.msra.mxu0 0.0
    %3201 = vmatprep.subr.mxu0 0.0
    %3202 = vmatpush2.msra.mxu0 0.0
    %3203 = vmatprep.subr.mxu0 0.0
    %3204 = vmatpush2.msra.mxu0 0.0
    %3205 = vmatprep.subr.mxu0 0.0
    %3206 = vmatpush2.msra.mxu0 0.0
    %3207 = vmatprep.subr.mxu0 0.0
    %3208 = vmatpush2.msra.mxu0 0.0
    %3209 = vmatprep.subr.mxu0 0.0
    %3210 = vmatpush2.msra.mxu0 0.0
    %3211 = vmatprep.subr.mxu0 0.0
    %3212 = vmatpush2.msra.mxu0 0.0
    %3213 = vmatprep.subr.mxu0 0.0
    %3214 = vmatpush2.msra.mxu0 0.0
    %3215 = vmatprep.subr.mxu0 0.0
    %3216 = vmatpush2.msra.mxu0 0.0
    %3217 = vmatprep.subr.mxu0 0.0
    %3218 = vmatpush2.msra.mxu0 0.0
    %3219 = vmatprep.subr.mxu0 0.0
    %3220 = vmatpush2.msra.mxu0 0.0
    %3221 = vmatprep.subr.mxu0 0.0
    %3222 = vmatpush2.msra.mxu0 0.0
    %3223 = vmatprep.mubr.f32.mxu0 0.0
    %v3224 = vand.u32 %v2532, 4294901760
    %3225 = vmatmul.mubr.f32.gmra.mxu0 %v3224
    %v3226 = vpop.f32.mrf.mxu0
    %v3227 = vadd.f32 %v3076, %v3226
    %v3228 = vpop.f32.mrf.mxu0
    %3229 = vmatprep.mubr.f32.mxu0 0.0
    %v3230 = vand.u32 %v2535, 4294901760
    %3231 = vmatmul.mubr.f32.gmra.mxu0 %v3230
    %v3232 = vpop.f32.mrf.mxu0
    %v3233 = vadd.f32 %v3084, %v3232
    %v3234 = vpop.f32.mrf.mxu0
    %3235 = vmatprep.mubr.f32.mxu0 0.0
    %v3236 = vand.u32 %v2538, 4294901760
    %3237 = vmatmul.mubr.f32.gmra.mxu0 %v3236
    %v3238 = vpop.f32.mrf.mxu0
    %v3239 = vadd.f32 %v3092, %v3238
    %v3240 = vpop.f32.mrf.mxu0
    %3241 = vmatprep.mubr.f32.mxu0 0.0
    %v3242 = vand.u32 %v2541, 4294901760
    %3243 = vmatmul.mubr.f32.gmra.mxu0 %v3242
    %v3244 = vpop.f32.mrf.mxu0
    %v3245 = vadd.f32 %v3100, %v3244
    %v3246 = vpop.f32.mrf.mxu0
    %3247 = vmatprep.mubr.f32.mxu0 0.0
    %v3248 = vand.u32 %v2544, 4294901760
    %3249 = vmatmul.mubr.f32.gmra.mxu0 %v3248
    %v3250 = vpop.f32.mrf.mxu0
    %v3251 = vadd.f32 %v3108, %v3250
    %v3252 = vpop.f32.mrf.mxu0
    %3253 = vmatprep.mubr.f32.mxu0 0.0
    %v3254 = vand.u32 %v2547, 4294901760
    %3255 = vmatmul.mubr.f32.gmra.mxu0 %v3254
    %v3256 = vpop.f32.mrf.mxu0
    %v3257 = vadd.f32 %v3116, %v3256
    %v3258 = vpop.f32.mrf.mxu0
    %3259 = vmatprep.mubr.f32.mxu0 0.0
    %v3260 = vand.u32 %v2550, 4294901760
    %3261 = vmatmul.mubr.f32.gmra.mxu0 %v3260
    %v3262 = vpop.f32.mrf.mxu0
    %v3263 = vadd.f32 %v3124, %v3262
    %v3264 = vpop.f32.mrf.mxu0
    %3265 = vmatprep.mubr.f32.mxu0 0.0
    %v3266 = vand.u32 %v2553, 4294901760
    %3267 = vmatmul.mubr.f32.gmra.mxu0 %v3266
    %v3268 = vpop.f32.mrf.mxu0
    %v3269 = vadd.f32 %v3132, %v3268
    %v3270 = vpop.f32.mrf.mxu0
    %3271 = vdwg.mxu0
    %3272 = vmatprep.subr.mxu0 0.0
    %3273 = vmatpush1.msra.mxu0 0.0
    %3274 = vmatprep.subr.mxu0 0.0
    %3275 = vmatpush1.msra.mxu0 0.0
    %3276 = vmatprep.subr.mxu0 0.0
    %3277 = vmatpush1.msra.mxu0 0.0
    %3278 = vmatprep.subr.mxu0 0.0
    %3279 = vmatpush1.msra.mxu0 0.0
    %3280 = vmatprep.subr.mxu0 0.0
    %3281 = vmatpush1.msra.mxu0 0.0
    %3282 = vmatprep.subr.mxu0 0.0
    %3283 = vmatpush1.msra.mxu0 0.0
    %3284 = vmatprep.subr.mxu0 0.0
    %3285 = vmatpush1.msra.mxu0 0.0
    %3286 = vmatprep.subr.mxu0 0.0
    %3287 = vmatpush1.msra.mxu0 0.0
    %3288 = vmatprep.subr.mxu0 0.0
    %v3289 = vand.u32 %v1522, 4294901760
    %3290 = vmatpush1.msra.mxu0 %v3289
    %3291 = vmatprep.subr.mxu0 0.0
    %v3292 = vand.u32 %v1454, 4294901760
    %3293 = vmatpush1.msra.mxu0 %v3292
    %3294 = vmatprep.subr.mxu0 0.0
    %v3295 = vand.u32 %v1521, 4294901760
    %3296 = vmatpush1.msra.mxu0 %v3295
    %3297 = vmatprep.subr.mxu0 0.0
    %v3298 = vand.u32 %v1453, 4294901760
    %3299 = vmatpush1.msra.mxu0 %v3298
    %3300 = vmatprep.subr.mxu0 0.0
    %v3301 = vand.u32 %v1520, 4294901760
    %3302 = vmatpush1.msra.mxu0 %v3301
    %3303 = vmatprep.subr.mxu0 0.0
    %v3304 = vand.u32 %v1452, 4294901760
    %3305 = vmatpush1.msra.mxu0 %v3304
    %3306 = vmatprep.subr.mxu0 0.0
    %v3307 = vand.u32 %v1519, 4294901760
    %3308 = vmatpush1.msra.mxu0 %v3307
    %3309 = vmatprep.subr.mxu0 0.0
    %v3310 = vand.u32 %v1451, 4294901760
    %3311 = vmatpush1.msra.mxu0 %v3310
    %3312 = vmatprep.subr.mxu0 0.0
    %3313 = vmatpush2.msra.mxu0 0.0
    %3314 = vmatprep.subr.mxu0 0.0
    %3315 = vmatpush2.msra.mxu0 0.0
    %3316 = vmatprep.subr.mxu0 0.0
    %3317 = vmatpush2.msra.mxu0 0.0
    %3318 = vmatprep.subr.mxu0 0.0
    %3319 = vmatpush2.msra.mxu0 0.0
    %3320 = vmatprep.subr.mxu0 0.0
    %3321 = vmatpush2.msra.mxu0 0.0
    %3322 = vmatprep.subr.mxu0 0.0
    %3323 = vmatpush2.msra.mxu0 0.0
    %3324 = vmatprep.subr.mxu0 0.0
    %3325 = vmatpush2.msra.mxu0 0.0
    %3326 = vmatprep.subr.mxu0 0.0
    %3327 = vmatpush2.msra.mxu0 0.0
    %3328 = vmatprep.subr.mxu0 0.0
    %3329 = vmatpush2.msra.mxu0 0.0
    %3330 = vmatprep.subr.mxu0 0.0
    %3331 = vmatpush2.msra.mxu0 0.0
    %3332 = vmatprep.subr.mxu0 0.0
    %3333 = vmatpush2.msra.mxu0 0.0
    %3334 = vmatprep.subr.mxu0 0.0
    %3335 = vmatpush2.msra.mxu0 0.0
    %3336 = vmatprep.subr.mxu0 0.0
    %3337 = vmatpush2.msra.mxu0 0.0
    %3338 = vmatprep.subr.mxu0 0.0
    %3339 = vmatpush2.msra.mxu0 0.0
    %3340 = vmatprep.subr.mxu0 0.0
    %3341 = vmatpush2.msra.mxu0 0.0
    %3342 = vmatprep.subr.mxu0 0.0
    %3343 = vmatpush2.msra.mxu0 0.0
    %3344 = vmatprep.mubr.f32.mxu0 0.0
    %v3345 = vand.u32 %v2532, 4294901760
    %3346 = vmatmul.mubr.f32.gmra.mxu0 %v3345
    %v3347 = vpop.f32.mrf.mxu0
    %v3348 = vadd.f32 %v3227, %v3347
    %v3349 = vpop.f32.mrf.mxu0
    %3350 = vmatprep.mubr.f32.mxu0 0.0
    %v3351 = vand.u32 %v2535, 4294901760
    %3352 = vmatmul.mubr.f32.gmra.mxu0 %v3351
    %v3353 = vpop.f32.mrf.mxu0
    %v3354 = vadd.f32 %v3233, %v3353
    %v3355 = vpop.f32.mrf.mxu0
    %3356 = vmatprep.mubr.f32.mxu0 0.0
    %v3357 = vand.u32 %v2538, 4294901760
    %3358 = vmatmul.mubr.f32.gmra.mxu0 %v3357
    %v3359 = vpop.f32.mrf.mxu0
    %v3360 = vadd.f32 %v3239, %v3359
    %v3361 = vpop.f32.mrf.mxu0
    %3362 = vmatprep.mubr.f32.mxu0 0.0
    %v3363 = vand.u32 %v2541, 4294901760
    %3364 = vmatmul.mubr.f32.gmra.mxu0 %v3363
    %v3365 = vpop.f32.mrf.mxu0
    %v3366 = vadd.f32 %v3245, %v3365
    %v3367 = vpop.f32.mrf.mxu0
    %3368 = vmatprep.mubr.f32.mxu0 0.0
    %v3369 = vand.u32 %v2544, 4294901760
    %3370 = vmatmul.mubr.f32.gmra.mxu0 %v3369
    %v3371 = vpop.f32.mrf.mxu0
    %v3372 = vadd.f32 %v3251, %v3371
    %v3373 = vpop.f32.mrf.mxu0
    %3374 = vmatprep.mubr.f32.mxu0 0.0
    %v3375 = vand.u32 %v2547, 4294901760
    %3376 = vmatmul.mubr.f32.gmra.mxu0 %v3375
    %v3377 = vpop.f32.mrf.mxu0
    %v3378 = vadd.f32 %v3257, %v3377
    %v3379 = vpop.f32.mrf.mxu0
    %3380 = vmatprep.mubr.f32.mxu0 0.0
    %v3381 = vand.u32 %v2550, 4294901760
    %3382 = vmatmul.mubr.f32.gmra.mxu0 %v3381
    %v3383 = vpop.f32.mrf.mxu0
    %v3384 = vadd.f32 %v3263, %v3383
    %v3385 = vpop.f32.mrf.mxu0
    %3386 = vmatprep.mubr.f32.mxu0 0.0
    %v3387 = vand.u32 %v2553, 4294901760
    %3388 = vmatmul.mubr.f32.gmra.mxu0 %v3387
    %v3389 = vpop.f32.mrf.mxu0
    %v3390 = vadd.f32 %v3269, %v3389
    %v3391 = vpop.f32.mrf.mxu0
    %3392 = vdwg.mxu0
    %v3393 = vcombine.low %v3348, %v3372
    %v3394 = vcombine.high %v3348, %v3372
    %v3396 = vunpack.c.l.s4 1983009808
    %v3397 = vunpack.c.0.s8 %v3396
    %v3398 = vlaneseq
    %v3399 = vshrl.u32 %v3398, 7
    %v3400 = vsub.s32 %v3397, %v3399
    %v3401 = vrot.slane %v3393, %v3400
    %v3403 = vunpack.c.l.s4 1983009808
    %v3404 = vunpack.c.0.s8 %v3403
    %v3405 = vlaneseq
    %v3406 = vshrl.u32 %v3405, 7
    %v3407 = vsub.s32 %v3404, %v3406
    %v3408 = vrot.slane %v3394, %v3407
    %v3409 = vcombine.low %v3360, %v3384
    %v3410 = vcombine.high %v3360, %v3384
    %v3412 = vunpack.c.l.s4 1983009808
    %v3413 = vunpack.c.0.s8 %v3412
    %v3414 = vlaneseq
    %v3415 = vshrl.u32 %v3414, 7
    %v3416 = vsub.s32 %v3413, %v3415
    %v3417 = vrot.slane %v3409, %v3416
    %v3419 = vunpack.c.l.s4 1983009808
    %v3420 = vunpack.c.0.s8 %v3419
    %v3421 = vlaneseq
    %v3422 = vshrl.u32 %v3421, 7
    %v3423 = vsub.s32 %v3420, %v3422
    %v3424 = vrot.slane %v3410, %v3423
    %v3425 = vcombine.low %v3401, %v3417
    %v3426 = vcombine.high %v3401, %v3417
    %v3428 = vunpack.c.l.s4 1934713408
    %v3429 = vunpack.c.0.s8 %v3428
    %v3430 = vlaneseq
    %v3431 = vshrl.u32 %v3430, 7
    %v3432 = vsub.s32 %v3429, %v3431
    %v3433 = vrot.slane %v3425, %v3432
    %v3435 = vunpack.c.l.s4 1934713408
    %v3436 = vunpack.c.0.s8 %v3435
    %v3437 = vlaneseq
    %v3438 = vshrl.u32 %v3437, 7
    %v3439 = vsub.s32 %v3436, %v3438
    %v3440 = vrot.slane %v3426, %v3439
    %v3441 = vcombine.low %v3408, %v3424
    %v3442 = vcombine.high %v3408, %v3424
    %v3444 = vunpack.c.l.s4 1934713408
    %v3445 = vunpack.c.0.s8 %v3444
    %v3446 = vlaneseq
    %v3447 = vshrl.u32 %v3446, 7
    %v3448 = vsub.s32 %v3445, %v3447
    %v3449 = vrot.slane %v3441, %v3448
    %v3451 = vunpack.c.l.s4 1934713408
    %v3452 = vunpack.c.0.s8 %v3451
    %v3453 = vlaneseq
    %v3454 = vshrl.u32 %v3453, 7
    %v3455 = vsub.s32 %v3452, %v3454
    %v3456 = vrot.slane %v3442, %v3455
    %v3457 = vcombine.high %v3433, 0.0
    %v3458 = vcombine.high %v3440, 0.0
    %v3459 = vcombine.high %v3449, 0.0
    %v3460 = vcombine.high %v3456, 0.0
    %v3461 = vcombine.low %v3354, %v3378
    %v3462 = vcombine.high %v3354, %v3378
    %v3464 = vunpack.c.l.s4 1983009808
    %v3465 = vunpack.c.0.s8 %v3464
    %v3466 = vlaneseq
    %v3467 = vshrl.u32 %v3466, 7
    %v3468 = vsub.s32 %v3465, %v3467
    %v3469 = vrot.slane %v3461, %v3468
    %v3471 = vunpack.c.l.s4 1983009808
    %v3472 = vunpack.c.0.s8 %v3471
    %v3473 = vlaneseq
    %v3474 = vshrl.u32 %v3473, 7
    %v3475 = vsub.s32 %v3472, %v3474
    %v3476 = vrot.slane %v3462, %v3475
    %v3477 = vcombine.low %v3366, %v3390
    %v3478 = vcombine.high %v3366, %v3390
    %v3480 = vunpack.c.l.s4 1983009808
    %v3481 = vunpack.c.0.s8 %v3480
    %v3482 = vlaneseq
    %v3483 = vshrl.u32 %v3482, 7
    %v3484 = vsub.s32 %v3481, %v3483
    %v3485 = vrot.slane %v3477, %v3484
    %v3487 = vunpack.c.l.s4 1983009808
    %v3488 = vunpack.c.0.s8 %v3487
    %v3489 = vlaneseq
    %v3490 = vshrl.u32 %v3489, 7
    %v3491 = vsub.s32 %v3488, %v3490
    %v3492 = vrot.slane %v3478, %v3491
    %v3493 = vcombine.low %v3469, %v3485
    %v3494 = vcombine.high %v3469, %v3485
    %v3496 = vunpack.c.l.s4 1934713408
    %v3497 = vunpack.c.0.s8 %v3496
    %v3498 = vlaneseq
    %v3499 = vshrl.u32 %v3498, 7
    %v3500 = vsub.s32 %v3497, %v3499
    %v3501 = vrot.slane %v3493, %v3500
    %v3503 = vunpack.c.l.s4 1934713408
    %v3504 = vunpack.c.0.s8 %v3503
    %v3505 = vlaneseq
    %v3506 = vshrl.u32 %v3505, 7
    %v3507 = vsub.s32 %v3504, %v3506
    %v3508 = vrot.slane %v3494, %v3507
    %v3509 = vcombine.low %v3476, %v3492
    %v3510 = vcombine.high %v3476, %v3492
    %v3512 = vunpack.c.l.s4 1934713408
    %v3513 = vunpack.c.0.s8 %v3512
    %v3514 = vlaneseq
    %v3515 = vshrl.u32 %v3514, 7
    %v3516 = vsub.s32 %v3513, %v3515
    %v3517 = vrot.slane %v3509, %v3516
    %v3519 = vunpack.c.l.s4 1934713408
    %v3520 = vunpack.c.0.s8 %v3519
    %v3521 = vlaneseq
    %v3522 = vshrl.u32 %v3521, 7
    %v3523 = vsub.s32 %v3520, %v3522
    %v3524 = vrot.slane %v3510, %v3523
    %v3525 = vcombine.high %v3501, 0.0
    %v3526 = vcombine.high %v3508, 0.0
    %v3527 = vcombine.high %v3517, 0.0
    %v3528 = vcombine.high %v3524, 0.0
    %v3529 = vcombine.low %v3433, %v3440
    %v3531 = vunpack.c.l.s4 1983009808
    %v3532 = vunpack.c.0.s8 %v3531
    %v3533 = vlaneseq
    %v3534 = vshrl.u32 %v3533, 7
    %v3535 = vsub.s32 %v3532, %v3534
    %v3536 = vrot.slane %v3529, %v3535
    %v3537 = vcombine.low %v3457, %v3458
    %v3539 = vunpack.c.l.s4 1983009808
    %v3540 = vunpack.c.0.s8 %v3539
    %v3541 = vlaneseq
    %v3542 = vshrl.u32 %v3541, 7
    %v3543 = vsub.s32 %v3540, %v3542
    %v3544 = vrot.slane %v3537, %v3543
    %v3545 = vcombine.low %v3449, %v3456
    %v3547 = vunpack.c.l.s4 1983009808
    %v3548 = vunpack.c.0.s8 %v3547
    %v3549 = vlaneseq
    %v3550 = vshrl.u32 %v3549, 7
    %v3551 = vsub.s32 %v3548, %v3550
    %v3552 = vrot.slane %v3545, %v3551
    %v3553 = vcombine.low %v3459, %v3460
    %v3555 = vunpack.c.l.s4 1983009808
    %v3556 = vunpack.c.0.s8 %v3555
    %v3557 = vlaneseq
    %v3558 = vshrl.u32 %v3557, 7
    %v3559 = vsub.s32 %v3556, %v3558
    %v3560 = vrot.slane %v3553, %v3559
    %v3561 = vcombine.low %v3536, %v3544
    %v3562 = vcombine.high %v3536, %v3544
    %v3564 = vunpack.c.l.s4 1934713408
    %v3565 = vunpack.c.0.s8 %v3564
    %v3566 = vlaneseq
    %v3567 = vshrl.u32 %v3566, 7
    %v3568 = vsub.s32 %v3565, %v3567
    %v3569 = vrot.slane %v3561, %v3568
    %v3571 = vunpack.c.l.s4 1934713408
    %v3572 = vunpack.c.0.s8 %v3571
    %v3573 = vlaneseq
    %v3574 = vshrl.u32 %v3573, 7
    %v3575 = vsub.s32 %v3572, %v3574
    %v3576 = vrot.slane %v3562, %v3575
    %v3577 = vcombine.low %v3552, %v3560
    %v3578 = vcombine.high %v3552, %v3560
    %v3580 = vunpack.c.l.s4 1934713408
    %v3581 = vunpack.c.0.s8 %v3580
    %v3582 = vlaneseq
    %v3583 = vshrl.u32 %v3582, 7
    %v3584 = vsub.s32 %v3581, %v3583
    %v3585 = vrot.slane %v3577, %v3584
    %v3587 = vunpack.c.l.s4 1934713408
    %v3588 = vunpack.c.0.s8 %v3587
    %v3589 = vlaneseq
    %v3590 = vshrl.u32 %v3589, 7
    %v3591 = vsub.s32 %v3588, %v3590
    %v3592 = vrot.slane %v3578, %v3591
    %v3593 = vcombine.low %v3569, %v3585
    %v3594 = vcombine.high %v3569, %v3585
    %v3595 = vcombine.low %v3576, %v3592
    %v3596 = vcombine.high %v3576, %v3592
    %v3597 = vcombine.low %v3501, %v3508
    %v3599 = vunpack.c.l.s4 1983009808
    %v3600 = vunpack.c.0.s8 %v3599
    %v3601 = vlaneseq
    %v3602 = vshrl.u32 %v3601, 7
    %v3603 = vsub.s32 %v3600, %v3602
    %v3604 = vrot.slane %v3597, %v3603
    %v3605 = vcombine.low %v3525, %v3526
    %v3607 = vunpack.c.l.s4 1983009808
    %v3608 = vunpack.c.0.s8 %v3607
    %v3609 = vlaneseq
    %v3610 = vshrl.u32 %v3609, 7
    %v3611 = vsub.s32 %v3608, %v3610
    %v3612 = vrot.slane %v3605, %v3611
    %v3613 = vcombine.low %v3517, %v3524
    %v3615 = vunpack.c.l.s4 1983009808
    %v3616 = vunpack.c.0.s8 %v3615
    %v3617 = vlaneseq
    %v3618 = vshrl.u32 %v3617, 7
    %v3619 = vsub.s32 %v3616, %v3618
    %v3620 = vrot.slane %v3613, %v3619
    %v3621 = vcombine.low %v3527, %v3528
    %v3623 = vunpack.c.l.s4 1983009808
    %v3624 = vunpack.c.0.s8 %v3623
    %v3625 = vlaneseq
    %v3626 = vshrl.u32 %v3625, 7
    %v3627 = vsub.s32 %v3624, %v3626
    %v3628 = vrot.slane %v3621, %v3627
    %v3629 = vcombine.low %v3604, %v3612
    %v3630 = vcombine.high %v3604, %v3612
    %v3632 = vunpack.c.l.s4 1934713408
    %v3633 = vunpack.c.0.s8 %v3632
    %v3634 = vlaneseq
    %v3635 = vshrl.u32 %v3634, 7
    %v3636 = vsub.s32 %v3633, %v3635
    %v3637 = vrot.slane %v3629, %v3636
    %v3639 = vunpack.c.l.s4 1934713408
    %v3640 = vunpack.c.0.s8 %v3639
    %v3641 = vlaneseq
    %v3642 = vshrl.u32 %v3641, 7
    %v3643 = vsub.s32 %v3640, %v3642
    %v3644 = vrot.slane %v3630, %v3643
    %v3645 = vcombine.low %v3620, %v3628
    %v3646 = vcombine.high %v3620, %v3628
    %v3648 = vunpack.c.l.s4 1934713408
    %v3649 = vunpack.c.0.s8 %v3648
    %v3650 = vlaneseq
    %v3651 = vshrl.u32 %v3650, 7
    %v3652 = vsub.s32 %v3649, %v3651
    %v3653 = vrot.slane %v3645, %v3652
    %v3655 = vunpack.c.l.s4 1934713408
    %v3656 = vunpack.c.0.s8 %v3655
    %v3657 = vlaneseq
    %v3658 = vshrl.u32 %v3657, 7
    %v3659 = vsub.s32 %v3656, %v3658
    %v3660 = vrot.slane %v3646, %v3659
    %v3661 = vcombine.low %v3637, %v3653
    %v3662 = vcombine.high %v3637, %v3653
    %v3663 = vcombine.low %v3644, %v3660
    %v3664 = vcombine.high %v3644, %v3660
    %3667 = vrot.lane.b32.xlu0 %v3594, 8
    %v3668 = vpop.permute.xlu0 %3667
    %3669 = vrot.lane.b32.xlu0 %v3662, 8
    %v3670 = vpop.permute.xlu0 %3669
    %3675 = vrot.lane.b32.xlu0 %v3595, 16
    %v3676 = vpop.permute.xlu0 %3675
    %3677 = vrot.lane.b32.xlu0 %v3663, 16
    %v3678 = vpop.permute.xlu0 %3677
    %3683 = vrot.lane.b32.xlu0 %v3596, 24
    %v3684 = vpop.permute.xlu0 %3683
    %3685 = vrot.lane.b32.xlu0 %v3664, 24
    %v3686 = vpop.permute.xlu0 %3685
    %v3689 = vsel %vm1523, %v3593, %v3668
    %v3690 = vsel %vm1523, %v3661, %v3670
    %vm3691 = vcmask 130048
    %v3692 = vsel %vm3691, %v3689, %v3676
    %v3693 = vsel %vm3691, %v3690, %v3678
    %vm3694 = vcmask 195584
    %v3695 = vsel %vm3694, %v3692, %v3684
    %v3696 = vsel %vm3694, %v3693, %v3686
    %v3697 = vlaneseq
    %v3698 = vshrl.u32 %v3697, 7
    %v3699 = vsub.s32 0, %v3698
    %v3700 = vrot.slane %v52, %v3699
    %3705 = vrot.lane.b32.xlu0 %v35, 32
    %v3706 = vpop.permute.xlu0 %3705
    %3707 = vrot.lane.b32.xlu0 %v36, 32
    %v3708 = vpop.permute.xlu0 %3707
    %3709 = vrot.lane.b32.xlu0 %v37, 32
    %v3710 = vpop.permute.xlu0 %3709
    %3711 = vrot.lane.b32.xlu0 %v38, 32
    %v3712 = vpop.permute.xlu0 %3711
    %v3718 = vsel %vm61, %v3695, 0
    %v3721 = vsel %vm61, %v3696, 0
    %3723 = vmatprep.subr.mxu0 0.0
    %3724 = vmatpush1.msra.mxu0 0.0
    %3725 = vmatprep.subr.mxu0 0.0
    %3726 = vmatpush1.msra.mxu0 0.0
    %3727 = vmatprep.subr.mxu0 0.0
    %3728 = vmatpush1.msra.mxu0 0.0
    %3729 = vmatprep.subr.mxu0 0.0
    %3730 = vmatpush1.msra.mxu0 0.0
    %3731 = vmatprep.subr.mxu0 0.0
    %3732 = vmatpush1.msra.mxu0 0.0
    %3733 = vmatprep.subr.mxu0 0.0
    %3734 = vmatpush1.msra.mxu0 0.0
    %3735 = vmatprep.subr.mxu0 0.0
    %3736 = vmatpush1.msra.mxu0 0.0
    %3737 = vmatprep.subr.mxu0 0.0
    %3738 = vmatpush1.msra.mxu0 0.0
    %3739 = vmatprep.subr.mxu0 0.0
    %3740 = vmatpush1.msra.mxu0 0.0
    %3741 = vmatprep.subr.mxu0 0.0
    %3742 = vmatpush1.msra.mxu0 0.0
    %3743 = vmatprep.subr.mxu0 0.0
    %3744 = vmatpush1.msra.mxu0 0.0
    %3745 = vmatprep.subr.mxu0 0.0
    %3746 = vmatpush1.msra.mxu0 0.0
    %3747 = vmatprep.subr.mxu0 0.0
    %v3748 = vand.u32 %v3712, 4294901760
    %3749 = vmatpush1.msra.mxu0 %v3748
    %3750 = vmatprep.subr.mxu0 0.0
    %v3751 = vand.u32 %v3710, 4294901760
    %3752 = vmatpush1.msra.mxu0 %v3751
    %3753 = vmatprep.subr.mxu0 0.0
    %v3754 = vand.u32 %v3708, 4294901760
    %3755 = vmatpush1.msra.mxu0 %v3754
    %3756 = vmatprep.subr.mxu0 0.0
    %v3757 = vand.u32 %v3706, 4294901760
    %3758 = vmatpush1.msra.mxu0 %v3757
    %3759 = vmatprep.subr.mxu0 0.0
    %3760 = vmatpush2.msra.mxu0 0.0
    %3761 = vmatprep.subr.mxu0 0.0
    %3762 = vmatpush2.msra.mxu0 0.0
    %3763 = vmatprep.subr.mxu0 0.0
    %3764 = vmatpush2.msra.mxu0 0.0
    %3765 = vmatprep.subr.mxu0 0.0
    %3766 = vmatpush2.msra.mxu0 0.0
    %3767 = vmatprep.subr.mxu0 0.0
    %3768 = vmatpush2.msra.mxu0 0.0
    %3769 = vmatprep.subr.mxu0 0.0
    %3770 = vmatpush2.msra.mxu0 0.0
    %3771 = vmatprep.subr.mxu0 0.0
    %3772 = vmatpush2.msra.mxu0 0.0
    %3773 = vmatprep.subr.mxu0 0.0
    %3774 = vmatpush2.msra.mxu0 0.0
    %3775 = vmatprep.subr.mxu0 0.0
    %3776 = vmatpush2.msra.mxu0 0.0
    %3777 = vmatprep.subr.mxu0 0.0
    %3778 = vmatpush2.msra.mxu0 0.0
    %3779 = vmatprep.subr.mxu0 0.0
    %3780 = vmatpush2.msra.mxu0 0.0
    %3781 = vmatprep.subr.mxu0 0.0
    %3782 = vmatpush2.msra.mxu0 0.0
    %3783 = vmatprep.subr.mxu0 0.0
    %3784 = vmatpush2.msra.mxu0 0.0
    %3785 = vmatprep.subr.mxu0 0.0
    %3786 = vmatpush2.msra.mxu0 0.0
    %3787 = vmatprep.subr.mxu0 0.0
    %3788 = vmatpush2.msra.mxu0 0.0
    %3789 = vmatprep.subr.mxu0 0.0
    %3790 = vmatpush2.msra.mxu0 0.0
    %3791 = vmatprep.mubr.f32.mxu0 0.0
    %v3792 = vand.u32 %v3718, 4294901760
    %v3793 = vsub.f32 %v3718, %v3792
    %v3794 = vand.u32 %v3793, 4294901760
    %v3795 = vsub.f32 %v3793, %v3794
    %v3796 = vand.u32 %v3795, 4294901760
    %3797 = vmatmul.mubr.f32.gmra.mxu0 %v3796
    %v3798 = vpop.f32.mrf.mxu0
    %v3799 = vadd.f32 %v3700, %v3798
    %v3800 = vpop.f32.mrf.mxu0
    %3801 = vmatprep.mubr.f32.mxu0 0.0
    %v3802 = vand.u32 %v3721, 4294901760
    %v3803 = vsub.f32 %v3721, %v3802
    %v3804 = vand.u32 %v3803, 4294901760
    %v3805 = vsub.f32 %v3803, %v3804
    %v3806 = vand.u32 %v3805, 4294901760
    %3807 = vmatmul.mubr.f32.gmra.mxu0 %v3806
    %v3808 = vpop.f32.mrf.mxu0
    %v3809 = vadd.f32 %v3700, %v3808
    %v3810 = vpop.f32.mrf.mxu0
    %3811 = vdwg.mxu0
    %3812 = vmatprep.subr.mxu0 0.0
    %3813 = vmatpush1.msra.mxu0 0.0
    %3814 = vmatprep.subr.mxu0 0.0
    %3815 = vmatpush1.msra.mxu0 0.0
    %3816 = vmatprep.subr.mxu0 0.0
    %3817 = vmatpush1.msra.mxu0 0.0
    %3818 = vmatprep.subr.mxu0 0.0
    %3819 = vmatpush1.msra.mxu0 0.0
    %3820 = vmatprep.subr.mxu0 0.0
    %3821 = vmatpush1.msra.mxu0 0.0
    %3822 = vmatprep.subr.mxu0 0.0
    %3823 = vmatpush1.msra.mxu0 0.0
    %3824 = vmatprep.subr.mxu0 0.0
    %3825 = vmatpush1.msra.mxu0 0.0
    %3826 = vmatprep.subr.mxu0 0.0
    %3827 = vmatpush1.msra.mxu0 0.0
    %3828 = vmatprep.subr.mxu0 0.0
    %3829 = vmatpush1.msra.mxu0 0.0
    %3830 = vmatprep.subr.mxu0 0.0
    %3831 = vmatpush1.msra.mxu0 0.0
    %3832 = vmatprep.subr.mxu0 0.0
    %3833 = vmatpush1.msra.mxu0 0.0
    %3834 = vmatprep.subr.mxu0 0.0
    %3835 = vmatpush1.msra.mxu0 0.0
    %3836 = vmatprep.subr.mxu0 0.0
    %v3837 = vand.u32 %v3712, 4294901760
    %v3838 = vsub.f32 %v3712, %v3837
    %v3839 = vand.u32 %v3838, 4294901760
    %v3840 = vsub.f32 %v3838, %v3839
    %v3841 = vand.u32 %v3840, 4294901760
    %3842 = vmatpush1.msra.mxu0 %v3841
    %3843 = vmatprep.subr.mxu0 0.0
    %v3844 = vand.u32 %v3710, 4294901760
    %v3845 = vsub.f32 %v3710, %v3844
    %v3846 = vand.u32 %v3845, 4294901760
    %v3847 = vsub.f32 %v3845, %v3846
    %v3848 = vand.u32 %v3847, 4294901760
    %3849 = vmatpush1.msra.mxu0 %v3848
    %3850 = vmatprep.subr.mxu0 0.0
    %v3851 = vand.u32 %v3708, 4294901760
    %v3852 = vsub.f32 %v3708, %v3851
    %v3853 = vand.u32 %v3852, 4294901760
    %v3854 = vsub.f32 %v3852, %v3853
    %v3855 = vand.u32 %v3854, 4294901760
    %3856 = vmatpush1.msra.mxu0 %v3855
    %3857 = vmatprep.subr.mxu0 0.0
    %v3858 = vand.u32 %v3706, 4294901760
    %v3859 = vsub.f32 %v3706, %v3858
    %v3860 = vand.u32 %v3859, 4294901760
    %v3861 = vsub.f32 %v3859, %v3860
    %v3862 = vand.u32 %v3861, 4294901760
    %3863 = vmatpush1.msra.mxu0 %v3862
    %3864 = vmatprep.subr.mxu0 0.0
    %3865 = vmatpush2.msra.mxu0 0.0
    %3866 = vmatprep.subr.mxu0 0.0
    %3867 = vmatpush2.msra.mxu0 0.0
    %3868 = vmatprep.subr.mxu0 0.0
    %3869 = vmatpush2.msra.mxu0 0.0
    %3870 = vmatprep.subr.mxu0 0.0
    %3871 = vmatpush2.msra.mxu0 0.0
    %3872 = vmatprep.subr.mxu0 0.0
    %3873 = vmatpush2.msra.mxu0 0.0
    %3874 = vmatprep.subr.mxu0 0.0
    %3875 = vmatpush2.msra.mxu0 0.0
    %3876 = vmatprep.subr.mxu0 0.0
    %3877 = vmatpush2.msra.mxu0 0.0
    %3878 = vmatprep.subr.mxu0 0.0
    %3879 = vmatpush2.msra.mxu0 0.0
    %3880 = vmatprep.subr.mxu0 0.0
    %3881 = vmatpush2.msra.mxu0 0.0
    %3882 = vmatprep.subr.mxu0 0.0
    %3883 = vmatpush2.msra.mxu0 0.0
    %3884 = vmatprep.subr.mxu0 0.0
    %3885 = vmatpush2.msra.mxu0 0.0
    %3886 = vmatprep.subr.mxu0 0.0
    %3887 = vmatpush2.msra.mxu0 0.0
    %3888 = vmatprep.subr.mxu0 0.0
    %3889 = vmatpush2.msra.mxu0 0.0
    %3890 = vmatprep.subr.mxu0 0.0
    %3891 = vmatpush2.msra.mxu0 0.0
    %3892 = vmatprep.subr.mxu0 0.0
    %3893 = vmatpush2.msra.mxu0 0.0
    %3894 = vmatprep.subr.mxu0 0.0
    %3895 = vmatpush2.msra.mxu0 0.0
    %3896 = vmatprep.mubr.f32.mxu0 0.0
    %v3897 = vand.u32 %v3718, 4294901760
    %3898 = vmatmul.mubr.f32.gmra.mxu0 %v3897
    %v3899 = vpop.f32.mrf.mxu0
    %v3900 = vadd.f32 %v3799, %v3899
    %v3901 = vpop.f32.mrf.mxu0
    %3902 = vmatprep.mubr.f32.mxu0 0.0
    %v3903 = vand.u32 %v3721, 4294901760
    %3904 = vmatmul.mubr.f32.gmra.mxu0 %v3903
    %v3905 = vpop.f32.mrf.mxu0
    %v3906 = vadd.f32 %v3809, %v3905
    %v3907 = vpop.f32.mrf.mxu0
    %3908 = vdwg.mxu0
    %3909 = vmatprep.subr.mxu0 0.0
    %3910 = vmatpush1.msra.mxu0 0.0
    %3911 = vmatprep.subr.mxu0 0.0
    %3912 = vmatpush1.msra.mxu0 0.0
    %3913 = vmatprep.subr.mxu0 0.0
    %3914 = vmatpush1.msra.mxu0 0.0
    %3915 = vmatprep.subr.mxu0 0.0
    %3916 = vmatpush1.msra.mxu0 0.0
    %3917 = vmatprep.subr.mxu0 0.0
    %3918 = vmatpush1.msra.mxu0 0.0
    %3919 = vmatprep.subr.mxu0 0.0
    %3920 = vmatpush1.msra.mxu0 0.0
    %3921 = vmatprep.subr.mxu0 0.0
    %3922 = vmatpush1.msra.mxu0 0.0
    %3923 = vmatprep.subr.mxu0 0.0
    %3924 = vmatpush1.msra.mxu0 0.0
    %3925 = vmatprep.subr.mxu0 0.0
    %3926 = vmatpush1.msra.mxu0 0.0
    %3927 = vmatprep.subr.mxu0 0.0
    %3928 = vmatpush1.msra.mxu0 0.0
    %3929 = vmatprep.subr.mxu0 0.0
    %3930 = vmatpush1.msra.mxu0 0.0
    %3931 = vmatprep.subr.mxu0 0.0
    %3932 = vmatpush1.msra.mxu0 0.0
    %3933 = vmatprep.subr.mxu0 0.0
    %v3934 = vand.u32 %v3712, 4294901760
    %v3935 = vsub.f32 %v3712, %v3934
    %3936 = vmatpush1.msra.mxu0 %v3935
    %3937 = vmatprep.subr.mxu0 0.0
    %v3938 = vand.u32 %v3710, 4294901760
    %v3939 = vsub.f32 %v3710, %v3938
    %3940 = vmatpush1.msra.mxu0 %v3939
    %3941 = vmatprep.subr.mxu0 0.0
    %v3942 = vand.u32 %v3708, 4294901760
    %v3943 = vsub.f32 %v3708, %v3942
    %3944 = vmatpush1.msra.mxu0 %v3943
    %3945 = vmatprep.subr.mxu0 0.0
    %v3946 = vand.u32 %v3706, 4294901760
    %v3947 = vsub.f32 %v3706, %v3946
    %3948 = vmatpush1.msra.mxu0 %v3947
    %3949 = vmatprep.subr.mxu0 0.0
    %3950 = vmatpush2.msra.mxu0 0.0
    %3951 = vmatprep.subr.mxu0 0.0
    %3952 = vmatpush2.msra.mxu0 0.0
    %3953 = vmatprep.subr.mxu0 0.0
    %3954 = vmatpush2.msra.mxu0 0.0
    %3955 = vmatprep.subr.mxu0 0.0
    %3956 = vmatpush2.msra.mxu0 0.0
    %3957 = vmatprep.subr.mxu0 0.0
    %3958 = vmatpush2.msra.mxu0 0.0
    %3959 = vmatprep.subr.mxu0 0.0
    %3960 = vmatpush2.msra.mxu0 0.0
    %3961 = vmatprep.subr.mxu0 0.0
    %3962 = vmatpush2.msra.mxu0 0.0
    %3963 = vmatprep.subr.mxu0 0.0
    %3964 = vmatpush2.msra.mxu0 0.0
    %3965 = vmatprep.subr.mxu0 0.0
    %3966 = vmatpush2.msra.mxu0 0.0
    %3967 = vmatprep.subr.mxu0 0.0
    %3968 = vmatpush2.msra.mxu0 0.0
    %3969 = vmatprep.subr.mxu0 0.0
    %3970 = vmatpush2.msra.mxu0 0.0
    %3971 = vmatprep.subr.mxu0 0.0
    %3972 = vmatpush2.msra.mxu0 0.0
    %3973 = vmatprep.subr.mxu0 0.0
    %3974 = vmatpush2.msra.mxu0 0.0
    %3975 = vmatprep.subr.mxu0 0.0
    %3976 = vmatpush2.msra.mxu0 0.0
    %3977 = vmatprep.subr.mxu0 0.0
    %3978 = vmatpush2.msra.mxu0 0.0
    %3979 = vmatprep.subr.mxu0 0.0
    %3980 = vmatpush2.msra.mxu0 0.0
    %3981 = vmatprep.mubr.f32.mxu0 0.0
    %v3982 = vand.u32 %v3718, 4294901760
    %v3983 = vsub.f32 %v3718, %v3982
    %3984 = vmatmul.mubr.f32.gmra.mxu0 %v3983
    %v3985 = vpop.f32.mrf.mxu0
    %v3986 = vadd.f32 %v3900, %v3985
    %v3987 = vpop.f32.mrf.mxu0
    %3988 = vmatprep.mubr.f32.mxu0 0.0
    %v3989 = vand.u32 %v3721, 4294901760
    %v3990 = vsub.f32 %v3721, %v3989
    %3991 = vmatmul.mubr.f32.gmra.mxu0 %v3990
    %v3992 = vpop.f32.mrf.mxu0
    %v3993 = vadd.f32 %v3906, %v3992
    %v3994 = vpop.f32.mrf.mxu0
    %3995 = vdwg.mxu0
    %3996 = vmatprep.subr.mxu0 0.0
    %3997 = vmatpush1.msra.mxu0 0.0
    %3998 = vmatprep.subr.mxu0 0.0
    %3999 = vmatpush1.msra.mxu0 0.0
    %4000 = vmatprep.subr.mxu0 0.0
    %4001 = vmatpush1.msra.mxu0 0.0
    %4002 = vmatprep.subr.mxu0 0.0
    %4003 = vmatpush1.msra.mxu0 0.0
    %4004 = vmatprep.subr.mxu0 0.0
    %4005 = vmatpush1.msra.mxu0 0.0
    %4006 = vmatprep.subr.mxu0 0.0
    %4007 = vmatpush1.msra.mxu0 0.0
    %4008 = vmatprep.subr.mxu0 0.0
    %4009 = vmatpush1.msra.mxu0 0.0
    %4010 = vmatprep.subr.mxu0 0.0
    %4011 = vmatpush1.msra.mxu0 0.0
    %4012 = vmatprep.subr.mxu0 0.0
    %4013 = vmatpush1.msra.mxu0 0.0
    %4014 = vmatprep.subr.mxu0 0.0
    %4015 = vmatpush1.msra.mxu0 0.0
    %4016 = vmatprep.subr.mxu0 0.0
    %4017 = vmatpush1.msra.mxu0 0.0
    %4018 = vmatprep.subr.mxu0 0.0
    %4019 = vmatpush1.msra.mxu0 0.0
    %4020 = vmatprep.subr.mxu0 0.0
    %v4021 = vand.u32 %v3712, 4294901760
    %4022 = vmatpush1.msra.mxu0 %v4021
    %4023 = vmatprep.subr.mxu0 0.0
    %v4024 = vand.u32 %v3710, 4294901760
    %4025 = vmatpush1.msra.mxu0 %v4024
    %4026 = vmatprep.subr.mxu0 0.0
    %v4027 = vand.u32 %v3708, 4294901760
    %4028 = vmatpush1.msra.mxu0 %v4027
    %4029 = vmatprep.subr.mxu0 0.0
    %v4030 = vand.u32 %v3706, 4294901760
    %4031 = vmatpush1.msra.mxu0 %v4030
    %4032 = vmatprep.subr.mxu0 0.0
    %4033 = vmatpush2.msra.mxu0 0.0
    %4034 = vmatprep.subr.mxu0 0.0
    %4035 = vmatpush2.msra.mxu0 0.0
    %4036 = vmatprep.subr.mxu0 0.0
    %4037 = vmatpush2.msra.mxu0 0.0
    %4038 = vmatprep.subr.mxu0 0.0
    %4039 = vmatpush2.msra.mxu0 0.0
    %4040 = vmatprep.subr.mxu0 0.0
    %4041 = vmatpush2.msra.mxu0 0.0
    %4042 = vmatprep.subr.mxu0 0.0
    %4043 = vmatpush2.msra.mxu0 0.0
    %4044 = vmatprep.subr.mxu0 0.0
    %4045 = vmatpush2.msra.mxu0 0.0
    %4046 = vmatprep.subr.mxu0 0.0
    %4047 = vmatpush2.msra.mxu0 0.0
    %4048 = vmatprep.subr.mxu0 0.0
    %4049 = vmatpush2.msra.mxu0 0.0
    %4050 = vmatprep.subr.mxu0 0.0
    %4051 = vmatpush2.msra.mxu0 0.0
    %4052 = vmatprep.subr.mxu0 0.0
    %4053 = vmatpush2.msra.mxu0 0.0
    %4054 = vmatprep.subr.mxu0 0.0
    %4055 = vmatpush2.msra.mxu0 0.0
    %4056 = vmatprep.subr.mxu0 0.0
    %4057 = vmatpush2.msra.mxu0 0.0
    %4058 = vmatprep.subr.mxu0 0.0
    %4059 = vmatpush2.msra.mxu0 0.0
    %4060 = vmatprep.subr.mxu0 0.0
    %4061 = vmatpush2.msra.mxu0 0.0
    %4062 = vmatprep.subr.mxu0 0.0
    %4063 = vmatpush2.msra.mxu0 0.0
    %4064 = vmatprep.mubr.f32.mxu0 0.0
    %v4065 = vand.u32 %v3718, 4294901760
    %v4066 = vsub.f32 %v3718, %v4065
    %v4067 = vand.u32 %v4066, 4294901760
    %4068 = vmatmul.mubr.f32.gmra.mxu0 %v4067
    %v4069 = vpop.f32.mrf.mxu0
    %v4070 = vadd.f32 %v3986, %v4069
    %v4071 = vpop.f32.mrf.mxu0
    %4072 = vmatprep.mubr.f32.mxu0 0.0
    %v4073 = vand.u32 %v3721, 4294901760
    %v4074 = vsub.f32 %v3721, %v4073
    %v4075 = vand.u32 %v4074, 4294901760
    %4076 = vmatmul.mubr.f32.gmra.mxu0 %v4075
    %v4077 = vpop.f32.mrf.mxu0
    %v4078 = vadd.f32 %v3993, %v4077
    %v4079 = vpop.f32.mrf.mxu0
    %4080 = vdwg.mxu0
    %4081 = vmatprep.subr.mxu0 0.0
    %4082 = vmatpush1.msra.mxu0 0.0
    %4083 = vmatprep.subr.mxu0 0.0
    %4084 = vmatpush1.msra.mxu0 0.0
    %4085 = vmatprep.subr.mxu0 0.0
    %4086 = vmatpush1.msra.mxu0 0.0
    %4087 = vmatprep.subr.mxu0 0.0
    %4088 = vmatpush1.msra.mxu0 0.0
    %4089 = vmatprep.subr.mxu0 0.0
    %4090 = vmatpush1.msra.mxu0 0.0
    %4091 = vmatprep.subr.mxu0 0.0
    %4092 = vmatpush1.msra.mxu0 0.0
    %4093 = vmatprep.subr.mxu0 0.0
    %4094 = vmatpush1.msra.mxu0 0.0
    %4095 = vmatprep.subr.mxu0 0.0
    %4096 = vmatpush1.msra.mxu0 0.0
    %4097 = vmatprep.subr.mxu0 0.0
    %4098 = vmatpush1.msra.mxu0 0.0
    %4099 = vmatprep.subr.mxu0 0.0
    %4100 = vmatpush1.msra.mxu0 0.0
    %4101 = vmatprep.subr.mxu0 0.0
    %4102 = vmatpush1.msra.mxu0 0.0
    %4103 = vmatprep.subr.mxu0 0.0
    %4104 = vmatpush1.msra.mxu0 0.0
    %4105 = vmatprep.subr.mxu0 0.0
    %v4106 = vand.u32 %v3712, 4294901760
    %v4107 = vsub.f32 %v3712, %v4106
    %v4108 = vand.u32 %v4107, 4294901760
    %4109 = vmatpush1.msra.mxu0 %v4108
    %4110 = vmatprep.subr.mxu0 0.0
    %v4111 = vand.u32 %v3710, 4294901760
    %v4112 = vsub.f32 %v3710, %v4111
    %v4113 = vand.u32 %v4112, 4294901760
    %4114 = vmatpush1.msra.mxu0 %v4113
    %4115 = vmatprep.subr.mxu0 0.0
    %v4116 = vand.u32 %v3708, 4294901760
    %v4117 = vsub.f32 %v3708, %v4116
    %v4118 = vand.u32 %v4117, 4294901760
    %4119 = vmatpush1.msra.mxu0 %v4118
    %4120 = vmatprep.subr.mxu0 0.0
    %v4121 = vand.u32 %v3706, 4294901760
    %v4122 = vsub.f32 %v3706, %v4121
    %v4123 = vand.u32 %v4122, 4294901760
    %4124 = vmatpush1.msra.mxu0 %v4123
    %4125 = vmatprep.subr.mxu0 0.0
    %4126 = vmatpush2.msra.mxu0 0.0
    %4127 = vmatprep.subr.mxu0 0.0
    %4128 = vmatpush2.msra.mxu0 0.0
    %4129 = vmatprep.subr.mxu0 0.0
    %4130 = vmatpush2.msra.mxu0 0.0
    %4131 = vmatprep.subr.mxu0 0.0
    %4132 = vmatpush2.msra.mxu0 0.0
    %4133 = vmatprep.subr.mxu0 0.0
    %4134 = vmatpush2.msra.mxu0 0.0
    %4135 = vmatprep.subr.mxu0 0.0
    %4136 = vmatpush2.msra.mxu0 0.0
    %4137 = vmatprep.subr.mxu0 0.0
    %4138 = vmatpush2.msra.mxu0 0.0
    %4139 = vmatprep.subr.mxu0 0.0
    %4140 = vmatpush2.msra.mxu0 0.0
    %4141 = vmatprep.subr.mxu0 0.0
    %4142 = vmatpush2.msra.mxu0 0.0
    %4143 = vmatprep.subr.mxu0 0.0
    %4144 = vmatpush2.msra.mxu0 0.0
    %4145 = vmatprep.subr.mxu0 0.0
    %4146 = vmatpush2.msra.mxu0 0.0
    %4147 = vmatprep.subr.mxu0 0.0
    %4148 = vmatpush2.msra.mxu0 0.0
    %4149 = vmatprep.subr.mxu0 0.0
    %4150 = vmatpush2.msra.mxu0 0.0
    %4151 = vmatprep.subr.mxu0 0.0
    %4152 = vmatpush2.msra.mxu0 0.0
    %4153 = vmatprep.subr.mxu0 0.0
    %4154 = vmatpush2.msra.mxu0 0.0
    %4155 = vmatprep.subr.mxu0 0.0
    %4156 = vmatpush2.msra.mxu0 0.0
    %4157 = vmatprep.mubr.f32.mxu0 0.0
    %v4158 = vand.u32 %v3718, 4294901760
    %4159 = vmatmul.mubr.f32.gmra.mxu0 %v4158
    %v4160 = vpop.f32.mrf.mxu0
    %v4161 = vadd.f32 %v4070, %v4160
    %v4162 = vpop.f32.mrf.mxu0
    %4163 = vmatprep.mubr.f32.mxu0 0.0
    %v4164 = vand.u32 %v3721, 4294901760
    %4165 = vmatmul.mubr.f32.gmra.mxu0 %v4164
    %v4166 = vpop.f32.mrf.mxu0
    %v4167 = vadd.f32 %v4078, %v4166
    %v4168 = vpop.f32.mrf.mxu0
    %4169 = vdwg.mxu0
    %4170 = vmatprep.subr.mxu0 0.0
    %4171 = vmatpush1.msra.mxu0 0.0
    %4172 = vmatprep.subr.mxu0 0.0
    %4173 = vmatpush1.msra.mxu0 0.0
    %4174 = vmatprep.subr.mxu0 0.0
    %4175 = vmatpush1.msra.mxu0 0.0
    %4176 = vmatprep.subr.mxu0 0.0
    %4177 = vmatpush1.msra.mxu0 0.0
    %4178 = vmatprep.subr.mxu0 0.0
    %4179 = vmatpush1.msra.mxu0 0.0
    %4180 = vmatprep.subr.mxu0 0.0
    %4181 = vmatpush1.msra.mxu0 0.0
    %4182 = vmatprep.subr.mxu0 0.0
    %4183 = vmatpush1.msra.mxu0 0.0
    %4184 = vmatprep.subr.mxu0 0.0
    %4185 = vmatpush1.msra.mxu0 0.0
    %4186 = vmatprep.subr.mxu0 0.0
    %4187 = vmatpush1.msra.mxu0 0.0
    %4188 = vmatprep.subr.mxu0 0.0
    %4189 = vmatpush1.msra.mxu0 0.0
    %4190 = vmatprep.subr.mxu0 0.0
    %4191 = vmatpush1.msra.mxu0 0.0
    %4192 = vmatprep.subr.mxu0 0.0
    %4193 = vmatpush1.msra.mxu0 0.0
    %4194 = vmatprep.subr.mxu0 0.0
    %v4195 = vand.u32 %v3712, 4294901760
    %4196 = vmatpush1.msra.mxu0 %v4195
    %4197 = vmatprep.subr.mxu0 0.0
    %v4198 = vand.u32 %v3710, 4294901760
    %4199 = vmatpush1.msra.mxu0 %v4198
    %4200 = vmatprep.subr.mxu0 0.0
    %v4201 = vand.u32 %v3708, 4294901760
    %4202 = vmatpush1.msra.mxu0 %v4201
    %4203 = vmatprep.subr.mxu0 0.0
    %v4204 = vand.u32 %v3706, 4294901760
    %4205 = vmatpush1.msra.mxu0 %v4204
    %4206 = vmatprep.subr.mxu0 0.0
    %4207 = vmatpush2.msra.mxu0 0.0
    %4208 = vmatprep.subr.mxu0 0.0
    %4209 = vmatpush2.msra.mxu0 0.0
    %4210 = vmatprep.subr.mxu0 0.0
    %4211 = vmatpush2.msra.mxu0 0.0
    %4212 = vmatprep.subr.mxu0 0.0
    %4213 = vmatpush2.msra.mxu0 0.0
    %4214 = vmatprep.subr.mxu0 0.0
    %4215 = vmatpush2.msra.mxu0 0.0
    %4216 = vmatprep.subr.mxu0 0.0
    %4217 = vmatpush2.msra.mxu0 0.0
    %4218 = vmatprep.subr.mxu0 0.0
    %4219 = vmatpush2.msra.mxu0 0.0
    %4220 = vmatprep.subr.mxu0 0.0
    %4221 = vmatpush2.msra.mxu0 0.0
    %4222 = vmatprep.subr.mxu0 0.0
    %4223 = vmatpush2.msra.mxu0 0.0
    %4224 = vmatprep.subr.mxu0 0.0
    %4225 = vmatpush2.msra.mxu0 0.0
    %4226 = vmatprep.subr.mxu0 0.0
    %4227 = vmatpush2.msra.mxu0 0.0
    %4228 = vmatprep.subr.mxu0 0.0
    %4229 = vmatpush2.msra.mxu0 0.0
    %4230 = vmatprep.subr.mxu0 0.0
    %4231 = vmatpush2.msra.mxu0 0.0
    %4232 = vmatprep.subr.mxu0 0.0
    %4233 = vmatpush2.msra.mxu0 0.0
    %4234 = vmatprep.subr.mxu0 0.0
    %4235 = vmatpush2.msra.mxu0 0.0
    %4236 = vmatprep.subr.mxu0 0.0
    %4237 = vmatpush2.msra.mxu0 0.0
    %4238 = vmatprep.mubr.f32.mxu0 0.0
    %v4239 = vand.u32 %v3718, 4294901760
    %4240 = vmatmul.mubr.f32.gmra.mxu0 %v4239
    %v4241 = vpop.f32.mrf.mxu0
    %v4242 = vadd.f32 %v4161, %v4241
    %v4243 = vpop.f32.mrf.mxu0
    %4244 = vmatprep.mubr.f32.mxu0 0.0
    %v4245 = vand.u32 %v3721, 4294901760
    %4246 = vmatmul.mubr.f32.gmra.mxu0 %v4245
    %v4247 = vpop.f32.mrf.mxu0
    %v4248 = vadd.f32 %v4167, %v4247
    %v4249 = vpop.f32.mrf.mxu0
    %4250 = vdwg.mxu0
    %v4251 = vadd.f32 %v99, %v4242
    %v4252 = vadd.f32 %v100, %v4248
    %v4253 = vsel %vm61, %v4251, 0.0
    %4254 = vadd.xlane.f32.xlu0 %v4253
    %v4255 = vpop.xlane.xlu0 %4254
    %v4256 = vsel %vm61, %v4252, 0.0
    %4257 = vadd.xlane.f32.xlu0 %v4256
    %v4258 = vpop.xlane.xlu0 %4257
    %v4259 = vmul.f32 %v4255, %v68
    %v4260 = vmul.f32 %v4258, %v68
    %v4261 = vsub.f32 %v4251, %v4259
    %v4262 = vsub.f32 %v4252, %v4260
    %v4263 = vmul.f32 %v4261, %v4261
    %v4264 = vmul.f32 %v4262, %v4262
    %v4265 = vsel %vm61, %v4263, 0.0
    %4266 = vadd.xlane.f32.xlu0 %v4265
    %v4267 = vpop.xlane.xlu0 %4266
    %v4268 = vsel %vm61, %v4264, 0.0
    %4269 = vadd.xlane.f32.xlu0 %v4268
    %v4270 = vpop.xlane.xlu0 %4269
    %v4271 = vmul.f32 %v4267, %v68
    %v4272 = vmul.f32 %v4270, %v68
    %v4273 = vadd.f32 %v4271, 1e-05
    %v4274 = vadd.f32 %v4272, 1e-05
    %v4275 = vrsqrt.pop %v4273
    %v4276 = vrsqrt.pop %v4274
    %v4277 = vmul.f32 %v4261, %v4275
    %v4278 = vmul.f32 %v4262, %v4276
    %v4279 = vlaneseq
    %v4280 = vshrl.u32 %v4279, 7
    %v4281 = vsub.s32 0, %v4280
    %v4282 = vrot.slane %v57, %v4281
    %v4283 = vmul.f32 %v4277, %v4282
    %v4284 = vmul.f32 %v4278, %v4282
    %v4285 = vlaneseq
    %v4286 = vshrl.u32 %v4285, 7
    %v4287 = vsub.s32 0, %v4286
    %v4288 = vrot.slane %v58, %v4287
    %v4289 = vadd.f32 %v4283, %v4288
    %v4290 = vadd.f32 %v4284, %v4288
    %v4291 = vlaneseq
    %v4292 = vshrl.u32 %v4291, 7
    %v4293 = vsub.s32 0, %v4292
    %v4294 = vrot.slane %v53, %v4293
    %v4296 = vsel %vm61, %v4289, 0
    %v4299 = vsel %vm61, %v4290, 0
    %4301 = vmatprep.subr.mxu0 0.0
    %4302 = vmatpush1.msra.mxu0 0.0
    %4303 = vmatprep.subr.mxu0 0.0
    %4304 = vmatpush1.msra.mxu0 0.0
    %4305 = vmatprep.subr.mxu0 0.0
    %4306 = vmatpush1.msra.mxu0 0.0
    %4307 = vmatprep.subr.mxu0 0.0
    %4308 = vmatpush1.msra.mxu0 0.0
    %4309 = vmatprep.subr.mxu0 0.0
    %4310 = vmatpush1.msra.mxu0 0.0
    %4311 = vmatprep.subr.mxu0 0.0
    %4312 = vmatpush1.msra.mxu0 0.0
    %4313 = vmatprep.subr.mxu0 0.0
    %4314 = vmatpush1.msra.mxu0 0.0
    %4315 = vmatprep.subr.mxu0 0.0
    %4316 = vmatpush1.msra.mxu0 0.0
    %4317 = vmatprep.subr.mxu0 0.0
    %4318 = vmatpush1.msra.mxu0 0.0
    %4319 = vmatprep.subr.mxu0 0.0
    %4320 = vmatpush1.msra.mxu0 0.0
    %4321 = vmatprep.subr.mxu0 0.0
    %4322 = vmatpush1.msra.mxu0 0.0
    %4323 = vmatprep.subr.mxu0 0.0
    %4324 = vmatpush1.msra.mxu0 0.0
    %4325 = vmatprep.subr.mxu0 0.0
    %v4326 = vand.u32 %v42, 4294901760
    %4327 = vmatpush1.msra.mxu0 %v4326
    %4328 = vmatprep.subr.mxu0 0.0
    %v4329 = vand.u32 %v41, 4294901760
    %4330 = vmatpush1.msra.mxu0 %v4329
    %4331 = vmatprep.subr.mxu0 0.0
    %v4332 = vand.u32 %v40, 4294901760
    %4333 = vmatpush1.msra.mxu0 %v4332
    %4334 = vmatprep.subr.mxu0 0.0
    %v4335 = vand.u32 %v39, 4294901760
    %4336 = vmatpush1.msra.mxu0 %v4335
    %4337 = vmatprep.subr.mxu0 0.0
    %4338 = vmatpush2.msra.mxu0 0.0
    %4339 = vmatprep.subr.mxu0 0.0
    %4340 = vmatpush2.msra.mxu0 0.0
    %4341 = vmatprep.subr.mxu0 0.0
    %4342 = vmatpush2.msra.mxu0 0.0
    %4343 = vmatprep.subr.mxu0 0.0
    %4344 = vmatpush2.msra.mxu0 0.0
    %4345 = vmatprep.subr.mxu0 0.0
    %4346 = vmatpush2.msra.mxu0 0.0
    %4347 = vmatprep.subr.mxu0 0.0
    %4348 = vmatpush2.msra.mxu0 0.0
    %4349 = vmatprep.subr.mxu0 0.0
    %4350 = vmatpush2.msra.mxu0 0.0
    %4351 = vmatprep.subr.mxu0 0.0
    %4352 = vmatpush2.msra.mxu0 0.0
    %4353 = vmatprep.subr.mxu0 0.0
    %4354 = vmatpush2.msra.mxu0 0.0
    %4355 = vmatprep.subr.mxu0 0.0
    %4356 = vmatpush2.msra.mxu0 0.0
    %4357 = vmatprep.subr.mxu0 0.0
    %4358 = vmatpush2.msra.mxu0 0.0
    %4359 = vmatprep.subr.mxu0 0.0
    %4360 = vmatpush2.msra.mxu0 0.0
    %4361 = vmatprep.subr.mxu0 0.0
    %4362 = vmatpush2.msra.mxu0 0.0
    %4363 = vmatprep.subr.mxu0 0.0
    %4364 = vmatpush2.msra.mxu0 0.0
    %4365 = vmatprep.subr.mxu0 0.0
    %4366 = vmatpush2.msra.mxu0 0.0
    %4367 = vmatprep.subr.mxu0 0.0
    %4368 = vmatpush2.msra.mxu0 0.0
    %4369 = vmatprep.mubr.f32.mxu0 0.0
    %v4370 = vand.u32 %v4296, 4294901760
    %v4371 = vsub.f32 %v4296, %v4370
    %v4372 = vand.u32 %v4371, 4294901760
    %v4373 = vsub.f32 %v4371, %v4372
    %v4374 = vand.u32 %v4373, 4294901760
    %4375 = vmatmul.mubr.f32.gmra.mxu0 %v4374
    %v4376 = vpop.f32.mrf.mxu0
    %v4377 = vadd.f32 %v4294, %v4376
    %v4378 = vpop.f32.mrf.mxu0
    %4379 = vmatprep.mubr.f32.mxu0 0.0
    %v4380 = vand.u32 %v4299, 4294901760
    %v4381 = vsub.f32 %v4299, %v4380
    %v4382 = vand.u32 %v4381, 4294901760
    %v4383 = vsub.f32 %v4381, %v4382
    %v4384 = vand.u32 %v4383, 4294901760
    %4385 = vmatmul.mubr.f32.gmra.mxu0 %v4384
    %v4386 = vpop.f32.mrf.mxu0
    %v4387 = vadd.f32 %v4294, %v4386
    %v4388 = vpop.f32.mrf.mxu0
    %4389 = vdwg.mxu0
    %4390 = vmatprep.subr.mxu0 0.0
    %4391 = vmatpush1.msra.mxu0 0.0
    %4392 = vmatprep.subr.mxu0 0.0
    %4393 = vmatpush1.msra.mxu0 0.0
    %4394 = vmatprep.subr.mxu0 0.0
    %4395 = vmatpush1.msra.mxu0 0.0
    %4396 = vmatprep.subr.mxu0 0.0
    %4397 = vmatpush1.msra.mxu0 0.0
    %4398 = vmatprep.subr.mxu0 0.0
    %4399 = vmatpush1.msra.mxu0 0.0
    %4400 = vmatprep.subr.mxu0 0.0
    %4401 = vmatpush1.msra.mxu0 0.0
    %4402 = vmatprep.subr.mxu0 0.0
    %4403 = vmatpush1.msra.mxu0 0.0
    %4404 = vmatprep.subr.mxu0 0.0
    %4405 = vmatpush1.msra.mxu0 0.0
    %4406 = vmatprep.subr.mxu0 0.0
    %4407 = vmatpush1.msra.mxu0 0.0
    %4408 = vmatprep.subr.mxu0 0.0
    %4409 = vmatpush1.msra.mxu0 0.0
    %4410 = vmatprep.subr.mxu0 0.0
    %4411 = vmatpush1.msra.mxu0 0.0
    %4412 = vmatprep.subr.mxu0 0.0
    %4413 = vmatpush1.msra.mxu0 0.0
    %4414 = vmatprep.subr.mxu0 0.0
    %v4415 = vand.u32 %v42, 4294901760
    %v4416 = vsub.f32 %v42, %v4415
    %v4417 = vand.u32 %v4416, 4294901760
    %v4418 = vsub.f32 %v4416, %v4417
    %v4419 = vand.u32 %v4418, 4294901760
    %4420 = vmatpush1.msra.mxu0 %v4419
    %4421 = vmatprep.subr.mxu0 0.0
    %v4422 = vand.u32 %v41, 4294901760
    %v4423 = vsub.f32 %v41, %v4422
    %v4424 = vand.u32 %v4423, 4294901760
    %v4425 = vsub.f32 %v4423, %v4424
    %v4426 = vand.u32 %v4425, 4294901760
    %4427 = vmatpush1.msra.mxu0 %v4426
    %4428 = vmatprep.subr.mxu0 0.0
    %v4429 = vand.u32 %v40, 4294901760
    %v4430 = vsub.f32 %v40, %v4429
    %v4431 = vand.u32 %v4430, 4294901760
    %v4432 = vsub.f32 %v4430, %v4431
    %v4433 = vand.u32 %v4432, 4294901760
    %4434 = vmatpush1.msra.mxu0 %v4433
    %4435 = vmatprep.subr.mxu0 0.0
    %v4436 = vand.u32 %v39, 4294901760
    %v4437 = vsub.f32 %v39, %v4436
    %v4438 = vand.u32 %v4437, 4294901760
    %v4439 = vsub.f32 %v4437, %v4438
    %v4440 = vand.u32 %v4439, 4294901760
    %4441 = vmatpush1.msra.mxu0 %v4440
    %4442 = vmatprep.subr.mxu0 0.0
    %4443 = vmatpush2.msra.mxu0 0.0
    %4444 = vmatprep.subr.mxu0 0.0
    %4445 = vmatpush2.msra.mxu0 0.0
    %4446 = vmatprep.subr.mxu0 0.0
    %4447 = vmatpush2.msra.mxu0 0.0
    %4448 = vmatprep.subr.mxu0 0.0
    %4449 = vmatpush2.msra.mxu0 0.0
    %4450 = vmatprep.subr.mxu0 0.0
    %4451 = vmatpush2.msra.mxu0 0.0
    %4452 = vmatprep.subr.mxu0 0.0
    %4453 = vmatpush2.msra.mxu0 0.0
    %4454 = vmatprep.subr.mxu0 0.0
    %4455 = vmatpush2.msra.mxu0 0.0
    %4456 = vmatprep.subr.mxu0 0.0
    %4457 = vmatpush2.msra.mxu0 0.0
    %4458 = vmatprep.subr.mxu0 0.0
    %4459 = vmatpush2.msra.mxu0 0.0
    %4460 = vmatprep.subr.mxu0 0.0
    %4461 = vmatpush2.msra.mxu0 0.0
    %4462 = vmatprep.subr.mxu0 0.0
    %4463 = vmatpush2.msra.mxu0 0.0
    %4464 = vmatprep.subr.mxu0 0.0
    %4465 = vmatpush2.msra.mxu0 0.0
    %4466 = vmatprep.subr.mxu0 0.0
    %4467 = vmatpush2.msra.mxu0 0.0
    %4468 = vmatprep.subr.mxu0 0.0
    %4469 = vmatpush2.msra.mxu0 0.0
    %4470 = vmatprep.subr.mxu0 0.0
    %4471 = vmatpush2.msra.mxu0 0.0
    %4472 = vmatprep.subr.mxu0 0.0
    %4473 = vmatpush2.msra.mxu0 0.0
    %4474 = vmatprep.mubr.f32.mxu0 0.0
    %v4475 = vand.u32 %v4296, 4294901760
    %4476 = vmatmul.mubr.f32.gmra.mxu0 %v4475
    %v4477 = vpop.f32.mrf.mxu0
    %v4478 = vadd.f32 %v4377, %v4477
    %v4479 = vpop.f32.mrf.mxu0
    %4480 = vmatprep.mubr.f32.mxu0 0.0
    %v4481 = vand.u32 %v4299, 4294901760
    %4482 = vmatmul.mubr.f32.gmra.mxu0 %v4481
    %v4483 = vpop.f32.mrf.mxu0
    %v4484 = vadd.f32 %v4387, %v4483
    %v4485 = vpop.f32.mrf.mxu0
    %4486 = vdwg.mxu0
    %4487 = vmatprep.subr.mxu0 0.0
    %4488 = vmatpush1.msra.mxu0 0.0
    %4489 = vmatprep.subr.mxu0 0.0
    %4490 = vmatpush1.msra.mxu0 0.0
    %4491 = vmatprep.subr.mxu0 0.0
    %4492 = vmatpush1.msra.mxu0 0.0
    %4493 = vmatprep.subr.mxu0 0.0
    %4494 = vmatpush1.msra.mxu0 0.0
    %4495 = vmatprep.subr.mxu0 0.0
    %4496 = vmatpush1.msra.mxu0 0.0
    %4497 = vmatprep.subr.mxu0 0.0
    %4498 = vmatpush1.msra.mxu0 0.0
    %4499 = vmatprep.subr.mxu0 0.0
    %4500 = vmatpush1.msra.mxu0 0.0
    %4501 = vmatprep.subr.mxu0 0.0
    %4502 = vmatpush1.msra.mxu0 0.0
    %4503 = vmatprep.subr.mxu0 0.0
    %4504 = vmatpush1.msra.mxu0 0.0
    %4505 = vmatprep.subr.mxu0 0.0
    %4506 = vmatpush1.msra.mxu0 0.0
    %4507 = vmatprep.subr.mxu0 0.0
    %4508 = vmatpush1.msra.mxu0 0.0
    %4509 = vmatprep.subr.mxu0 0.0
    %4510 = vmatpush1.msra.mxu0 0.0
    %4511 = vmatprep.subr.mxu0 0.0
    %v4512 = vand.u32 %v42, 4294901760
    %v4513 = vsub.f32 %v42, %v4512
    %4514 = vmatpush1.msra.mxu0 %v4513
    %4515 = vmatprep.subr.mxu0 0.0
    %v4516 = vand.u32 %v41, 4294901760
    %v4517 = vsub.f32 %v41, %v4516
    %4518 = vmatpush1.msra.mxu0 %v4517
    %4519 = vmatprep.subr.mxu0 0.0
    %v4520 = vand.u32 %v40, 4294901760
    %v4521 = vsub.f32 %v40, %v4520
    %4522 = vmatpush1.msra.mxu0 %v4521
    %4523 = vmatprep.subr.mxu0 0.0
    %v4524 = vand.u32 %v39, 4294901760
    %v4525 = vsub.f32 %v39, %v4524
    %4526 = vmatpush1.msra.mxu0 %v4525
    %4527 = vmatprep.subr.mxu0 0.0
    %4528 = vmatpush2.msra.mxu0 0.0
    %4529 = vmatprep.subr.mxu0 0.0
    %4530 = vmatpush2.msra.mxu0 0.0
    %4531 = vmatprep.subr.mxu0 0.0
    %4532 = vmatpush2.msra.mxu0 0.0
    %4533 = vmatprep.subr.mxu0 0.0
    %4534 = vmatpush2.msra.mxu0 0.0
    %4535 = vmatprep.subr.mxu0 0.0
    %4536 = vmatpush2.msra.mxu0 0.0
    %4537 = vmatprep.subr.mxu0 0.0
    %4538 = vmatpush2.msra.mxu0 0.0
    %4539 = vmatprep.subr.mxu0 0.0
    %4540 = vmatpush2.msra.mxu0 0.0
    %4541 = vmatprep.subr.mxu0 0.0
    %4542 = vmatpush2.msra.mxu0 0.0
    %4543 = vmatprep.subr.mxu0 0.0
    %4544 = vmatpush2.msra.mxu0 0.0
    %4545 = vmatprep.subr.mxu0 0.0
    %4546 = vmatpush2.msra.mxu0 0.0
    %4547 = vmatprep.subr.mxu0 0.0
    %4548 = vmatpush2.msra.mxu0 0.0
    %4549 = vmatprep.subr.mxu0 0.0
    %4550 = vmatpush2.msra.mxu0 0.0
    %4551 = vmatprep.subr.mxu0 0.0
    %4552 = vmatpush2.msra.mxu0 0.0
    %4553 = vmatprep.subr.mxu0 0.0
    %4554 = vmatpush2.msra.mxu0 0.0
    %4555 = vmatprep.subr.mxu0 0.0
    %4556 = vmatpush2.msra.mxu0 0.0
    %4557 = vmatprep.subr.mxu0 0.0
    %4558 = vmatpush2.msra.mxu0 0.0
    %4559 = vmatprep.mubr.f32.mxu0 0.0
    %v4560 = vand.u32 %v4296, 4294901760
    %v4561 = vsub.f32 %v4296, %v4560
    %4562 = vmatmul.mubr.f32.gmra.mxu0 %v4561
    %v4563 = vpop.f32.mrf.mxu0
    %v4564 = vadd.f32 %v4478, %v4563
    %v4565 = vpop.f32.mrf.mxu0
    %4566 = vmatprep.mubr.f32.mxu0 0.0
    %v4567 = vand.u32 %v4299, 4294901760
    %v4568 = vsub.f32 %v4299, %v4567
    %4569 = vmatmul.mubr.f32.gmra.mxu0 %v4568
    %v4570 = vpop.f32.mrf.mxu0
    %v4571 = vadd.f32 %v4484, %v4570
    %v4572 = vpop.f32.mrf.mxu0
    %4573 = vdwg.mxu0
    %4574 = vmatprep.subr.mxu0 0.0
    %4575 = vmatpush1.msra.mxu0 0.0
    %4576 = vmatprep.subr.mxu0 0.0
    %4577 = vmatpush1.msra.mxu0 0.0
    %4578 = vmatprep.subr.mxu0 0.0
    %4579 = vmatpush1.msra.mxu0 0.0
    %4580 = vmatprep.subr.mxu0 0.0
    %4581 = vmatpush1.msra.mxu0 0.0
    %4582 = vmatprep.subr.mxu0 0.0
    %4583 = vmatpush1.msra.mxu0 0.0
    %4584 = vmatprep.subr.mxu0 0.0
    %4585 = vmatpush1.msra.mxu0 0.0
    %4586 = vmatprep.subr.mxu0 0.0
    %4587 = vmatpush1.msra.mxu0 0.0
    %4588 = vmatprep.subr.mxu0 0.0
    %4589 = vmatpush1.msra.mxu0 0.0
    %4590 = vmatprep.subr.mxu0 0.0
    %4591 = vmatpush1.msra.mxu0 0.0
    %4592 = vmatprep.subr.mxu0 0.0
    %4593 = vmatpush1.msra.mxu0 0.0
    %4594 = vmatprep.subr.mxu0 0.0
    %4595 = vmatpush1.msra.mxu0 0.0
    %4596 = vmatprep.subr.mxu0 0.0
    %4597 = vmatpush1.msra.mxu0 0.0
    %4598 = vmatprep.subr.mxu0 0.0
    %v4599 = vand.u32 %v42, 4294901760
    %4600 = vmatpush1.msra.mxu0 %v4599
    %4601 = vmatprep.subr.mxu0 0.0
    %v4602 = vand.u32 %v41, 4294901760
    %4603 = vmatpush1.msra.mxu0 %v4602
    %4604 = vmatprep.subr.mxu0 0.0
    %v4605 = vand.u32 %v40, 4294901760
    %4606 = vmatpush1.msra.mxu0 %v4605
    %4607 = vmatprep.subr.mxu0 0.0
    %v4608 = vand.u32 %v39, 4294901760
    %4609 = vmatpush1.msra.mxu0 %v4608
    %4610 = vmatprep.subr.mxu0 0.0
    %4611 = vmatpush2.msra.mxu0 0.0
    %4612 = vmatprep.subr.mxu0 0.0
    %4613 = vmatpush2.msra.mxu0 0.0
    %4614 = vmatprep.subr.mxu0 0.0
    %4615 = vmatpush2.msra.mxu0 0.0
    %4616 = vmatprep.subr.mxu0 0.0
    %4617 = vmatpush2.msra.mxu0 0.0
    %4618 = vmatprep.subr.mxu0 0.0
    %4619 = vmatpush2.msra.mxu0 0.0
    %4620 = vmatprep.subr.mxu0 0.0
    %4621 = vmatpush2.msra.mxu0 0.0
    %4622 = vmatprep.subr.mxu0 0.0
    %4623 = vmatpush2.msra.mxu0 0.0
    %4624 = vmatprep.subr.mxu0 0.0
    %4625 = vmatpush2.msra.mxu0 0.0
    %4626 = vmatprep.subr.mxu0 0.0
    %4627 = vmatpush2.msra.mxu0 0.0
    %4628 = vmatprep.subr.mxu0 0.0
    %4629 = vmatpush2.msra.mxu0 0.0
    %4630 = vmatprep.subr.mxu0 0.0
    %4631 = vmatpush2.msra.mxu0 0.0
    %4632 = vmatprep.subr.mxu0 0.0
    %4633 = vmatpush2.msra.mxu0 0.0
    %4634 = vmatprep.subr.mxu0 0.0
    %4635 = vmatpush2.msra.mxu0 0.0
    %4636 = vmatprep.subr.mxu0 0.0
    %4637 = vmatpush2.msra.mxu0 0.0
    %4638 = vmatprep.subr.mxu0 0.0
    %4639 = vmatpush2.msra.mxu0 0.0
    %4640 = vmatprep.subr.mxu0 0.0
    %4641 = vmatpush2.msra.mxu0 0.0
    %4642 = vmatprep.mubr.f32.mxu0 0.0
    %v4643 = vand.u32 %v4296, 4294901760
    %v4644 = vsub.f32 %v4296, %v4643
    %v4645 = vand.u32 %v4644, 4294901760
    %4646 = vmatmul.mubr.f32.gmra.mxu0 %v4645
    %v4647 = vpop.f32.mrf.mxu0
    %v4648 = vadd.f32 %v4564, %v4647
    %v4649 = vpop.f32.mrf.mxu0
    %4650 = vmatprep.mubr.f32.mxu0 0.0
    %v4651 = vand.u32 %v4299, 4294901760
    %v4652 = vsub.f32 %v4299, %v4651
    %v4653 = vand.u32 %v4652, 4294901760
    %4654 = vmatmul.mubr.f32.gmra.mxu0 %v4653
    %v4655 = vpop.f32.mrf.mxu0
    %v4656 = vadd.f32 %v4571, %v4655
    %v4657 = vpop.f32.mrf.mxu0
    %4658 = vdwg.mxu0
    %4659 = vmatprep.subr.mxu0 0.0
    %4660 = vmatpush1.msra.mxu0 0.0
    %4661 = vmatprep.subr.mxu0 0.0
    %4662 = vmatpush1.msra.mxu0 0.0
    %4663 = vmatprep.subr.mxu0 0.0
    %4664 = vmatpush1.msra.mxu0 0.0
    %4665 = vmatprep.subr.mxu0 0.0
    %4666 = vmatpush1.msra.mxu0 0.0
    %4667 = vmatprep.subr.mxu0 0.0
    %4668 = vmatpush1.msra.mxu0 0.0
    %4669 = vmatprep.subr.mxu0 0.0
    %4670 = vmatpush1.msra.mxu0 0.0
    %4671 = vmatprep.subr.mxu0 0.0
    %4672 = vmatpush1.msra.mxu0 0.0
    %4673 = vmatprep.subr.mxu0 0.0
    %4674 = vmatpush1.msra.mxu0 0.0
    %4675 = vmatprep.subr.mxu0 0.0
    %4676 = vmatpush1.msra.mxu0 0.0
    %4677 = vmatprep.subr.mxu0 0.0
    %4678 = vmatpush1.msra.mxu0 0.0
    %4679 = vmatprep.subr.mxu0 0.0
    %4680 = vmatpush1.msra.mxu0 0.0
    %4681 = vmatprep.subr.mxu0 0.0
    %4682 = vmatpush1.msra.mxu0 0.0
    %4683 = vmatprep.subr.mxu0 0.0
    %v4684 = vand.u32 %v42, 4294901760
    %v4685 = vsub.f32 %v42, %v4684
    %v4686 = vand.u32 %v4685, 4294901760
    %4687 = vmatpush1.msra.mxu0 %v4686
    %4688 = vmatprep.subr.mxu0 0.0
    %v4689 = vand.u32 %v41, 4294901760
    %v4690 = vsub.f32 %v41, %v4689
    %v4691 = vand.u32 %v4690, 4294901760
    %4692 = vmatpush1.msra.mxu0 %v4691
    %4693 = vmatprep.subr.mxu0 0.0
    %v4694 = vand.u32 %v40, 4294901760
    %v4695 = vsub.f32 %v40, %v4694
    %v4696 = vand.u32 %v4695, 4294901760
    %4697 = vmatpush1.msra.mxu0 %v4696
    %4698 = vmatprep.subr.mxu0 0.0
    %v4699 = vand.u32 %v39, 4294901760
    %v4700 = vsub.f32 %v39, %v4699
    %v4701 = vand.u32 %v4700, 4294901760
    %4702 = vmatpush1.msra.mxu0 %v4701
    %4703 = vmatprep.subr.mxu0 0.0
    %4704 = vmatpush2.msra.mxu0 0.0
    %4705 = vmatprep.subr.mxu0 0.0
    %4706 = vmatpush2.msra.mxu0 0.0
    %4707 = vmatprep.subr.mxu0 0.0
    %4708 = vmatpush2.msra.mxu0 0.0
    %4709 = vmatprep.subr.mxu0 0.0
    %4710 = vmatpush2.msra.mxu0 0.0
    %4711 = vmatprep.subr.mxu0 0.0
    %4712 = vmatpush2.msra.mxu0 0.0
    %4713 = vmatprep.subr.mxu0 0.0
    %4714 = vmatpush2.msra.mxu0 0.0
    %4715 = vmatprep.subr.mxu0 0.0
    %4716 = vmatpush2.msra.mxu0 0.0
    %4717 = vmatprep.subr.mxu0 0.0
    %4718 = vmatpush2.msra.mxu0 0.0
    %4719 = vmatprep.subr.mxu0 0.0
    %4720 = vmatpush2.msra.mxu0 0.0
    %4721 = vmatprep.subr.mxu0 0.0
    %4722 = vmatpush2.msra.mxu0 0.0
    %4723 = vmatprep.subr.mxu0 0.0
    %4724 = vmatpush2.msra.mxu0 0.0
    %4725 = vmatprep.subr.mxu0 0.0
    %4726 = vmatpush2.msra.mxu0 0.0
    %4727 = vmatprep.subr.mxu0 0.0
    %4728 = vmatpush2.msra.mxu0 0.0
    %4729 = vmatprep.subr.mxu0 0.0
    %4730 = vmatpush2.msra.mxu0 0.0
    %4731 = vmatprep.subr.mxu0 0.0
    %4732 = vmatpush2.msra.mxu0 0.0
    %4733 = vmatprep.subr.mxu0 0.0
    %4734 = vmatpush2.msra.mxu0 0.0
    %4735 = vmatprep.mubr.f32.mxu0 0.0
    %v4736 = vand.u32 %v4296, 4294901760
    %4737 = vmatmul.mubr.f32.gmra.mxu0 %v4736
    %v4738 = vpop.f32.mrf.mxu0
    %v4739 = vadd.f32 %v4648, %v4738
    %v4740 = vpop.f32.mrf.mxu0
    %4741 = vmatprep.mubr.f32.mxu0 0.0
    %v4742 = vand.u32 %v4299, 4294901760
    %4743 = vmatmul.mubr.f32.gmra.mxu0 %v4742
    %v4744 = vpop.f32.mrf.mxu0
    %v4745 = vadd.f32 %v4656, %v4744
    %v4746 = vpop.f32.mrf.mxu0
    %4747 = vdwg.mxu0
    %4748 = vmatprep.subr.mxu0 0.0
    %4749 = vmatpush1.msra.mxu0 0.0
    %4750 = vmatprep.subr.mxu0 0.0
    %4751 = vmatpush1.msra.mxu0 0.0
    %4752 = vmatprep.subr.mxu0 0.0
    %4753 = vmatpush1.msra.mxu0 0.0
    %4754 = vmatprep.subr.mxu0 0.0
    %4755 = vmatpush1.msra.mxu0 0.0
    %4756 = vmatprep.subr.mxu0 0.0
    %4757 = vmatpush1.msra.mxu0 0.0
    %4758 = vmatprep.subr.mxu0 0.0
    %4759 = vmatpush1.msra.mxu0 0.0
    %4760 = vmatprep.subr.mxu0 0.0
    %4761 = vmatpush1.msra.mxu0 0.0
    %4762 = vmatprep.subr.mxu0 0.0
    %4763 = vmatpush1.msra.mxu0 0.0
    %4764 = vmatprep.subr.mxu0 0.0
    %4765 = vmatpush1.msra.mxu0 0.0
    %4766 = vmatprep.subr.mxu0 0.0
    %4767 = vmatpush1.msra.mxu0 0.0
    %4768 = vmatprep.subr.mxu0 0.0
    %4769 = vmatpush1.msra.mxu0 0.0
    %4770 = vmatprep.subr.mxu0 0.0
    %4771 = vmatpush1.msra.mxu0 0.0
    %4772 = vmatprep.subr.mxu0 0.0
    %v4773 = vand.u32 %v42, 4294901760
    %4774 = vmatpush1.msra.mxu0 %v4773
    %4775 = vmatprep.subr.mxu0 0.0
    %v4776 = vand.u32 %v41, 4294901760
    %4777 = vmatpush1.msra.mxu0 %v4776
    %4778 = vmatprep.subr.mxu0 0.0
    %v4779 = vand.u32 %v40, 4294901760
    %4780 = vmatpush1.msra.mxu0 %v4779
    %4781 = vmatprep.subr.mxu0 0.0
    %v4782 = vand.u32 %v39, 4294901760
    %4783 = vmatpush1.msra.mxu0 %v4782
    %4784 = vmatprep.subr.mxu0 0.0
    %4785 = vmatpush2.msra.mxu0 0.0
    %4786 = vmatprep.subr.mxu0 0.0
    %4787 = vmatpush2.msra.mxu0 0.0
    %4788 = vmatprep.subr.mxu0 0.0
    %4789 = vmatpush2.msra.mxu0 0.0
    %4790 = vmatprep.subr.mxu0 0.0
    %4791 = vmatpush2.msra.mxu0 0.0
    %4792 = vmatprep.subr.mxu0 0.0
    %4793 = vmatpush2.msra.mxu0 0.0
    %4794 = vmatprep.subr.mxu0 0.0
    %4795 = vmatpush2.msra.mxu0 0.0
    %4796 = vmatprep.subr.mxu0 0.0
    %4797 = vmatpush2.msra.mxu0 0.0
    %4798 = vmatprep.subr.mxu0 0.0
    %4799 = vmatpush2.msra.mxu0 0.0
    %4800 = vmatprep.subr.mxu0 0.0
    %4801 = vmatpush2.msra.mxu0 0.0
    %4802 = vmatprep.subr.mxu0 0.0
    %4803 = vmatpush2.msra.mxu0 0.0
    %4804 = vmatprep.subr.mxu0 0.0
    %4805 = vmatpush2.msra.mxu0 0.0
    %4806 = vmatprep.subr.mxu0 0.0
    %4807 = vmatpush2.msra.mxu0 0.0
    %4808 = vmatprep.subr.mxu0 0.0
    %4809 = vmatpush2.msra.mxu0 0.0
    %4810 = vmatprep.subr.mxu0 0.0
    %4811 = vmatpush2.msra.mxu0 0.0
    %4812 = vmatprep.subr.mxu0 0.0
    %4813 = vmatpush2.msra.mxu0 0.0
    %4814 = vmatprep.subr.mxu0 0.0
    %4815 = vmatpush2.msra.mxu0 0.0
    %4816 = vmatprep.mubr.f32.mxu0 0.0
    %v4817 = vand.u32 %v4296, 4294901760
    %4818 = vmatmul.mubr.f32.gmra.mxu0 %v4817
    %v4819 = vpop.f32.mrf.mxu0
    %v4820 = vadd.f32 %v4739, %v4819
    %v4821 = vpop.f32.mrf.mxu0
    %4822 = vmatprep.mubr.f32.mxu0 0.0
    %v4823 = vand.u32 %v4299, 4294901760
    %4824 = vmatmul.mubr.f32.gmra.mxu0 %v4823
    %v4825 = vpop.f32.mrf.mxu0
    %v4826 = vadd.f32 %v4745, %v4825
    %v4827 = vpop.f32.mrf.mxu0
    %4828 = vdwg.mxu0
    %v4829 = vmax.f32 %v4820, 0.0
    %v4830 = vmax.f32 %v4826, 0.0
    %v4831 = vlaneseq
    %v4832 = vshrl.u32 %v4831, 7
    %v4833 = vsub.s32 0, %v4832
    %v4834 = vrot.slane %v54, %v4833
    %v4836 = vsel %vm2442, %v4829, 0
    %v4839 = vsel %vm2442, %v4830, 0
    %4841 = vmatprep.subr.mxu0 0.0
    %4842 = vmatpush1.msra.mxu0 0.0
    %4843 = vmatprep.subr.mxu0 0.0
    %4844 = vmatpush1.msra.mxu0 0.0
    %4845 = vmatprep.subr.mxu0 0.0
    %4846 = vmatpush1.msra.mxu0 0.0
    %4847 = vmatprep.subr.mxu0 0.0
    %4848 = vmatpush1.msra.mxu0 0.0
    %4849 = vmatprep.subr.mxu0 0.0
    %4850 = vmatpush1.msra.mxu0 0.0
    %4851 = vmatprep.subr.mxu0 0.0
    %4852 = vmatpush1.msra.mxu0 0.0
    %4853 = vmatprep.subr.mxu0 0.0
    %4854 = vmatpush1.msra.mxu0 0.0
    %4855 = vmatprep.subr.mxu0 0.0
    %4856 = vmatpush1.msra.mxu0 0.0
    %4857 = vmatprep.subr.mxu0 0.0
    %v4858 = vand.u32 %v50, 4294901760
    %4859 = vmatpush1.msra.mxu0 %v4858
    %4860 = vmatprep.subr.mxu0 0.0
    %v4861 = vand.u32 %v49, 4294901760
    %4862 = vmatpush1.msra.mxu0 %v4861
    %4863 = vmatprep.subr.mxu0 0.0
    %v4864 = vand.u32 %v48, 4294901760
    %4865 = vmatpush1.msra.mxu0 %v4864
    %4866 = vmatprep.subr.mxu0 0.0
    %v4867 = vand.u32 %v47, 4294901760
    %4868 = vmatpush1.msra.mxu0 %v4867
    %4869 = vmatprep.subr.mxu0 0.0
    %v4870 = vand.u32 %v46, 4294901760
    %4871 = vmatpush1.msra.mxu0 %v4870
    %4872 = vmatprep.subr.mxu0 0.0
    %v4873 = vand.u32 %v45, 4294901760
    %4874 = vmatpush1.msra.mxu0 %v4873
    %4875 = vmatprep.subr.mxu0 0.0
    %v4876 = vand.u32 %v44, 4294901760
    %4877 = vmatpush1.msra.mxu0 %v4876
    %4878 = vmatprep.subr.mxu0 0.0
    %v4879 = vand.u32 %v43, 4294901760
    %4880 = vmatpush1.msra.mxu0 %v4879
    %4881 = vmatprep.subr.mxu0 0.0
    %4882 = vmatpush2.msra.mxu0 0.0
    %4883 = vmatprep.subr.mxu0 0.0
    %4884 = vmatpush2.msra.mxu0 0.0
    %4885 = vmatprep.subr.mxu0 0.0
    %4886 = vmatpush2.msra.mxu0 0.0
    %4887 = vmatprep.subr.mxu0 0.0
    %4888 = vmatpush2.msra.mxu0 0.0
    %4889 = vmatprep.subr.mxu0 0.0
    %4890 = vmatpush2.msra.mxu0 0.0
    %4891 = vmatprep.subr.mxu0 0.0
    %4892 = vmatpush2.msra.mxu0 0.0
    %4893 = vmatprep.subr.mxu0 0.0
    %4894 = vmatpush2.msra.mxu0 0.0
    %4895 = vmatprep.subr.mxu0 0.0
    %4896 = vmatpush2.msra.mxu0 0.0
    %4897 = vmatprep.subr.mxu0 0.0
    %4898 = vmatpush2.msra.mxu0 0.0
    %4899 = vmatprep.subr.mxu0 0.0
    %4900 = vmatpush2.msra.mxu0 0.0
    %4901 = vmatprep.subr.mxu0 0.0
    %4902 = vmatpush2.msra.mxu0 0.0
    %4903 = vmatprep.subr.mxu0 0.0
    %4904 = vmatpush2.msra.mxu0 0.0
    %4905 = vmatprep.subr.mxu0 0.0
    %4906 = vmatpush2.msra.mxu0 0.0
    %4907 = vmatprep.subr.mxu0 0.0
    %4908 = vmatpush2.msra.mxu0 0.0
    %4909 = vmatprep.subr.mxu0 0.0
    %4910 = vmatpush2.msra.mxu0 0.0
    %4911 = vmatprep.subr.mxu0 0.0
    %4912 = vmatpush2.msra.mxu0 0.0
    %4913 = vmatprep.mubr.f32.mxu0 0.0
    %v4914 = vand.u32 %v4836, 4294901760
    %v4915 = vsub.f32 %v4836, %v4914
    %v4916 = vand.u32 %v4915, 4294901760
    %v4917 = vsub.f32 %v4915, %v4916
    %v4918 = vand.u32 %v4917, 4294901760
    %4919 = vmatmul.mubr.f32.gmra.mxu0 %v4918
    %v4920 = vpop.f32.mrf.mxu0
    %v4921 = vadd.f32 %v4834, %v4920
    %v4922 = vpop.f32.mrf.mxu0
    %4923 = vmatprep.mubr.f32.mxu0 0.0
    %v4924 = vand.u32 %v4839, 4294901760
    %v4925 = vsub.f32 %v4839, %v4924
    %v4926 = vand.u32 %v4925, 4294901760
    %v4927 = vsub.f32 %v4925, %v4926
    %v4928 = vand.u32 %v4927, 4294901760
    %4929 = vmatmul.mubr.f32.gmra.mxu0 %v4928
    %v4930 = vpop.f32.mrf.mxu0
    %v4931 = vadd.f32 %v4834, %v4930
    %v4932 = vpop.f32.mrf.mxu0
    %4933 = vdwg.mxu0
    %4934 = vmatprep.subr.mxu0 0.0
    %4935 = vmatpush1.msra.mxu0 0.0
    %4936 = vmatprep.subr.mxu0 0.0
    %4937 = vmatpush1.msra.mxu0 0.0
    %4938 = vmatprep.subr.mxu0 0.0
    %4939 = vmatpush1.msra.mxu0 0.0
    %4940 = vmatprep.subr.mxu0 0.0
    %4941 = vmatpush1.msra.mxu0 0.0
    %4942 = vmatprep.subr.mxu0 0.0
    %4943 = vmatpush1.msra.mxu0 0.0
    %4944 = vmatprep.subr.mxu0 0.0
    %4945 = vmatpush1.msra.mxu0 0.0
    %4946 = vmatprep.subr.mxu0 0.0
    %4947 = vmatpush1.msra.mxu0 0.0
    %4948 = vmatprep.subr.mxu0 0.0
    %4949 = vmatpush1.msra.mxu0 0.0
    %4950 = vmatprep.subr.mxu0 0.0
    %v4951 = vand.u32 %v50, 4294901760
    %v4952 = vsub.f32 %v50, %v4951
    %v4953 = vand.u32 %v4952, 4294901760
    %v4954 = vsub.f32 %v4952, %v4953
    %v4955 = vand.u32 %v4954, 4294901760
    %4956 = vmatpush1.msra.mxu0 %v4955
    %4957 = vmatprep.subr.mxu0 0.0
    %v4958 = vand.u32 %v49, 4294901760
    %v4959 = vsub.f32 %v49, %v4958
    %v4960 = vand.u32 %v4959, 4294901760
    %v4961 = vsub.f32 %v4959, %v4960
    %v4962 = vand.u32 %v4961, 4294901760
    %4963 = vmatpush1.msra.mxu0 %v4962
    %4964 = vmatprep.subr.mxu0 0.0
    %v4965 = vand.u32 %v48, 4294901760
    %v4966 = vsub.f32 %v48, %v4965
    %v4967 = vand.u32 %v4966, 4294901760
    %v4968 = vsub.f32 %v4966, %v4967
    %v4969 = vand.u32 %v4968, 4294901760
    %4970 = vmatpush1.msra.mxu0 %v4969
    %4971 = vmatprep.subr.mxu0 0.0
    %v4972 = vand.u32 %v47, 4294901760
    %v4973 = vsub.f32 %v47, %v4972
    %v4974 = vand.u32 %v4973, 4294901760
    %v4975 = vsub.f32 %v4973, %v4974
    %v4976 = vand.u32 %v4975, 4294901760
    %4977 = vmatpush1.msra.mxu0 %v4976
    %4978 = vmatprep.subr.mxu0 0.0
    %v4979 = vand.u32 %v46, 4294901760
    %v4980 = vsub.f32 %v46, %v4979
    %v4981 = vand.u32 %v4980, 4294901760
    %v4982 = vsub.f32 %v4980, %v4981
    %v4983 = vand.u32 %v4982, 4294901760
    %4984 = vmatpush1.msra.mxu0 %v4983
    %4985 = vmatprep.subr.mxu0 0.0
    %v4986 = vand.u32 %v45, 4294901760
    %v4987 = vsub.f32 %v45, %v4986
    %v4988 = vand.u32 %v4987, 4294901760
    %v4989 = vsub.f32 %v4987, %v4988
    %v4990 = vand.u32 %v4989, 4294901760
    %4991 = vmatpush1.msra.mxu0 %v4990
    %4992 = vmatprep.subr.mxu0 0.0
    %v4993 = vand.u32 %v44, 4294901760
    %v4994 = vsub.f32 %v44, %v4993
    %v4995 = vand.u32 %v4994, 4294901760
    %v4996 = vsub.f32 %v4994, %v4995
    %v4997 = vand.u32 %v4996, 4294901760
    %4998 = vmatpush1.msra.mxu0 %v4997
    %4999 = vmatprep.subr.mxu0 0.0
    %v5000 = vand.u32 %v43, 4294901760
    %v5001 = vsub.f32 %v43, %v5000
    %v5002 = vand.u32 %v5001, 4294901760
    %v5003 = vsub.f32 %v5001, %v5002
    %v5004 = vand.u32 %v5003, 4294901760
    %5005 = vmatpush1.msra.mxu0 %v5004
    %5006 = vmatprep.subr.mxu0 0.0
    %5007 = vmatpush2.msra.mxu0 0.0
    %5008 = vmatprep.subr.mxu0 0.0
    %5009 = vmatpush2.msra.mxu0 0.0
    %5010 = vmatprep.subr.mxu0 0.0
    %5011 = vmatpush2.msra.mxu0 0.0
    %5012 = vmatprep.subr.mxu0 0.0
    %5013 = vmatpush2.msra.mxu0 0.0
    %5014 = vmatprep.subr.mxu0 0.0
    %5015 = vmatpush2.msra.mxu0 0.0
    %5016 = vmatprep.subr.mxu0 0.0
    %5017 = vmatpush2.msra.mxu0 0.0
    %5018 = vmatprep.subr.mxu0 0.0
    %5019 = vmatpush2.msra.mxu0 0.0
    %5020 = vmatprep.subr.mxu0 0.0
    %5021 = vmatpush2.msra.mxu0 0.0
    %5022 = vmatprep.subr.mxu0 0.0
    %5023 = vmatpush2.msra.mxu0 0.0
    %5024 = vmatprep.subr.mxu0 0.0
    %5025 = vmatpush2.msra.mxu0 0.0
    %5026 = vmatprep.subr.mxu0 0.0
    %5027 = vmatpush2.msra.mxu0 0.0
    %5028 = vmatprep.subr.mxu0 0.0
    %5029 = vmatpush2.msra.mxu0 0.0
    %5030 = vmatprep.subr.mxu0 0.0
    %5031 = vmatpush2.msra.mxu0 0.0
    %5032 = vmatprep.subr.mxu0 0.0
    %5033 = vmatpush2.msra.mxu0 0.0
    %5034 = vmatprep.subr.mxu0 0.0
    %5035 = vmatpush2.msra.mxu0 0.0
    %5036 = vmatprep.subr.mxu0 0.0
    %5037 = vmatpush2.msra.mxu0 0.0
    %5038 = vmatprep.mubr.f32.mxu0 0.0
    %v5039 = vand.u32 %v4836, 4294901760
    %5040 = vmatmul.mubr.f32.gmra.mxu0 %v5039
    %v5041 = vpop.f32.mrf.mxu0
    %v5042 = vadd.f32 %v4921, %v5041
    %v5043 = vpop.f32.mrf.mxu0
    %5044 = vmatprep.mubr.f32.mxu0 0.0
    %v5045 = vand.u32 %v4839, 4294901760
    %5046 = vmatmul.mubr.f32.gmra.mxu0 %v5045
    %v5047 = vpop.f32.mrf.mxu0
    %v5048 = vadd.f32 %v4931, %v5047
    %v5049 = vpop.f32.mrf.mxu0
    %5050 = vdwg.mxu0
    %5051 = vmatprep.subr.mxu0 0.0
    %5052 = vmatpush1.msra.mxu0 0.0
    %5053 = vmatprep.subr.mxu0 0.0
    %5054 = vmatpush1.msra.mxu0 0.0
    %5055 = vmatprep.subr.mxu0 0.0
    %5056 = vmatpush1.msra.mxu0 0.0
    %5057 = vmatprep.subr.mxu0 0.0
    %5058 = vmatpush1.msra.mxu0 0.0
    %5059 = vmatprep.subr.mxu0 0.0
    %5060 = vmatpush1.msra.mxu0 0.0
    %5061 = vmatprep.subr.mxu0 0.0
    %5062 = vmatpush1.msra.mxu0 0.0
    %5063 = vmatprep.subr.mxu0 0.0
    %5064 = vmatpush1.msra.mxu0 0.0
    %5065 = vmatprep.subr.mxu0 0.0
    %5066 = vmatpush1.msra.mxu0 0.0
    %5067 = vmatprep.subr.mxu0 0.0
    %v5068 = vand.u32 %v50, 4294901760
    %v5069 = vsub.f32 %v50, %v5068
    %5070 = vmatpush1.msra.mxu0 %v5069
    %5071 = vmatprep.subr.mxu0 0.0
    %v5072 = vand.u32 %v49, 4294901760
    %v5073 = vsub.f32 %v49, %v5072
    %5074 = vmatpush1.msra.mxu0 %v5073
    %5075 = vmatprep.subr.mxu0 0.0
    %v5076 = vand.u32 %v48, 4294901760
    %v5077 = vsub.f32 %v48, %v5076
    %5078 = vmatpush1.msra.mxu0 %v5077
    %5079 = vmatprep.subr.mxu0 0.0
    %v5080 = vand.u32 %v47, 4294901760
    %v5081 = vsub.f32 %v47, %v5080
    %5082 = vmatpush1.msra.mxu0 %v5081
    %5083 = vmatprep.subr.mxu0 0.0
    %v5084 = vand.u32 %v46, 4294901760
    %v5085 = vsub.f32 %v46, %v5084
    %5086 = vmatpush1.msra.mxu0 %v5085
    %5087 = vmatprep.subr.mxu0 0.0
    %v5088 = vand.u32 %v45, 4294901760
    %v5089 = vsub.f32 %v45, %v5088
    %5090 = vmatpush1.msra.mxu0 %v5089
    %5091 = vmatprep.subr.mxu0 0.0
    %v5092 = vand.u32 %v44, 4294901760
    %v5093 = vsub.f32 %v44, %v5092
    %5094 = vmatpush1.msra.mxu0 %v5093
    %5095 = vmatprep.subr.mxu0 0.0
    %v5096 = vand.u32 %v43, 4294901760
    %v5097 = vsub.f32 %v43, %v5096
    %5098 = vmatpush1.msra.mxu0 %v5097
    %5099 = vmatprep.subr.mxu0 0.0
    %5100 = vmatpush2.msra.mxu0 0.0
    %5101 = vmatprep.subr.mxu0 0.0
    %5102 = vmatpush2.msra.mxu0 0.0
    %5103 = vmatprep.subr.mxu0 0.0
    %5104 = vmatpush2.msra.mxu0 0.0
    %5105 = vmatprep.subr.mxu0 0.0
    %5106 = vmatpush2.msra.mxu0 0.0
    %5107 = vmatprep.subr.mxu0 0.0
    %5108 = vmatpush2.msra.mxu0 0.0
    %5109 = vmatprep.subr.mxu0 0.0
    %5110 = vmatpush2.msra.mxu0 0.0
    %5111 = vmatprep.subr.mxu0 0.0
    %5112 = vmatpush2.msra.mxu0 0.0
    %5113 = vmatprep.subr.mxu0 0.0
    %5114 = vmatpush2.msra.mxu0 0.0
    %5115 = vmatprep.subr.mxu0 0.0
    %5116 = vmatpush2.msra.mxu0 0.0
    %5117 = vmatprep.subr.mxu0 0.0
    %5118 = vmatpush2.msra.mxu0 0.0
    %5119 = vmatprep.subr.mxu0 0.0
    %5120 = vmatpush2.msra.mxu0 0.0
    %5121 = vmatprep.subr.mxu0 0.0
    %5122 = vmatpush2.msra.mxu0 0.0
    %5123 = vmatprep.subr.mxu0 0.0
    %5124 = vmatpush2.msra.mxu0 0.0
    %5125 = vmatprep.subr.mxu0 0.0
    %5126 = vmatpush2.msra.mxu0 0.0
    %5127 = vmatprep.subr.mxu0 0.0
    %5128 = vmatpush2.msra.mxu0 0.0
    %5129 = vmatprep.subr.mxu0 0.0
    %5130 = vmatpush2.msra.mxu0 0.0
    %5131 = vmatprep.mubr.f32.mxu0 0.0
    %v5132 = vand.u32 %v4836, 4294901760
    %v5133 = vsub.f32 %v4836, %v5132
    %5134 = vmatmul.mubr.f32.gmra.mxu0 %v5133
    %v5135 = vpop.f32.mrf.mxu0
    %v5136 = vadd.f32 %v5042, %v5135
    %v5137 = vpop.f32.mrf.mxu0
    %5138 = vmatprep.mubr.f32.mxu0 0.0
    %v5139 = vand.u32 %v4839, 4294901760
    %v5140 = vsub.f32 %v4839, %v5139
    %5141 = vmatmul.mubr.f32.gmra.mxu0 %v5140
    %v5142 = vpop.f32.mrf.mxu0
    %v5143 = vadd.f32 %v5048, %v5142
    %v5144 = vpop.f32.mrf.mxu0
    %5145 = vdwg.mxu0
    %5146 = vmatprep.subr.mxu0 0.0
    %5147 = vmatpush1.msra.mxu0 0.0
    %5148 = vmatprep.subr.mxu0 0.0
    %5149 = vmatpush1.msra.mxu0 0.0
    %5150 = vmatprep.subr.mxu0 0.0
    %5151 = vmatpush1.msra.mxu0 0.0
    %5152 = vmatprep.subr.mxu0 0.0
    %5153 = vmatpush1.msra.mxu0 0.0
    %5154 = vmatprep.subr.mxu0 0.0
    %5155 = vmatpush1.msra.mxu0 0.0
    %5156 = vmatprep.subr.mxu0 0.0
    %5157 = vmatpush1.msra.mxu0 0.0
    %5158 = vmatprep.subr.mxu0 0.0
    %5159 = vmatpush1.msra.mxu0 0.0
    %5160 = vmatprep.subr.mxu0 0.0
    %5161 = vmatpush1.msra.mxu0 0.0
    %5162 = vmatprep.subr.mxu0 0.0
    %v5163 = vand.u32 %v50, 4294901760
    %5164 = vmatpush1.msra.mxu0 %v5163
    %5165 = vmatprep.subr.mxu0 0.0
    %v5166 = vand.u32 %v49, 4294901760
    %5167 = vmatpush1.msra.mxu0 %v5166
    %5168 = vmatprep.subr.mxu0 0.0
    %v5169 = vand.u32 %v48, 4294901760
    %5170 = vmatpush1.msra.mxu0 %v5169
    %5171 = vmatprep.subr.mxu0 0.0
    %v5172 = vand.u32 %v47, 4294901760
    %5173 = vmatpush1.msra.mxu0 %v5172
    %5174 = vmatprep.subr.mxu0 0.0
    %v5175 = vand.u32 %v46, 4294901760
    %5176 = vmatpush1.msra.mxu0 %v5175
    %5177 = vmatprep.subr.mxu0 0.0
    %v5178 = vand.u32 %v45, 4294901760
    %5179 = vmatpush1.msra.mxu0 %v5178
    %5180 = vmatprep.subr.mxu0 0.0
    %v5181 = vand.u32 %v44, 4294901760
    %5182 = vmatpush1.msra.mxu0 %v5181
    %5183 = vmatprep.subr.mxu0 0.0
    %v5184 = vand.u32 %v43, 4294901760
    %5185 = vmatpush1.msra.mxu0 %v5184
    %5186 = vmatprep.subr.mxu0 0.0
    %5187 = vmatpush2.msra.mxu0 0.0
    %5188 = vmatprep.subr.mxu0 0.0
    %5189 = vmatpush2.msra.mxu0 0.0
    %5190 = vmatprep.subr.mxu0 0.0
    %5191 = vmatpush2.msra.mxu0 0.0
    %5192 = vmatprep.subr.mxu0 0.0
    %5193 = vmatpush2.msra.mxu0 0.0
    %5194 = vmatprep.subr.mxu0 0.0
    %5195 = vmatpush2.msra.mxu0 0.0
    %5196 = vmatprep.subr.mxu0 0.0
    %5197 = vmatpush2.msra.mxu0 0.0
    %5198 = vmatprep.subr.mxu0 0.0
    %5199 = vmatpush2.msra.mxu0 0.0
    %5200 = vmatprep.subr.mxu0 0.0
    %5201 = vmatpush2.msra.mxu0 0.0
    %5202 = vmatprep.subr.mxu0 0.0
    %5203 = vmatpush2.msra.mxu0 0.0
    %5204 = vmatprep.subr.mxu0 0.0
    %5205 = vmatpush2.msra.mxu0 0.0
    %5206 = vmatprep.subr.mxu0 0.0
    %5207 = vmatpush2.msra.mxu0 0.0
    %5208 = vmatprep.subr.mxu0 0.0
    %5209 = vmatpush2.msra.mxu0 0.0
    %5210 = vmatprep.subr.mxu0 0.0
    %5211 = vmatpush2.msra.mxu0 0.0
    %5212 = vmatprep.subr.mxu0 0.0
    %5213 = vmatpush2.msra.mxu0 0.0
    %5214 = vmatprep.subr.mxu0 0.0
    %5215 = vmatpush2.msra.mxu0 0.0
    %5216 = vmatprep.subr.mxu0 0.0
    %5217 = vmatpush2.msra.mxu0 0.0
    %5218 = vmatprep.mubr.f32.mxu0 0.0
    %v5219 = vand.u32 %v4836, 4294901760
    %v5220 = vsub.f32 %v4836, %v5219
    %v5221 = vand.u32 %v5220, 4294901760
    %5222 = vmatmul.mubr.f32.gmra.mxu0 %v5221
    %v5223 = vpop.f32.mrf.mxu0
    %v5224 = vadd.f32 %v5136, %v5223
    %v5225 = vpop.f32.mrf.mxu0
    %5226 = vmatprep.mubr.f32.mxu0 0.0
    %v5227 = vand.u32 %v4839, 4294901760
    %v5228 = vsub.f32 %v4839, %v5227
    %v5229 = vand.u32 %v5228, 4294901760
    %5230 = vmatmul.mubr.f32.gmra.mxu0 %v5229
    %v5231 = vpop.f32.mrf.mxu0
    %v5232 = vadd.f32 %v5143, %v5231
    %v5233 = vpop.f32.mrf.mxu0
    %5234 = vdwg.mxu0
    %5235 = vmatprep.subr.mxu0 0.0
    %5236 = vmatpush1.msra.mxu0 0.0
    %5237 = vmatprep.subr.mxu0 0.0
    %5238 = vmatpush1.msra.mxu0 0.0
    %5239 = vmatprep.subr.mxu0 0.0
    %5240 = vmatpush1.msra.mxu0 0.0
    %5241 = vmatprep.subr.mxu0 0.0
    %5242 = vmatpush1.msra.mxu0 0.0
    %5243 = vmatprep.subr.mxu0 0.0
    %5244 = vmatpush1.msra.mxu0 0.0
    %5245 = vmatprep.subr.mxu0 0.0
    %5246 = vmatpush1.msra.mxu0 0.0
    %5247 = vmatprep.subr.mxu0 0.0
    %5248 = vmatpush1.msra.mxu0 0.0
    %5249 = vmatprep.subr.mxu0 0.0
    %5250 = vmatpush1.msra.mxu0 0.0
    %5251 = vmatprep.subr.mxu0 0.0
    %v5252 = vand.u32 %v50, 4294901760
    %v5253 = vsub.f32 %v50, %v5252
    %v5254 = vand.u32 %v5253, 4294901760
    %5255 = vmatpush1.msra.mxu0 %v5254
    %5256 = vmatprep.subr.mxu0 0.0
    %v5257 = vand.u32 %v49, 4294901760
    %v5258 = vsub.f32 %v49, %v5257
    %v5259 = vand.u32 %v5258, 4294901760
    %5260 = vmatpush1.msra.mxu0 %v5259
    %5261 = vmatprep.subr.mxu0 0.0
    %v5262 = vand.u32 %v48, 4294901760
    %v5263 = vsub.f32 %v48, %v5262
    %v5264 = vand.u32 %v5263, 4294901760
    %5265 = vmatpush1.msra.mxu0 %v5264
    %5266 = vmatprep.subr.mxu0 0.0
    %v5267 = vand.u32 %v47, 4294901760
    %v5268 = vsub.f32 %v47, %v5267
    %v5269 = vand.u32 %v5268, 4294901760
    %5270 = vmatpush1.msra.mxu0 %v5269
    %5271 = vmatprep.subr.mxu0 0.0
    %v5272 = vand.u32 %v46, 4294901760
    %v5273 = vsub.f32 %v46, %v5272
    %v5274 = vand.u32 %v5273, 4294901760
    %5275 = vmatpush1.msra.mxu0 %v5274
    %5276 = vmatprep.subr.mxu0 0.0
    %v5277 = vand.u32 %v45, 4294901760
    %v5278 = vsub.f32 %v45, %v5277
    %v5279 = vand.u32 %v5278, 4294901760
    %5280 = vmatpush1.msra.mxu0 %v5279
    %5281 = vmatprep.subr.mxu0 0.0
    %v5282 = vand.u32 %v44, 4294901760
    %v5283 = vsub.f32 %v44, %v5282
    %v5284 = vand.u32 %v5283, 4294901760
    %5285 = vmatpush1.msra.mxu0 %v5284
    %5286 = vmatprep.subr.mxu0 0.0
    %v5287 = vand.u32 %v43, 4294901760
    %v5288 = vsub.f32 %v43, %v5287
    %v5289 = vand.u32 %v5288, 4294901760
    %5290 = vmatpush1.msra.mxu0 %v5289
    %5291 = vmatprep.subr.mxu0 0.0
    %5292 = vmatpush2.msra.mxu0 0.0
    %5293 = vmatprep.subr.mxu0 0.0
    %5294 = vmatpush2.msra.mxu0 0.0
    %5295 = vmatprep.subr.mxu0 0.0
    %5296 = vmatpush2.msra.mxu0 0.0
    %5297 = vmatprep.subr.mxu0 0.0
    %5298 = vmatpush2.msra.mxu0 0.0
    %5299 = vmatprep.subr.mxu0 0.0
    %5300 = vmatpush2.msra.mxu0 0.0
    %5301 = vmatprep.subr.mxu0 0.0
    %5302 = vmatpush2.msra.mxu0 0.0
    %5303 = vmatprep.subr.mxu0 0.0
    %5304 = vmatpush2.msra.mxu0 0.0
    %5305 = vmatprep.subr.mxu0 0.0
    %5306 = vmatpush2.msra.mxu0 0.0
    %5307 = vmatprep.subr.mxu0 0.0
    %5308 = vmatpush2.msra.mxu0 0.0
    %5309 = vmatprep.subr.mxu0 0.0
    %5310 = vmatpush2.msra.mxu0 0.0
    %5311 = vmatprep.subr.mxu0 0.0
    %5312 = vmatpush2.msra.mxu0 0.0
    %5313 = vmatprep.subr.mxu0 0.0
    %5314 = vmatpush2.msra.mxu0 0.0
    %5315 = vmatprep.subr.mxu0 0.0
    %5316 = vmatpush2.msra.mxu0 0.0
    %5317 = vmatprep.subr.mxu0 0.0
    %5318 = vmatpush2.msra.mxu0 0.0
    %5319 = vmatprep.subr.mxu0 0.0
    %5320 = vmatpush2.msra.mxu0 0.0
    %5321 = vmatprep.subr.mxu0 0.0
    %5322 = vmatpush2.msra.mxu0 0.0
    %5323 = vmatprep.mubr.f32.mxu0 0.0
    %v5324 = vand.u32 %v4836, 4294901760
    %5325 = vmatmul.mubr.f32.gmra.mxu0 %v5324
    %v5326 = vpop.f32.mrf.mxu0
    %v5327 = vadd.f32 %v5224, %v5326
    %v5328 = vpop.f32.mrf.mxu0
    %5329 = vmatprep.mubr.f32.mxu0 0.0
    %v5330 = vand.u32 %v4839, 4294901760
    %5331 = vmatmul.mubr.f32.gmra.mxu0 %v5330
    %v5332 = vpop.f32.mrf.mxu0
    %v5333 = vadd.f32 %v5232, %v5332
    %v5334 = vpop.f32.mrf.mxu0
    %5335 = vdwg.mxu0
    %5336 = vmatprep.subr.mxu0 0.0
    %5337 = vmatpush1.msra.mxu0 0.0
    %5338 = vmatprep.subr.mxu0 0.0
    %5339 = vmatpush1.msra.mxu0 0.0
    %5340 = vmatprep.subr.mxu0 0.0
    %5341 = vmatpush1.msra.mxu0 0.0
    %5342 = vmatprep.subr.mxu0 0.0
    %5343 = vmatpush1.msra.mxu0 0.0
    %5344 = vmatprep.subr.mxu0 0.0
    %5345 = vmatpush1.msra.mxu0 0.0
    %5346 = vmatprep.subr.mxu0 0.0
    %5347 = vmatpush1.msra.mxu0 0.0
    %5348 = vmatprep.subr.mxu0 0.0
    %5349 = vmatpush1.msra.mxu0 0.0
    %5350 = vmatprep.subr.mxu0 0.0
    %5351 = vmatpush1.msra.mxu0 0.0
    %5352 = vmatprep.subr.mxu0 0.0
    %v5353 = vand.u32 %v50, 4294901760
    %5354 = vmatpush1.msra.mxu0 %v5353
    %5355 = vmatprep.subr.mxu0 0.0
    %v5356 = vand.u32 %v49, 4294901760
    %5357 = vmatpush1.msra.mxu0 %v5356
    %5358 = vmatprep.subr.mxu0 0.0
    %v5359 = vand.u32 %v48, 4294901760
    %5360 = vmatpush1.msra.mxu0 %v5359
    %5361 = vmatprep.subr.mxu0 0.0
    %v5362 = vand.u32 %v47, 4294901760
    %5363 = vmatpush1.msra.mxu0 %v5362
    %5364 = vmatprep.subr.mxu0 0.0
    %v5365 = vand.u32 %v46, 4294901760
    %5366 = vmatpush1.msra.mxu0 %v5365
    %5367 = vmatprep.subr.mxu0 0.0
    %v5368 = vand.u32 %v45, 4294901760
    %5369 = vmatpush1.msra.mxu0 %v5368
    %5370 = vmatprep.subr.mxu0 0.0
    %v5371 = vand.u32 %v44, 4294901760
    %5372 = vmatpush1.msra.mxu0 %v5371
    %5373 = vmatprep.subr.mxu0 0.0
    %v5374 = vand.u32 %v43, 4294901760
    %5375 = vmatpush1.msra.mxu0 %v5374
    %5376 = vmatprep.subr.mxu0 0.0
    %5377 = vmatpush2.msra.mxu0 0.0
    %5378 = vmatprep.subr.mxu0 0.0
    %5379 = vmatpush2.msra.mxu0 0.0
    %5380 = vmatprep.subr.mxu0 0.0
    %5381 = vmatpush2.msra.mxu0 0.0
    %5382 = vmatprep.subr.mxu0 0.0
    %5383 = vmatpush2.msra.mxu0 0.0
    %5384 = vmatprep.subr.mxu0 0.0
    %5385 = vmatpush2.msra.mxu0 0.0
    %5386 = vmatprep.subr.mxu0 0.0
    %5387 = vmatpush2.msra.mxu0 0.0
    %5388 = vmatprep.subr.mxu0 0.0
    %5389 = vmatpush2.msra.mxu0 0.0
    %5390 = vmatprep.subr.mxu0 0.0
    %5391 = vmatpush2.msra.mxu0 0.0
    %5392 = vmatprep.subr.mxu0 0.0
    %5393 = vmatpush2.msra.mxu0 0.0
    %5394 = vmatprep.subr.mxu0 0.0
    %5395 = vmatpush2.msra.mxu0 0.0
    %5396 = vmatprep.subr.mxu0 0.0
    %5397 = vmatpush2.msra.mxu0 0.0
    %5398 = vmatprep.subr.mxu0 0.0
    %5399 = vmatpush2.msra.mxu0 0.0
    %5400 = vmatprep.subr.mxu0 0.0
    %5401 = vmatpush2.msra.mxu0 0.0
    %5402 = vmatprep.subr.mxu0 0.0
    %5403 = vmatpush2.msra.mxu0 0.0
    %5404 = vmatprep.subr.mxu0 0.0
    %5405 = vmatpush2.msra.mxu0 0.0
    %5406 = vmatprep.subr.mxu0 0.0
    %5407 = vmatpush2.msra.mxu0 0.0
    %5408 = vmatprep.mubr.f32.mxu0 0.0
    %v5409 = vand.u32 %v4836, 4294901760
    %5410 = vmatmul.mubr.f32.gmra.mxu0 %v5409
    %v5411 = vpop.f32.mrf.mxu0
    %v5412 = vadd.f32 %v5327, %v5411
    %v5413 = vpop.f32.mrf.mxu0
    %5414 = vmatprep.mubr.f32.mxu0 0.0
    %v5415 = vand.u32 %v4839, 4294901760
    %5416 = vmatmul.mubr.f32.gmra.mxu0 %v5415
    %v5417 = vpop.f32.mrf.mxu0
    %v5418 = vadd.f32 %v5333, %v5417
    %v5419 = vpop.f32.mrf.mxu0
    %5420 = vdwg.mxu0
    %v5421 = vadd.f32 %v4289, %v5412
    %v5422 = vadd.f32 %v4290, %v5418
    %5423 = vst.msk [vmem:[#allocation5] sm:$0xff] %vm61, %v5421
    %5424 = vst.msk [vmem:[#allocation5 + $0x8] sm:$0xff] %vm61, %v5422
    // Predicated region
    $region26: #{tpu_custom_call.1} parent=1 // pred_check
      _
    $region27: #{tpu_custom_call.1} parent=1 // pred_check_branch
      %5426 = sbr.rel (0) target = $region29
    $region28: #{tpu_custom_call.1} parent=1 // pred_region
      %s5428 = ssub.s32 256, 256
      %5429 = vsyncadd [#allocation4], %s5428
      %s5430 = sshll.u32 [#allocation5], 4
      %s5431 = int_to_ptr.vmem [resolvable:$true] %s5430
      %5436 = dma.vmem_to_hbm [thread:$0]  %s5431, 256, %s5, [#allocation4], 128, 128, 8
    $region29: #{tpu_custom_call.1} parent=1 // pred_fallthru
      _
    // Predicated region
    $region30: #{tpu_custom_call.1} parent=1 // pred_check
      _
    $region31: #{tpu_custom_call.1} parent=1 // pred_check_branch
      %5438 = sbr.rel (0) target = $region33
    $region32: #{tpu_custom_call.1} parent=1 // pred_region
      %5439 = dma.done [#allocation4], 256
    $region33: #{tpu_custom_call.1} parent=1 // pred_fallthru
      _
    %5440 = vsyncpa [#allocation3], 1
    %5441 = vsyncpa [#allocation4], 1

</llo_original>
